<compile_context>
chip_gen: v5e
topology: v5e:2x2
jax: 0.10.0
libtpu: 0.0.40
codegen_flags: <defaults>
</compile_context>

<pallas_src>
import functools

import jax
import jax.numpy as jnp
from jax import lax
from jax.experimental import pallas as pl
from jax.experimental.pallas import tpu as pltpu

NEG_SLOPE = 0.01   # nn.LeakyReLU default
EPS = 1e-5         # nn.BatchNorm3d default

# Explicit scoped-VMEM request: comfortably above this kernel's ~25 MiB peak
# at the real 16^3 x 128 config, with headroom under v7x's 64 MiB physical
# VMEM (v5e/v6e have 128 MiB physical).
VMEM_LIMIT_BYTES = 48 * 1024 * 1024


# ---------------------------------------------------------------------------
# Small host-side tiling helpers.
# ---------------------------------------------------------------------------
def _largest_divisor_leq(n, cap):
    cap = max(1, min(n, cap))
    for v in range(cap, 0, -1):
        if n % v == 0:
            return v
    return 1


def _pick_d_tile(d, h, w, cout, budget_bytes=4 * 1024 * 1024):
    """Depth-tile size: prefer >=2 tiles (megacore / pipeline steps), bounded
    by a VMEM budget on the largest per-tile activation block."""
    cap_by_budget = max(1, budget_bytes // max(1, h * w * cout * 4))
    return _largest_divisor_leq(d, min(cap_by_budget, max(1, d // 2)))


def _pick_h_split(h, w, cout, acc_budget_bytes=64 * 1024):
    """Split the per-depth f32 accumulator over H so it stays <= ~16 vregs."""
    s = 1
    while h % (2 * s) == 0 and (h // s) * w * cout * 4 > acc_budget_bytes:
        s *= 2
    return s


# ---------------------------------------------------------------------------
# Kernel 1: per-channel sum / sum-of-squares over (N, D, H, W), gridded over
# (N, D-tiles) with a resident (1, C) accumulator (init via pl.when).
# ---------------------------------------------------------------------------
def _bn_stats_kernel(x_ref, sum_ref, sumsq_ref):
    @pl.when((pl.program_id(0) == 0) & (pl.program_id(1) == 0))
    def _init():
        sum_ref[...] = jnp.zeros_like(sum_ref)
        sumsq_ref[...] = jnp.zeros_like(sumsq_ref)

    x = x_ref[...]                                   # (td, H, W, C) f32
    sum_ref[...] += jnp.sum(x, axis=(0, 1, 2))[None, :]
    sumsq_ref[...] += jnp.sum(x * x, axis=(0, 1, 2))[None, :]


def bn_channel_stats(x_ndhwc, d_tile_budget_bytes=8 * 1024 * 1024):
    n, d, h, w, c = x_ndhwc.shape
    # Largest divisor of D whose (td, H, W, C) block stays within the budget
    # (mem-bound pass: multi-MiB blocks approach the HBM roofline).
    # TODO(synk): pl.cdiv + masked tail so a prime D does not degrade to td=1.
    td = d
    while td > 1 and td * h * w * c * 4 > d_tile_budget_bytes:
        td -= 1
        while d % td:
            td -= 1
    s, ss = pl.pallas_call(
        _bn_stats_kernel,
        grid=(n, d // td),
        in_specs=[pl.BlockSpec((None, td, h, w, c),
                               lambda i, j: (i, j, 0, 0, 0))],
        out_specs=(pl.BlockSpec((1, c), lambda i, j: (0, 0)),
                   pl.BlockSpec((1, c), lambda i, j: (0, 0))),
        out_shape=(jax.ShapeDtypeStruct((1, c), jnp.float32),
                   jax.ShapeDtypeStruct((1, c), jnp.float32)),
        compiler_params=pltpu.CompilerParams(
            dimension_semantics=("arbitrary", "arbitrary"),
            vmem_limit_bytes=VMEM_LIMIT_BYTES),
    )(x_ndhwc)
    return s[0], ss[0]


# ---------------------------------------------------------------------------
# Kernel 2: fused (x*scale + shift) -> LeakyReLU -> conv3d(3x3x3, pad=1)
#           [-> + residual], gridded over (batch, depth-tiles).
#
# conv3d = 9 bf16 MXU matmuls with K = 3*Cin per output depth slice, reading a
# 4-slice depth ring buffer of kw-merged, H-padded slices held in VMEM.
# Optionally emits per-(batch, depth-tile) (sum, sum-of-squares) of the conv
# output so the next BatchNorm needs no extra pass over the intermediate.
# ---------------------------------------------------------------------------
def _fused_bn_relu_conv_kernel(x_ref, scale_ref, shift_ref, w_ref, b_ref,
                               *rest, add_residual, emit_stats, h_split):
    rest = list(rest)
    res_ref = rest.pop(0) if add_residual else None
    o_ref = rest.pop(0)
    sum_ref = rest.pop(0) if emit_stats else None
    sumsq_ref = rest.pop(0) if emit_stats else None
    ring_ref = rest.pop(0)                           # (4, H+2, W, 3C) bf16

    D, H, W, C = x_ref.shape                         # full per-batch volume
    TD = o_ref.shape[0]                              # depth tile handled here
    Cout = o_ref.shape[-1]
    K3 = 3 * C
    HS = H // h_split

    d0 = pl.program_id(1) * TD                       # global depth offset

    scale = scale_ref[...]                           # (1, C) f32
    shift = shift_ref[...]                           # (1, C) f32
    bias = b_ref[...]                                # (1, Cout) f32

    def fill(slot, g):
        """BN affine + LeakyReLU + kw-merge of global input depth g into ring
        slot `slot`.  Out-of-range g (the D halo) yields an all-zero slice by
        zeroing the affine, so no control flow is needed."""
        inside = jnp.logical_and(g >= 0, g < D)
        gc = jnp.clip(g, 0, D - 1)
        sc = jnp.where(inside, scale, 0.0)
        sh = jnp.where(inside, shift, 0.0)
        y = x_ref[gc] * sc + sh                      # (H, W, C) f32, VPU
        y = jnp.where(y > 0, y, NEG_SLOPE * y)
        # kw-merge: q[h, w, kw*C + c] = y_wpad[h, w + kw - 1, c]
        # TODO(synk): replace the W-axis concatenate with pltpu.roll-based
        # shifted lane groups to move this relayout onto the XLU slot.
        zcol = jnp.zeros((H, 1, C), jnp.float32)
        yp = jnp.concatenate([zcol, y, zcol], axis=1)            # (H, W+2, C)
        q = jnp.concatenate(
            [yp[:, 0:W], yp[:, 1:W + 1], yp[:, 2:W + 2]],
            axis=2).astype(jnp.bfloat16)                         # (H, W, 3C)
        zrow = jnp.zeros((1, W, K3), jnp.bfloat16)
        ring_ref[slot] = jnp.concatenate([zrow, q, zrow], axis=0)

    if emit_stats:
        sum_ref[...] = jnp.zeros_like(sum_ref)
        sumsq_ref[...] = jnp.zeros_like(sumsq_ref)

    # Prime the ring with the two slices needed by the first output depth.
    # Slot mapping: global slice g lives in slot (g - d0 + 1) & 3.
    fill(0, d0 - 1)
    fill(1, d0)

    @pl.loop(0, TD)
    def _depth(dd):
        # Slice entering the 3-wide window for output depth d0 + dd.
        fill((dd + 2) & 3, d0 + dd + 1)

        for hh in range(h_split):        # static: keeps the f32 acc small
            row0 = hh * HS
            acc = None
            for kd in range(3):
                slot = (dd + kd) & 3
                for kh in range(3):
                    # Direct per-tap window read feeding the MXU (no
                    # materialized full-row copy).
                    win = ring_ref[slot, pl.ds(row0 + kh, HS)]   # (HS, W, 3C)
                    part = jnp.dot(win.reshape(HS * W, K3),
                                   w_ref[kd * 3 + kh],
                                   preferred_element_type=jnp.float32)
                    acc = part if acc is None else acc + part
            conv_hh = (acc + bias).reshape(HS, W, Cout)
            if emit_stats:
                # Partial sums for the *next* BatchNorm, fused into this
                # epilogue (no extra HBM pass over the conv output).
                sum_ref[...] += jnp.sum(conv_hh, axis=(0, 1))[None, :]
                sumsq_ref[...] += jnp.sum(conv_hh * conv_hh,
                                          axis=(0, 1))[None, :]
            if add_residual:
                conv_hh = conv_hh + res_ref[dd, pl.ds(row0, HS)]
            o_ref[dd, pl.ds(row0, HS)] = conv_hh.astype(o_ref.dtype)


def fused_bn_relu_conv(x, scale, shift, w9, bias, residual=None,
                       emit_stats=False):
    n, d, h, w, c = x.shape
    cout = w9.shape[-1]
    assert w9.shape == (9, 3 * c, cout) and w9.dtype == jnp.bfloat16
    if residual is not None:
        assert residual.shape == (n, d, h, w, cout)

    td = _pick_d_tile(d, h, w, cout)
    ndt = d // td
    h_split = _pick_h_split(h, w, cout)

    kernel = functools.partial(_fused_bn_relu_conv_kernel,
                               add_residual=residual is not None,
                               emit_stats=emit_stats,
                               h_split=h_split)

    in_specs = [
        # Full per-batch input volume; the index is constant over the depth-
        # tile axis, so it is not re-DMA'd between depth tiles, and boundary
        # halos need no special BlockSpec handling.
        pl.BlockSpec((None, d, h, w, c), lambda i, j: (i, 0, 0, 0, 0)),
        pl.BlockSpec((1, c), lambda i, j: (0, 0)),
        pl.BlockSpec((1, c), lambda i, j: (0, 0)),
        # TODO(synk): single-buffer these grid-invariant operands
        # (pipeline_mode=pl.Buffered(1)) to return ~1 MiB of VMEM once that is
        # universally supported.
        pl.BlockSpec((9, 3 * c, cout), lambda i, j: (0, 0, 0)),
        pl.BlockSpec((1, cout), lambda i, j: (0, 0)),
    ]
    args = [x,
            scale.reshape(1, c).astype(jnp.float32),
            shift.reshape(1, c).astype(jnp.float32),
            w9,
            bias.reshape(1, cout).astype(jnp.float32)]
    if residual is not None:
        in_specs.append(
            pl.BlockSpec((None, td, h, w, cout), lambda i, j: (i, j, 0, 0, 0)))
        args.append(residual)

    z_shape = jax.ShapeDtypeStruct((n, d, h, w, cout), jnp.float32)
    z_spec = pl.BlockSpec((None, td, h, w, cout), lambda i, j: (i, j, 0, 0, 0))
    if emit_stats:
        # Per-(batch, depth-tile) partial sums (kept disjoint so both grid
        # axes stay "parallel"); reduced to per-channel stats on the host.
        s_shape = jax.ShapeDtypeStruct((n, ndt, 1, cout), jnp.float32)
        s_spec = pl.BlockSpec((None, None, 1, cout), lambda i, j: (i, j, 0, 0))
        out_shape = (z_shape, s_shape, s_shape)
        out_specs = (z_spec, s_spec, s_spec)
    else:
        out_shape = z_shape
        out_specs = z_spec

    return pl.pallas_call(
        kernel,
        grid=(n, ndt),
        in_specs=in_specs,
        out_specs=out_specs,
        out_shape=out_shape,
        scratch_shapes=[pltpu.VMEM((4, h + 2, w, 3 * c), jnp.bfloat16)],
        compiler_params=pltpu.CompilerParams(
            dimension_semantics=("parallel", "parallel"),
            vmem_limit_bytes=VMEM_LIMIT_BYTES),
    )(*args)


# ---------------------------------------------------------------------------
# EnBlock2 forward (NDHWC).
# ---------------------------------------------------------------------------
def en_block2_forward(x_ndhwc, params):
    n, d, h, w, c = x_ndhwc.shape
    count = float(n * d * h * w)

    # bn1 statistics (values are zero-centered O(1), so E[x^2]-E[x]^2 in f32
    # is numerically safe here).
    s1, ss1 = bn_channel_stats(x_ndhwc)
    mean1 = s1 / count
    var1 = ss1 / count - mean1 * mean1
    scale1 = params["gamma1"] / jnp.sqrt(var1 + EPS)
    shift1 = params["beta1"] - mean1 * scale1

    # bn1 -> relu1 -> conv1, with bn2's partial sums fused into the epilogue.
    z1, zsum, zsumsq = fused_bn_relu_conv(
        x_ndhwc, scale1, shift1, params["w1"], params["b1"], emit_stats=True)

    mean2 = jnp.sum(zsum, axis=(0, 1, 2)) / count
    var2 = jnp.sum(zsumsq, axis=(0, 1, 2)) / count - mean2 * mean2
    scale2 = params["gamma2"] / jnp.sqrt(var2 + EPS)
    shift2 = params["beta2"] - mean2 * scale2

    # bn2 -> relu2 -> conv2 -> + x.
    return fused_bn_relu_conv(
        z1, scale2, shift2, params["w2"], params["b2"], residual=x_ndhwc)


# ---------------------------------------------------------------------------
# Pure-JAX reference (PyTorch NCDHW semantics) for correctness checking.
# matmul_dtype=bfloat16 mirrors the kernel's MXU precision choice exactly.
# ---------------------------------------------------------------------------
def reference_forward(x_ncdhw, p, matmul_dtype=jnp.float32):
    def bn(x, g, b):
        mean = jnp.mean(x, axis=(0, 2, 3, 4), keepdims=True)
        var = jnp.var(x, axis=(0, 2, 3, 4), keepdims=True)  # biased (train BN)
        xn = (x - mean) / jnp.sqrt(var + EPS)
        return xn * g[None, :, None, None, None] + b[None, :, None, None, None]

    def lrelu(x):
        return jnp.where(x > 0, x, NEG_SLOPE * x)

    def conv(x, w, b):
        y = lax.conv_general_dilated(
            x.astype(matmul_dtype), w.astype(matmul_dtype),
            window_strides=(1, 1, 1), padding=[(1, 1)] * 3,
            dimension_numbers=("NCDHW", "OIDHW", "NCDHW"),
            preferred_element_type=jnp.float32)
        return y + b[None, :, None, None, None]

    x1 = conv(lrelu(bn(x_ncdhw, p["gamma1"], p["beta1"])), p["w1_pt"], p["b1"])
    x1 = conv(lrelu(bn(x1, p["gamma2"], p["beta2"])), p["w2_pt"], p["b2"])
    return x1 + x_ncdhw


if __name__ == "__main__":
    key = jax.random.PRNGKey(0)
    N, C, D, H, W = 2, 16, 8, 8, 8       # small synthetic shapes (in_channels=C)
    ks = jax.random.split(key, 9)

    x_ncdhw = jax.random.normal(ks[0], (N, C, D, H, W), jnp.float32)
    w1_pt = 0.05 * jax.random.normal(ks[1], (C, C, 3, 3, 3), jnp.float32)
    b1 = 0.05 * jax.random.normal(ks[2], (C,), jnp.float32)
    w2_pt = 0.05 * jax.random.normal(ks[3], (C, C, 3, 3, 3), jnp.float32)
    b2 = 0.05 * jax.random.normal(ks[4], (C,), jnp.float32)
    gamma1 = 1.0 + 0.1 * jax.random.normal(ks[5], (C,), jnp.float32)
    beta1 = 0.1 * jax.random.normal(ks[6], (C,), jnp.float32)
    gamma2 = 1.0 + 0.1 * jax.random.normal(ks[7], (C,), jnp.float32)
    beta2 = 0.1 * jax.random.normal(ks[8], (C,), jnp.float32)

    # Glue: NCDHW -> NDHWC activations; OIDHW -> (9, 3*Cin, Cout) bf16 weights
    # (kw folded into the contraction dimension).
    x_ndhwc = jnp.transpose(x_ncdhw, (0, 2, 3, 4, 1))
    w1 = jnp.transpose(w1_pt, (2, 3, 4, 1, 0)).reshape(9, 3 * C, C)
    w1 = w1.astype(jnp.bfloat16)
    w2 = jnp.transpose(w2_pt, (2, 3, 4, 1, 0)).reshape(9, 3 * C, C)
    w2 = w2.astype(jnp.bfloat16)

    params = dict(gamma1=gamma1, beta1=beta1, gamma2=gamma2, beta2=beta2,
                  w1=w1, b1=b1, w2=w2, b2=b2)

    out_ndhwc = jax.jit(en_block2_forward)(x_ndhwc, params)
    out_ndhwc = jax.block_until_ready(out_ndhwc)
    out_ncdhw = jnp.transpose(out_ndhwc, (0, 4, 1, 2, 3))

    pref = dict(gamma1=gamma1, beta1=beta1, gamma2=gamma2, beta2=beta2,
                w1_pt=w1_pt, b1=b1, w2_pt=w2_pt, b2=b2)

    # Tight check vs a reference using the same bf16-operand / f32-accumulate
    # conv precision as the kernel.
    ref_bf16 = reference_forward(x_ncdhw, pref, matmul_dtype=jnp.bfloat16)
    err_tight = float(jnp.max(jnp.abs(out_ncdhw - ref_bf16)))
    assert err_tight < 1e-2, f"mismatch vs bf16-matmul reference: {err_tight}"

    # Loose check vs exact f32 PyTorch semantics (bounds the bf16 MXU
    # precision trade-off across the two stacked 3x3x3 convs).
    ref_f32 = reference_forward(x_ncdhw, pref, matmul_dtype=jnp.float32)
    err_loose = float(jnp.max(jnp.abs(out_ncdhw - ref_f32)))
    assert err_loose < 1e-1, f"mismatch vs f32 reference: {err_loose}"

    print("KERNEL_OK")
</pallas_src>

<mosaic_0001>
module attributes {stable_mosaic.version = 11 : i64} {
  func.func @_bn_stats_kernel(%arg0: i32, %arg1: i32, %arg2: memref<1x8x8x8x16xf32, #tpu.memory_space<vmem>>, %arg3: memref<1x16xf32, #tpu.memory_space<vmem>>, %arg4: memref<1x16xf32, #tpu.memory_space<vmem>>) attributes {dimension_semantics = [#tpu.dimension_semantics<arbitrary>, #tpu.dimension_semantics<arbitrary>], iteration_bounds = array<i64: 2, 1>, scalar_prefetch = 0 : i64, scratch_operands = 0 : i64, tpu.core_type = #tpu.core_type<tc>, window_params = [{transform_indices = @transform_0, window_bounds = array<i64: 1, 8, 8, 8, 16>}, {pipeline_mode = #tpu.pipeline_mode<synchronous>, transform_indices = @transform_1, window_bounds = array<i64: 1, 16>}, {pipeline_mode = #tpu.pipeline_mode<synchronous>, transform_indices = @transform_2, window_bounds = array<i64: 1, 16>}]} {
    %c0_i32 = arith.constant 0 : i32
    %0 = arith.cmpi eq, %arg0, %c0_i32 : i32
    %c0_i32_0 = arith.constant 0 : i32
    %1 = arith.cmpi eq, %arg1, %c0_i32_0 : i32
    %2 = arith.andi %0, %1 : i1
    %3 = arith.extui %2 : i1 to i32
    %c0_i32_1 = arith.constant 0 : i32
    %4 = arith.cmpi ne, %3, %c0_i32_1 : i32
    scf.if %4 {
      %cst_15 = arith.constant 0.000000e+00 : f32
      %18 = vector.broadcast %cst_15 : f32 to vector<1x16xf32>
      %c0_16 = arith.constant 0 : index
      %c0_17 = arith.constant 0 : index
      %19 = vector.load %arg3[%c0_16, %c0_17] : memref<1x16xf32, #tpu.memory_space<vmem>>, vector<1x16xf32>
      tpu.vector_store %arg3[%c0_16, %c0_17], %18 {strides = array<i32>} : memref<1x16xf32, #tpu.memory_space<vmem>>, vector<1x16xf32>,
      %cst_18 = arith.constant 0.000000e+00 : f32
      %20 = vector.broadcast %cst_18 : f32 to vector<1x16xf32>
      %c0_19 = arith.constant 0 : index
      %c0_20 = arith.constant 0 : index
      %21 = vector.load %arg4[%c0_19, %c0_20] : memref<1x16xf32, #tpu.memory_space<vmem>>, vector<1x16xf32>
      tpu.vector_store %arg4[%c0_19, %c0_20], %20 {strides = array<i32>} : memref<1x16xf32, #tpu.memory_space<vmem>>, vector<1x16xf32>,
    } else {
    }
    %c0 = arith.constant 0 : index
    %c0_2 = arith.constant 0 : index
    %c0_3 = arith.constant 0 : index
    %c0_4 = arith.constant 0 : index
    %c0_5 = arith.constant 0 : index
    %5 = vector.load %arg2[%c0, %c0_2, %c0_3, %c0_4, %c0_5] : memref<1x8x8x8x16xf32, #tpu.memory_space<vmem>>, vector<1x8x8x8x16xf32>
    %6 = vector.shape_cast %5 : vector<1x8x8x8x16xf32> to vector<8x8x8x16xf32>
    %c0_6 = arith.constant 0 : index
    %c0_7 = arith.constant 0 : index
    %7 = vector.load %arg3[%c0_6, %c0_7] : memref<1x16xf32, #tpu.memory_space<vmem>>, vector<1x16xf32>
    %cst = arith.constant dense<0.000000e+00> : vector<16xf32>
    %8 = vector.multi_reduction <add>, %6, %cst [0, 1, 2] : vector<8x8x8x16xf32> to vector<16xf32>
    %9 = vector.shape_cast %8 : vector<16xf32> to vector<1x16xf32>
    %10 = arith.addf %7, %9 : vector<1x16xf32>
    %c0_8 = arith.constant 0 : index
    %c0_9 = arith.constant 0 : index
    %11 = vector.load %arg3[%c0_8, %c0_9] : memref<1x16xf32, #tpu.memory_space<vmem>>, vector<1x16xf32>
    tpu.vector_store %arg3[%c0_8, %c0_9], %10 {strides = array<i32>} : memref<1x16xf32, #tpu.memory_space<vmem>>, vector<1x16xf32>,
    %c0_10 = arith.constant 0 : index
    %c0_11 = arith.constant 0 : index
    %12 = vector.load %arg4[%c0_10, %c0_11] : memref<1x16xf32, #tpu.memory_space<vmem>>, vector<1x16xf32>
    %13 = arith.mulf %6, %6 : vector<8x8x8x16xf32>
    %cst_12 = arith.constant dense<0.000000e+00> : vector<16xf32>
    %14 = vector.multi_reduction <add>, %13, %cst_12 [0, 1, 2] : vector<8x8x8x16xf32> to vector<16xf32>
    %15 = vector.shape_cast %14 : vector<16xf32> to vector<1x16xf32>
    %16 = arith.addf %12, %15 : vector<1x16xf32>
    %c0_13 = arith.constant 0 : index
    %c0_14 = arith.constant 0 : index
    %17 = vector.load %arg4[%c0_13, %c0_14] : memref<1x16xf32, #tpu.memory_space<vmem>>, vector<1x16xf32>
    tpu.vector_store %arg4[%c0_13, %c0_14], %16 {strides = array<i32>} : memref<1x16xf32, #tpu.memory_space<vmem>>, vector<1x16xf32>,
    return
  }
  func.func @transform_0(%arg0: i32, %arg1: i32) -> (i32, i32, i32, i32, i32) {
    %c0_i32 = arith.constant 0 : i32
    %c0_i32_0 = arith.constant 0 : i32
    %c0_i32_1 = arith.constant 0 : i32
    %c0_i32_2 = arith.constant 0 : i32
    return %arg0, %arg1, %c0_i32, %c0_i32_0, %c0_i32_1 : i32, i32, i32, i32, i32
  }
  func.func @transform_1(%arg0: i32, %arg1: i32) -> (i32, i32) {
    %c0_i32 = arith.constant 0 : i32
    %c0_i32_0 = arith.constant 0 : i32
    %c0_i32_1 = arith.constant 0 : i32
    return %c0_i32, %c0_i32_0 : i32, i32
  }
  func.func @transform_2(%arg0: i32, %arg1: i32) -> (i32, i32) {
    %c0_i32 = arith.constant 0 : i32
    %c0_i32_0 = arith.constant 0 : i32
    %c0_i32_1 = arith.constant 0 : i32
    return %c0_i32, %c0_i32_0 : i32, i32
  }
}

module attributes {stable_mosaic.version = 11 : i64} {
  func.func @_fused_bn_relu_conv_kernel(%arg0: i32, %arg1: i32, %arg2: memref<1x8x8x8x16xf32, #tpu.memory_space<vmem>>, %arg3: memref<1x16xf32, #tpu.memory_space<vmem>>, %arg4: memref<1x16xf32, #tpu.memory_space<vmem>>, %arg5: memref<9x48x16xbf16, #tpu.memory_space<vmem>>, %arg6: memref<1x16xf32, #tpu.memory_space<vmem>>, %arg7: memref<1x4x8x8x16xf32, #tpu.memory_space<vmem>>, %arg8: memref<1x1x1x16xf32, #tpu.memory_space<vmem>>, %arg9: memref<1x1x1x16xf32, #tpu.memory_space<vmem>>, %arg10: memref<4x10x8x48xbf16, #tpu.memory_space<vmem>>) attributes {dimension_semantics = [#tpu.dimension_semantics<parallel>, #tpu.dimension_semantics<parallel>], iteration_bounds = array<i64: 2, 2>, scalar_prefetch = 0 : i64, scratch_operands = 1 : i64, tpu.core_type = #tpu.core_type<tc>, window_params = [{transform_indices = @transform_0, window_bounds = array<i64: 1, 8, 8, 8, 16>}, {pipeline_mode = #tpu.pipeline_mode<synchronous>, transform_indices = @transform_1, window_bounds = array<i64: 1, 16>}, {pipeline_mode = #tpu.pipeline_mode<synchronous>, transform_indices = @transform_2, window_bounds = array<i64: 1, 16>}, {pipeline_mode = #tpu.pipeline_mode<synchronous>, transform_indices = @transform_3, window_bounds = array<i64: 9, 48, 16>}, {pipeline_mode = #tpu.pipeline_mode<synchronous>, transform_indices = @transform_4, window_bounds = array<i64: 1, 16>}, {transform_indices = @transform_5, window_bounds = array<i64: 1, 4, 8, 8, 16>}, {transform_indices = @transform_6, window_bounds = array<i64: 1, 1, 1, 16>}, {transform_indices = @transform_7, window_bounds = array<i64: 1, 1, 1, 16>}]} {
    %c4_i32 = arith.constant 4 : i32
    %0 = arith.muli %arg1, %c4_i32 : i32
    %c0 = arith.constant 0 : index
    %c0_0 = arith.constant 0 : index
    %1 = vector.load %arg3[%c0, %c0_0] : memref<1x16xf32, #tpu.memory_space<vmem>>, vector<1x16xf32>
    %c0_1 = arith.constant 0 : index
    %c0_2 = arith.constant 0 : index
    %2 = vector.load %arg4[%c0_1, %c0_2] : memref<1x16xf32, #tpu.memory_space<vmem>>, vector<1x16xf32>
    %c0_3 = arith.constant 0 : index
    %c0_4 = arith.constant 0 : index
    %3 = vector.load %arg6[%c0_3, %c0_4] : memref<1x16xf32, #tpu.memory_space<vmem>>, vector<1x16xf32>
    %cst = arith.constant 0.000000e+00 : f32
    %4 = vector.broadcast %cst : f32 to vector<1x16xf32>
    %c0_5 = arith.constant 0 : index
    %c0_6 = arith.constant 0 : index
    %c0_7 = arith.constant 0 : index
    %c0_8 = arith.constant 0 : index
    %5 = vector.load %arg8[%c0_5, %c0_6, %c0_7, %c0_8] : memref<1x1x1x16xf32, #tpu.memory_space<vmem>>, vector<1x1x1x16xf32>
    %6 = vector.shape_cast %5 : vector<1x1x1x16xf32> to vector<1x16xf32>
    %7 = vector.shape_cast %4 : vector<1x16xf32> to vector<1x1x1x16xf32>
    tpu.vector_store %arg8[%c0_5, %c0_6, %c0_7, %c0_8], %7 {strides = array<i32>} : memref<1x1x1x16xf32, #tpu.memory_space<vmem>>, vector<1x1x1x16xf32>,
    %cst_9 = arith.constant 0.000000e+00 : f32
    %8 = vector.broadcast %cst_9 : f32 to vector<1x16xf32>
    %c0_10 = arith.constant 0 : index
    %c0_11 = arith.constant 0 : index
    %c0_12 = arith.constant 0 : index
    %c0_13 = arith.constant 0 : index
    %9 = vector.load %arg9[%c0_10, %c0_11, %c0_12, %c0_13] : memref<1x1x1x16xf32, #tpu.memory_space<vmem>>, vector<1x1x1x16xf32>
    %10 = vector.shape_cast %9 : vector<1x1x1x16xf32> to vector<1x16xf32>
    %11 = vector.shape_cast %8 : vector<1x16xf32> to vector<1x1x1x16xf32>
    tpu.vector_store %arg9[%c0_10, %c0_11, %c0_12, %c0_13], %11 {strides = array<i32>} : memref<1x1x1x16xf32, #tpu.memory_space<vmem>>, vector<1x1x1x16xf32>,
    %c1_i32 = arith.constant 1 : i32
    %12 = arith.subi %0, %c1_i32 : i32
    %c0_i32 = arith.constant 0 : i32
    %13 = arith.cmpi sge, %12, %c0_i32 : i32
    %c8_i32 = arith.constant 8 : i32
    %14 = arith.cmpi slt, %12, %c8_i32 : i32
    %15 = arith.andi %13, %14 : i1
    %c0_i32_14 = arith.constant 0 : i32
    %c7_i32 = arith.constant 7 : i32
    %16 = arith.maxsi %c0_i32_14, %12 : i32
    %17 = arith.minsi %c7_i32, %16 : i32
    %cst_15 = arith.constant 0.000000e+00 : f32
    %18 = vector.broadcast %cst_15 : f32 to vector<1x16xf32>
    %19 = arith.select %15, %1, %18 : vector<1x16xf32>
    %cst_16 = arith.constant 0.000000e+00 : f32
    %20 = vector.broadcast %cst_16 : f32 to vector<1x16xf32>
    %21 = arith.select %15, %2, %20 : vector<1x16xf32>
    %c0_17 = arith.constant 0 : index
    %22 = arith.index_cast %17 : i32 to index
    %c0_18 = arith.constant 0 : index
    %c0_19 = arith.constant 0 : index
    %c0_20 = arith.constant 0 : index
    %23 = vector.load %arg2[%c0_17, %22, %c0_18, %c0_19, %c0_20] : memref<1x8x8x8x16xf32, #tpu.memory_space<vmem>>, vector<1x1x8x8x16xf32>
    %24 = vector.shape_cast %23 : vector<1x1x8x8x16xf32> to vector<8x8x16xf32>
    %25 = vector.shape_cast %19 : vector<1x16xf32> to vector<1x1x16xf32>
    %26 = vector.broadcast %25 : vector<1x1x16xf32> to vector<8x8x16xf32>
    %27 = arith.mulf %24, %26 : vector<8x8x16xf32>
    %28 = vector.shape_cast %21 : vector<1x16xf32> to vector<1x1x16xf32>
    %29 = vector.broadcast %28 : vector<1x1x16xf32> to vector<8x8x16xf32>
    %30 = arith.addf %27, %29 : vector<8x8x16xf32>
    %cst_21 = arith.constant 0.000000e+00 : f32
    %31 = vector.broadcast %cst_21 : f32 to vector<8x8x16xf32>
    %32 = arith.cmpf ogt, %30, %31 : vector<8x8x16xf32>
    %cst_22 = arith.constant 0.00999999977 : f32
    %33 = vector.broadcast %cst_22 : f32 to vector<8x8x16xf32>
    %34 = arith.mulf %33, %30 : vector<8x8x16xf32>
    %35 = arith.select %32, %30, %34 : vector<8x8x16xi1>, vector<8x8x16xf32>
    %cst_23 = arith.constant 0.000000e+00 : f32
    %36 = vector.broadcast %cst_23 : f32 to vector<8x1x16xf32>
    %37 = tpu.concatenate %36, %35, %36 in 1 : vector<8x1x16xf32>, vector<8x8x16xf32>, vector<8x1x16xf32> -> vector<8x10x16xf32>
    %38 = vector.extract_strided_slice %37 {offsets = [0, 0, 0], sizes = [8, 8, 16], strides = [1, 1, 1]} : vector<8x10x16xf32> to vector<8x8x16xf32>
    %39 = vector.extract_strided_slice %37 {offsets = [0, 1, 0], sizes = [8, 8, 16], strides = [1, 1, 1]} : vector<8x10x16xf32> to vector<8x8x16xf32>
    %40 = vector.extract_strided_slice %37 {offsets = [0, 2, 0], sizes = [8, 8, 16], strides = [1, 1, 1]} : vector<8x10x16xf32> to vector<8x8x16xf32>
    %41 = tpu.concatenate %38, %39, %40 in 2 : vector<8x8x16xf32>, vector<8x8x16xf32>, vector<8x8x16xf32> -> vector<8x8x48xf32>
    %42 = arith.truncf %41 : vector<8x8x48xf32> to vector<8x8x48xbf16>
    %cst_24 = arith.constant 0.000000e+00 : bf16
    %43 = vector.broadcast %cst_24 : bf16 to vector<1x8x48xbf16>
    %44 = tpu.concatenate %43, %42, %43 in 0 : vector<1x8x48xbf16>, vector<8x8x48xbf16>, vector<1x8x48xbf16> -> vector<10x8x48xbf16>
    %c0_25 = arith.constant 0 : index
    %c0_26 = arith.constant 0 : index
    %c0_27 = arith.constant 0 : index
    %c0_28 = arith.constant 0 : index
    %45 = vector.load %arg10[%c0_25, %c0_26, %c0_27, %c0_28] : memref<4x10x8x48xbf16, #tpu.memory_space<vmem>>, vector<1x10x8x48xbf16>
    %46 = vector.shape_cast %45 : vector<1x10x8x48xbf16> to vector<10x8x48xbf16>
    %47 = vector.shape_cast %44 : vector<10x8x48xbf16> to vector<1x10x8x48xbf16>
    tpu.vector_store %arg10[%c0_25, %c0_26, %c0_27, %c0_28], %47 {strides = array<i32>} : memref<4x10x8x48xbf16, #tpu.memory_space<vmem>>, vector<1x10x8x48xbf16>,
    %c0_i32_29 = arith.constant 0 : i32
    %48 = arith.cmpi sge, %0, %c0_i32_29 : i32
    %c8_i32_30 = arith.constant 8 : i32
    %49 = arith.cmpi slt, %0, %c8_i32_30 : i32
    %50 = arith.andi %48, %49 : i1
    %c0_i32_31 = arith.constant 0 : i32
    %c7_i32_32 = arith.constant 7 : i32
    %51 = arith.maxsi %c0_i32_31, %0 : i32
    %52 = arith.minsi %c7_i32_32, %51 : i32
    %cst_33 = arith.constant 0.000000e+00 : f32
    %53 = vector.broadcast %cst_33 : f32 to vector<1x16xf32>
    %54 = arith.select %50, %1, %53 : vector<1x16xf32>
    %cst_34 = arith.constant 0.000000e+00 : f32
    %55 = vector.broadcast %cst_34 : f32 to vector<1x16xf32>
    %56 = arith.select %50, %2, %55 : vector<1x16xf32>
    %c0_35 = arith.constant 0 : index
    %57 = arith.index_cast %52 : i32 to index
    %c0_36 = arith.constant 0 : index
    %c0_37 = arith.constant 0 : index
    %c0_38 = arith.constant 0 : index
    %58 = vector.load %arg2[%c0_35, %57, %c0_36, %c0_37, %c0_38] : memref<1x8x8x8x16xf32, #tpu.memory_space<vmem>>, vector<1x1x8x8x16xf32>
    %59 = vector.shape_cast %58 : vector<1x1x8x8x16xf32> to vector<8x8x16xf32>
    %60 = vector.shape_cast %54 : vector<1x16xf32> to vector<1x1x16xf32>
    %61 = vector.broadcast %60 : vector<1x1x16xf32> to vector<8x8x16xf32>
    %62 = arith.mulf %59, %61 : vector<8x8x16xf32>
    %63 = vector.shape_cast %56 : vector<1x16xf32> to vector<1x1x16xf32>
    %64 = vector.broadcast %63 : vector<1x1x16xf32> to vector<8x8x16xf32>
    %65 = arith.addf %62, %64 : vector<8x8x16xf32>
    %cst_39 = arith.constant 0.000000e+00 : f32
    %66 = vector.broadcast %cst_39 : f32 to vector<8x8x16xf32>
    %67 = arith.cmpf ogt, %65, %66 : vector<8x8x16xf32>
    %cst_40 = arith.constant 0.00999999977 : f32
    %68 = vector.broadcast %cst_40 : f32 to vector<8x8x16xf32>
    %69 = arith.mulf %68, %65 : vector<8x8x16xf32>
    %70 = arith.select %67, %65, %69 : vector<8x8x16xi1>, vector<8x8x16xf32>
    %cst_41 = arith.constant 0.000000e+00 : f32
    %71 = vector.broadcast %cst_41 : f32 to vector<8x1x16xf32>
    %72 = tpu.concatenate %71, %70, %71 in 1 : vector<8x1x16xf32>, vector<8x8x16xf32>, vector<8x1x16xf32> -> vector<8x10x16xf32>
    %73 = vector.extract_strided_slice %72 {offsets = [0, 0, 0], sizes = [8, 8, 16], strides = [1, 1, 1]} : vector<8x10x16xf32> to vector<8x8x16xf32>
    %74 = vector.extract_strided_slice %72 {offsets = [0, 1, 0], sizes = [8, 8, 16], strides = [1, 1, 1]} : vector<8x10x16xf32> to vector<8x8x16xf32>
    %75 = vector.extract_strided_slice %72 {offsets = [0, 2, 0], sizes = [8, 8, 16], strides = [1, 1, 1]} : vector<8x10x16xf32> to vector<8x8x16xf32>
    %76 = tpu.concatenate %73, %74, %75 in 2 : vector<8x8x16xf32>, vector<8x8x16xf32>, vector<8x8x16xf32> -> vector<8x8x48xf32>
    %77 = arith.truncf %76 : vector<8x8x48xf32> to vector<8x8x48xbf16>
    %cst_42 = arith.constant 0.000000e+00 : bf16
    %78 = vector.broadcast %cst_42 : bf16 to vector<1x8x48xbf16>
    %79 = tpu.concatenate %78, %77, %78 in 0 : vector<1x8x48xbf16>, vector<8x8x48xbf16>, vector<1x8x48xbf16> -> vector<10x8x48xbf16>
    %c1 = arith.constant 1 : index
    %c0_43 = arith.constant 0 : index
    %c0_44 = arith.constant 0 : index
    %c0_45 = arith.constant 0 : index
    %80 = vector.load %arg10[%c1, %c0_43, %c0_44, %c0_45] : memref<4x10x8x48xbf16, #tpu.memory_space<vmem>>, vector<1x10x8x48xbf16>
    %81 = vector.shape_cast %80 : vector<1x10x8x48xbf16> to vector<10x8x48xbf16>
    %82 = vector.shape_cast %79 : vector<10x8x48xbf16> to vector<1x10x8x48xbf16>
    tpu.vector_store %arg10[%c1, %c0_43, %c0_44, %c0_45], %82 {strides = array<i32>} : memref<4x10x8x48xbf16, #tpu.memory_space<vmem>>, vector<1x10x8x48xbf16>,
    %c0_i32_46 = arith.constant 0 : i32
    %c4_i32_47 = arith.constant 4 : i32
    %83 = arith.addi %c0_i32_46, %c4_i32_47 : i32
    %c1_i32_48 = arith.constant 1 : i32
    scf.for %arg11 = %c0_i32_46 to %83 step %c1_i32_48  : i32 {
      %c1_i32_50 = arith.constant 1 : i32
      %84 = arith.muli %arg11, %c1_i32_50 : i32
      %c0_i32_51 = arith.constant 0 : i32
      %85 = arith.addi %c0_i32_51, %84 : i32
      %c2_i32 = arith.constant 2 : i32
      %86 = arith.addi %85, %c2_i32 : i32
      %c3_i32 = arith.constant 3 : i32
      %87 = arith.andi %86, %c3_i32 : i32
      %88 = arith.addi %0, %85 : i32
      %c1_i32_52 = arith.constant 1 : i32
      %89 = arith.addi %88, %c1_i32_52 : i32
      %c0_i32_53 = arith.constant 0 : i32
      %90 = arith.cmpi sge, %89, %c0_i32_53 : i32
      %c8_i32_54 = arith.constant 8 : i32
      %91 = arith.cmpi slt, %89, %c8_i32_54 : i32
      %92 = arith.andi %90, %91 : i1
      %c0_i32_55 = arith.constant 0 : i32
      %c7_i32_56 = arith.constant 7 : i32
      %93 = arith.maxsi %c0_i32_55, %89 : i32
      %94 = arith.minsi %c7_i32_56, %93 : i32
      %cst_57 = arith.constant 0.000000e+00 : f32
      %95 = vector.broadcast %cst_57 : f32 to vector<1x16xf32>
      %96 = arith.select %92, %1, %95 : vector<1x16xf32>
      %cst_58 = arith.constant 0.000000e+00 : f32
      %97 = vector.broadcast %cst_58 : f32 to vector<1x16xf32>
      %98 = arith.select %92, %2, %97 : vector<1x16xf32>
      %c0_59 = arith.constant 0 : index
      %99 = arith.index_cast %94 : i32 to index
      %c0_60 = arith.constant 0 : index
      %c0_61 = arith.constant 0 : index
      %c0_62 = arith.constant 0 : index
      %100 = vector.load %arg2[%c0_59, %99, %c0_60, %c0_61, %c0_62] : memref<1x8x8x8x16xf32, #tpu.memory_space<vmem>>, vector<1x1x8x8x16xf32>
      %101 = vector.shape_cast %100 : vector<1x1x8x8x16xf32> to vector<8x8x16xf32>
      %102 = vector.shape_cast %96 : vector<1x16xf32> to vector<1x1x16xf32>
      %103 = vector.broadcast %102 : vector<1x1x16xf32> to vector<8x8x16xf32>
      %104 = arith.mulf %101, %103 : vector<8x8x16xf32>
      %105 = vector.shape_cast %98 : vector<1x16xf32> to vector<1x1x16xf32>
      %106 = vector.broadcast %105 : vector<1x1x16xf32> to vector<8x8x16xf32>
      %107 = arith.addf %104, %106 : vector<8x8x16xf32>
      %cst_63 = arith.constant 0.000000e+00 : f32
      %108 = vector.broadcast %cst_63 : f32 to vector<8x8x16xf32>
      %109 = arith.cmpf ogt, %107, %108 : vector<8x8x16xf32>
      %cst_64 = arith.constant 0.00999999977 : f32
      %110 = vector.broadcast %cst_64 : f32 to vector<8x8x16xf32>
      %111 = arith.mulf %110, %107 : vector<8x8x16xf32>
      %112 = arith.select %109, %107, %111 : vector<8x8x16xi1>, vector<8x8x16xf32>
      %cst_65 = arith.constant 0.000000e+00 : f32
      %113 = vector.broadcast %cst_65 : f32 to vector<8x1x16xf32>
      %114 = tpu.concatenate %113, %112, %113 in 1 : vector<8x1x16xf32>, vector<8x8x16xf32>, vector<8x1x16xf32> -> vector<8x10x16xf32>
      %115 = vector.extract_strided_slice %114 {offsets = [0, 0, 0], sizes = [8, 8, 16], strides = [1, 1, 1]} : vector<8x10x16xf32> to vector<8x8x16xf32>
      %116 = vector.extract_strided_slice %114 {offsets = [0, 1, 0], sizes = [8, 8, 16], strides = [1, 1, 1]} : vector<8x10x16xf32> to vector<8x8x16xf32>
      %117 = vector.extract_strided_slice %114 {offsets = [0, 2, 0], sizes = [8, 8, 16], strides = [1, 1, 1]} : vector<8x10x16xf32> to vector<8x8x16xf32>
      %118 = tpu.concatenate %115, %116, %117 in 2 : vector<8x8x16xf32>, vector<8x8x16xf32>, vector<8x8x16xf32> -> vector<8x8x48xf32>
      %119 = arith.truncf %118 : vector<8x8x48xf32> to vector<8x8x48xbf16>
      %cst_66 = arith.constant 0.000000e+00 : bf16
      %120 = vector.broadcast %cst_66 : bf16 to vector<1x8x48xbf16>
      %121 = tpu.concatenate %120, %119, %120 in 0 : vector<1x8x48xbf16>, vector<8x8x48xbf16>, vector<1x8x48xbf16> -> vector<10x8x48xbf16>
      %122 = arith.index_cast %87 : i32 to index
      %c0_67 = arith.constant 0 : index
      %c0_68 = arith.constant 0 : index
      %c0_69 = arith.constant 0 : index
      %123 = vector.load %arg10[%122, %c0_67, %c0_68, %c0_69] : memref<4x10x8x48xbf16, #tpu.memory_space<vmem>>, vector<1x10x8x48xbf16>
      %124 = vector.shape_cast %123 : vector<1x10x8x48xbf16> to vector<10x8x48xbf16>
      %125 = vector.shape_cast %121 : vector<10x8x48xbf16> to vector<1x10x8x48xbf16>
      tpu.vector_store %arg10[%122, %c0_67, %c0_68, %c0_69], %125 {strides = array<i32>} : memref<4x10x8x48xbf16, #tpu.memory_space<vmem>>, vector<1x10x8x48xbf16>,
      %c0_i32_70 = arith.constant 0 : i32
      %126 = arith.addi %85, %c0_i32_70 : i32
      %c3_i32_71 = arith.constant 3 : i32
      %127 = arith.andi %126, %c3_i32_71 : i32
      %128 = arith.index_cast %127 : i32 to index
      %c0_72 = arith.constant 0 : index
      %c0_73 = arith.constant 0 : index
      %c0_74 = arith.constant 0 : index
      %129 = vector.load %arg10[%128, %c0_72, %c0_73, %c0_74] : memref<4x10x8x48xbf16, #tpu.memory_space<vmem>>, vector<1x8x8x48xbf16>
      %130 = vector.shape_cast %129 : vector<1x8x8x48xbf16> to vector<8x8x48xbf16>
      %131 = vector.shape_cast %130 : vector<8x8x48xbf16> to vector<64x48xbf16>
      %c0_75 = arith.constant 0 : index
      %c0_76 = arith.constant 0 : index
      %c0_77 = arith.constant 0 : index
      %132 = vector.load %arg5[%c0_75, %c0_76, %c0_77] : memref<9x48x16xbf16, #tpu.memory_space<vmem>>, vector<1x48x16xbf16>
      %133 = vector.shape_cast %132 : vector<1x48x16xbf16> to vector<48x16xbf16>
      %cst_78 = arith.constant dense<0.000000e+00> : vector<64x16xf32>
      %134 = tpu.matmul %131, %133, %cst_78 {dimension_numbers = #tpu.dot_dimension_numbers<[1], [0], [0], [1], [0, 0, 1, 1], [], []>} : vector<64x48xbf16>, vector<48x16xbf16>, vector<64x16xf32> -> vector<64x16xf32>
      %135 = arith.index_cast %127 : i32 to index
      %c1_79 = arith.constant 1 : index
      %c0_80 = arith.constant 0 : index
      %c0_81 = arith.constant 0 : index
      %136 = vector.load %arg10[%135, %c1_79, %c0_80, %c0_81] : memref<4x10x8x48xbf16, #tpu.memory_space<vmem>>, vector<1x8x8x48xbf16>
      %137 = vector.shape_cast %136 : vector<1x8x8x48xbf16> to vector<8x8x48xbf16>
      %138 = vector.shape_cast %137 : vector<8x8x48xbf16> to vector<64x48xbf16>
      %c1_82 = arith.constant 1 : index
      %c0_83 = arith.constant 0 : index
      %c0_84 = arith.constant 0 : index
      %139 = vector.load %arg5[%c1_82, %c0_83, %c0_84] : memref<9x48x16xbf16, #tpu.memory_space<vmem>>, vector<1x48x16xbf16>
      %140 = vector.shape_cast %139 : vector<1x48x16xbf16> to vector<48x16xbf16>
      %cst_85 = arith.constant dense<0.000000e+00> : vector<64x16xf32>
      %141 = tpu.matmul %138, %140, %cst_85 {dimension_numbers = #tpu.dot_dimension_numbers<[1], [0], [0], [1], [0, 0, 1, 1], [], []>} : vector<64x48xbf16>, vector<48x16xbf16>, vector<64x16xf32> -> vector<64x16xf32>
      %142 = arith.addf %134, %141 : vector<64x16xf32>
      %143 = arith.index_cast %127 : i32 to index
      %c2 = arith.constant 2 : index
      %c0_86 = arith.constant 0 : index
      %c0_87 = arith.constant 0 : index
      %144 = vector.load %arg10[%143, %c2, %c0_86, %c0_87] : memref<4x10x8x48xbf16, #tpu.memory_space<vmem>>, vector<1x8x8x48xbf16>
      %145 = vector.shape_cast %144 : vector<1x8x8x48xbf16> to vector<8x8x48xbf16>
      %146 = vector.shape_cast %145 : vector<8x8x48xbf16> to vector<64x48xbf16>
      %c2_88 = arith.constant 2 : index
      %c0_89 = arith.constant 0 : index
      %c0_90 = arith.constant 0 : index
      %147 = vector.load %arg5[%c2_88, %c0_89, %c0_90] : memref<9x48x16xbf16, #tpu.memory_space<vmem>>, vector<1x48x16xbf16>
      %148 = vector.shape_cast %147 : vector<1x48x16xbf16> to vector<48x16xbf16>
      %cst_91 = arith.constant dense<0.000000e+00> : vector<64x16xf32>
      %149 = tpu.matmul %146, %148, %cst_91 {dimension_numbers = #tpu.dot_dimension_numbers<[1], [0], [0], [1], [0, 0, 1, 1], [], []>} : vector<64x48xbf16>, vector<48x16xbf16>, vector<64x16xf32> -> vector<64x16xf32>
      %150 = arith.addf %142, %149 : vector<64x16xf32>
      %c1_i32_92 = arith.constant 1 : i32
      %151 = arith.addi %85, %c1_i32_92 : i32
      %c3_i32_93 = arith.constant 3 : i32
      %152 = arith.andi %151, %c3_i32_93 : i32
      %153 = arith.index_cast %152 : i32 to index
      %c0_94 = arith.constant 0 : index
      %c0_95 = arith.constant 0 : index
      %c0_96 = arith.constant 0 : index
      %154 = vector.load %arg10[%153, %c0_94, %c0_95, %c0_96] : memref<4x10x8x48xbf16, #tpu.memory_space<vmem>>, vector<1x8x8x48xbf16>
      %155 = vector.shape_cast %154 : vector<1x8x8x48xbf16> to vector<8x8x48xbf16>
      %156 = vector.shape_cast %155 : vector<8x8x48xbf16> to vector<64x48xbf16>
      %c3 = arith.constant 3 : index
      %c0_97 = arith.constant 0 : index
      %c0_98 = arith.constant 0 : index
      %157 = vector.load %arg5[%c3, %c0_97, %c0_98] : memref<9x48x16xbf16, #tpu.memory_space<vmem>>, vector<1x48x16xbf16>
      %158 = vector.shape_cast %157 : vector<1x48x16xbf16> to vector<48x16xbf16>
      %cst_99 = arith.constant dense<0.000000e+00> : vector<64x16xf32>
      %159 = tpu.matmul %156, %158, %cst_99 {dimension_numbers = #tpu.dot_dimension_numbers<[1], [0], [0], [1], [0, 0, 1, 1], [], []>} : vector<64x48xbf16>, vector<48x16xbf16>, vector<64x16xf32> -> vector<64x16xf32>
      %160 = arith.addf %150, %159 : vector<64x16xf32>
      %161 = arith.index_cast %152 : i32 to index
      %c1_100 = arith.constant 1 : index
      %c0_101 = arith.constant 0 : index
      %c0_102 = arith.constant 0 : index
      %162 = vector.load %arg10[%161, %c1_100, %c0_101, %c0_102] : memref<4x10x8x48xbf16, #tpu.memory_space<vmem>>, vector<1x8x8x48xbf16>
      %163 = vector.shape_cast %162 : vector<1x8x8x48xbf16> to vector<8x8x48xbf16>
      %164 = vector.shape_cast %163 : vector<8x8x48xbf16> to vector<64x48xbf16>
      %c4 = arith.constant 4 : index
      %c0_103 = arith.constant 0 : index
      %c0_104 = arith.constant 0 : index
      %165 = vector.load %arg5[%c4, %c0_103, %c0_104] : memref<9x48x16xbf16, #tpu.memory_space<vmem>>, vector<1x48x16xbf16>
      %166 = vector.shape_cast %165 : vector<1x48x16xbf16> to vector<48x16xbf16>
      %cst_105 = arith.constant dense<0.000000e+00> : vector<64x16xf32>
      %167 = tpu.matmul %164, %166, %cst_105 {dimension_numbers = #tpu.dot_dimension_numbers<[1], [0], [0], [1], [0, 0, 1, 1], [], []>} : vector<64x48xbf16>, vector<48x16xbf16>, vector<64x16xf32> -> vector<64x16xf32>
      %168 = arith.addf %160, %167 : vector<64x16xf32>
      %169 = arith.index_cast %152 : i32 to index
      %c2_106 = arith.constant 2 : index
      %c0_107 = arith.constant 0 : index
      %c0_108 = arith.constant 0 : index
      %170 = vector.load %arg10[%169, %c2_106, %c0_107, %c0_108] : memref<4x10x8x48xbf16, #tpu.memory_space<vmem>>, vector<1x8x8x48xbf16>
      %171 = vector.shape_cast %170 : vector<1x8x8x48xbf16> to vector<8x8x48xbf16>
      %172 = vector.shape_cast %171 : vector<8x8x48xbf16> to vector<64x48xbf16>
      %c5 = arith.constant 5 : index
      %c0_109 = arith.constant 0 : index
      %c0_110 = arith.constant 0 : index
      %173 = vector.load %arg5[%c5, %c0_109, %c0_110] : memref<9x48x16xbf16, #tpu.memory_space<vmem>>, vector<1x48x16xbf16>
      %174 = vector.shape_cast %173 : vector<1x48x16xbf16> to vector<48x16xbf16>
      %cst_111 = arith.constant dense<0.000000e+00> : vector<64x16xf32>
      %175 = tpu.matmul %172, %174, %cst_111 {dimension_numbers = #tpu.dot_dimension_numbers<[1], [0], [0], [1], [0, 0, 1, 1], [], []>} : vector<64x48xbf16>, vector<48x16xbf16>, vector<64x16xf32> -> vector<64x16xf32>
      %176 = arith.addf %168, %175 : vector<64x16xf32>
      %c2_i32_112 = arith.constant 2 : i32
      %177 = arith.addi %85, %c2_i32_112 : i32
      %c3_i32_113 = arith.constant 3 : i32
      %178 = arith.andi %177, %c3_i32_113 : i32
      %179 = arith.index_cast %178 : i32 to index
      %c0_114 = arith.constant 0 : index
      %c0_115 = arith.constant 0 : index
      %c0_116 = arith.constant 0 : index
      %180 = vector.load %arg10[%179, %c0_114, %c0_115, %c0_116] : memref<4x10x8x48xbf16, #tpu.memory_space<vmem>>, vector<1x8x8x48xbf16>
      %181 = vector.shape_cast %180 : vector<1x8x8x48xbf16> to vector<8x8x48xbf16>
      %182 = vector.shape_cast %181 : vector<8x8x48xbf16> to vector<64x48xbf16>
      %c6 = arith.constant 6 : index
      %c0_117 = arith.constant 0 : index
      %c0_118 = arith.constant 0 : index
      %183 = vector.load %arg5[%c6, %c0_117, %c0_118] : memref<9x48x16xbf16, #tpu.memory_space<vmem>>, vector<1x48x16xbf16>
      %184 = vector.shape_cast %183 : vector<1x48x16xbf16> to vector<48x16xbf16>
      %cst_119 = arith.constant dense<0.000000e+00> : vector<64x16xf32>
      %185 = tpu.matmul %182, %184, %cst_119 {dimension_numbers = #tpu.dot_dimension_numbers<[1], [0], [0], [1], [0, 0, 1, 1], [], []>} : vector<64x48xbf16>, vector<48x16xbf16>, vector<64x16xf32> -> vector<64x16xf32>
      %186 = arith.addf %176, %185 : vector<64x16xf32>
      %187 = arith.index_cast %178 : i32 to index
      %c1_120 = arith.constant 1 : index
      %c0_121 = arith.constant 0 : index
      %c0_122 = arith.constant 0 : index
      %188 = vector.load %arg10[%187, %c1_120, %c0_121, %c0_122] : memref<4x10x8x48xbf16, #tpu.memory_space<vmem>>, vector<1x8x8x48xbf16>
      %189 = vector.shape_cast %188 : vector<1x8x8x48xbf16> to vector<8x8x48xbf16>
      %190 = vector.shape_cast %189 : vector<8x8x48xbf16> to vector<64x48xbf16>
      %c7 = arith.constant 7 : index
      %c0_123 = arith.constant 0 : index
      %c0_124 = arith.constant 0 : index
      %191 = vector.load %arg5[%c7, %c0_123, %c0_124] : memref<9x48x16xbf16, #tpu.memory_space<vmem>>, vector<1x48x16xbf16>
      %192 = vector.shape_cast %191 : vector<1x48x16xbf16> to vector<48x16xbf16>
      %cst_125 = arith.constant dense<0.000000e+00> : vector<64x16xf32>
      %193 = tpu.matmul %190, %192, %cst_125 {dimension_numbers = #tpu.dot_dimension_numbers<[1], [0], [0], [1], [0, 0, 1, 1], [], []>} : vector<64x48xbf16>, vector<48x16xbf16>, vector<64x16xf32> -> vector<64x16xf32>
      %194 = arith.addf %186, %193 : vector<64x16xf32>
      %195 = arith.index_cast %178 : i32 to index
      %c2_126 = arith.constant 2 : index
      %c0_127 = arith.constant 0 : index
      %c0_128 = arith.constant 0 : index
      %196 = vector.load %arg10[%195, %c2_126, %c0_127, %c0_128] : memref<4x10x8x48xbf16, #tpu.memory_space<vmem>>, vector<1x8x8x48xbf16>
      %197 = vector.shape_cast %196 : vector<1x8x8x48xbf16> to vector<8x8x48xbf16>
      %198 = vector.shape_cast %197 : vector<8x8x48xbf16> to vector<64x48xbf16>
      %c8 = arith.constant 8 : index
      %c0_129 = arith.constant 0 : index
      %c0_130 = arith.constant 0 : index
      %199 = vector.load %arg5[%c8, %c0_129, %c0_130] : memref<9x48x16xbf16, #tpu.memory_space<vmem>>, vector<1x48x16xbf16>
      %200 = vector.shape_cast %199 : vector<1x48x16xbf16> to vector<48x16xbf16>
      %cst_131 = arith.constant dense<0.000000e+00> : vector<64x16xf32>
      %201 = tpu.matmul %198, %200, %cst_131 {dimension_numbers = #tpu.dot_dimension_numbers<[1], [0], [0], [1], [0, 0, 1, 1], [], []>} : vector<64x48xbf16>, vector<48x16xbf16>, vector<64x16xf32> -> vector<64x16xf32>
      %202 = arith.addf %194, %201 : vector<64x16xf32>
      %203 = vector.broadcast %3 : vector<1x16xf32> to vector<64x16xf32>
      %204 = arith.addf %202, %203 : vector<64x16xf32>
      %205 = vector.shape_cast %204 : vector<64x16xf32> to vector<8x8x16xf32>
      %c0_132 = arith.constant 0 : index
      %c0_133 = arith.constant 0 : index
      %c0_134 = arith.constant 0 : index
      %c0_135 = arith.constant 0 : index
      %206 = vector.load %arg8[%c0_132, %c0_133, %c0_134, %c0_135] : memref<1x1x1x16xf32, #tpu.memory_space<vmem>>, vector<1x1x1x16xf32>
      %207 = vector.shape_cast %206 : vector<1x1x1x16xf32> to vector<1x16xf32>
      %cst_136 = arith.constant dense<0.000000e+00> : vector<16xf32>
      %208 = vector.multi_reduction <add>, %205, %cst_136 [0, 1] : vector<8x8x16xf32> to vector<16xf32>
      %209 = vector.shape_cast %208 : vector<16xf32> to vector<1x16xf32>
      %210 = arith.addf %207, %209 : vector<1x16xf32>
      %c0_137 = arith.constant 0 : index
      %c0_138 = arith.constant 0 : index
      %c0_139 = arith.constant 0 : index
      %c0_140 = arith.constant 0 : index
      %211 = vector.load %arg8[%c0_137, %c0_138, %c0_139, %c0_140] : memref<1x1x1x16xf32, #tpu.memory_space<vmem>>, vector<1x1x1x16xf32>
      %212 = vector.shape_cast %211 : vector<1x1x1x16xf32> to vector<1x16xf32>
      %213 = vector.shape_cast %210 : vector<1x16xf32> to vector<1x1x1x16xf32>
      tpu.vector_store %arg8[%c0_137, %c0_138, %c0_139, %c0_140], %213 {strides = array<i32>} : memref<1x1x1x16xf32, #tpu.memory_space<vmem>>, vector<1x1x1x16xf32>,
      %c0_141 = arith.constant 0 : index
      %c0_142 = arith.constant 0 : index
      %c0_143 = arith.constant 0 : index
      %c0_144 = arith.constant 0 : index
      %214 = vector.load %arg9[%c0_141, %c0_142, %c0_143, %c0_144] : memref<1x1x1x16xf32, #tpu.memory_space<vmem>>, vector<1x1x1x16xf32>
      %215 = vector.shape_cast %214 : vector<1x1x1x16xf32> to vector<1x16xf32>
      %216 = arith.mulf %205, %205 : vector<8x8x16xf32>
      %cst_145 = arith.constant dense<0.000000e+00> : vector<16xf32>
      %217 = vector.multi_reduction <add>, %216, %cst_145 [0, 1] : vector<8x8x16xf32> to vector<16xf32>
      %218 = vector.shape_cast %217 : vector<16xf32> to vector<1x16xf32>
      %219 = arith.addf %215, %218 : vector<1x16xf32>
      %c0_146 = arith.constant 0 : index
      %c0_147 = arith.constant 0 : index
      %c0_148 = arith.constant 0 : index
      %c0_149 = arith.constant 0 : index
      %220 = vector.load %arg9[%c0_146, %c0_147, %c0_148, %c0_149] : memref<1x1x1x16xf32, #tpu.memory_space<vmem>>, vector<1x1x1x16xf32>
      %221 = vector.shape_cast %220 : vector<1x1x1x16xf32> to vector<1x16xf32>
      %222 = vector.shape_cast %219 : vector<1x16xf32> to vector<1x1x1x16xf32>
      tpu.vector_store %arg9[%c0_146, %c0_147, %c0_148, %c0_149], %222 {strides = array<i32>} : memref<1x1x1x16xf32, #tpu.memory_space<vmem>>, vector<1x1x1x16xf32>,
      %c0_150 = arith.constant 0 : index
      %223 = arith.index_cast %85 : i32 to index
      %c0_151 = arith.constant 0 : index
      %c0_152 = arith.constant 0 : index
      %c0_153 = arith.constant 0 : index
      %224 = vector.load %arg7[%c0_150, %223, %c0_151, %c0_152, %c0_153] : memref<1x4x8x8x16xf32, #tpu.memory_space<vmem>>, vector<1x1x8x8x16xf32>
      %225 = vector.shape_cast %224 : vector<1x1x8x8x16xf32> to vector<8x8x16xf32>
      %226 = vector.shape_cast %205 : vector<8x8x16xf32> to vector<1x1x8x8x16xf32>
      tpu.vector_store %arg7[%c0_150, %223, %c0_151, %c0_152, %c0_153], %226 {strides = array<i32>} : memref<1x4x8x8x16xf32, #tpu.memory_space<vmem>>, vector<1x1x8x8x16xf32>,
    }
    %c4_i32_49 = arith.constant 4 : i32
    return
  }
  func.func @transform_0(%arg0: i32, %arg1: i32) -> (i32, i32, i32, i32, i32) {
    %c0_i32 = arith.constant 0 : i32
    %c0_i32_0 = arith.constant 0 : i32
    %c0_i32_1 = arith.constant 0 : i32
    %c0_i32_2 = arith.constant 0 : i32
    %c0_i32_3 = arith.constant 0 : i32
    return %arg0, %c0_i32, %c0_i32_0, %c0_i32_1, %c0_i32_2 : i32, i32, i32, i32, i32
  }
  func.func @transform_1(%arg0: i32, %arg1: i32) -> (i32, i32) {
    %c0_i32 = arith.constant 0 : i32
    %c0_i32_0 = arith.constant 0 : i32
    %c0_i32_1 = arith.constant 0 : i32
    return %c0_i32, %c0_i32_0 : i32, i32
  }
  func.func @transform_2(%arg0: i32, %arg1: i32) -> (i32, i32) {
    %c0_i32 = arith.constant 0 : i32
    %c0_i32_0 = arith.constant 0 : i32
    %c0_i32_1 = arith.constant 0 : i32
    return %c0_i32, %c0_i32_0 : i32, i32
  }
  func.func @transform_3(%arg0: i32, %arg1: i32) -> (i32, i32, i32) {
    %c0_i32 = arith.constant 0 : i32
    %c0_i32_0 = arith.constant 0 : i32
    %c0_i32_1 = arith.constant 0 : i32
    %c0_i32_2 = arith.constant 0 : i32
    return %c0_i32, %c0_i32_0, %c0_i32_1 : i32, i32, i32
  }
  func.func @transform_4(%arg0: i32, %arg1: i32) -> (i32, i32) {
    %c0_i32 = arith.constant 0 : i32
    %c0_i32_0 = arith.constant 0 : i32
    %c0_i32_1 = arith.constant 0 : i32
    return %c0_i32, %c0_i32_0 : i32, i32
  }
  func.func @transform_5(%arg0: i32, %arg1: i32) -> (i32, i32, i32, i32, i32) {
    %c0_i32 = arith.constant 0 : i32
    %c0_i32_0 = arith.constant 0 : i32
    %c0_i32_1 = arith.constant 0 : i32
    %c0_i32_2 = arith.constant 0 : i32
    return %arg0, %arg1, %c0_i32, %c0_i32_0, %c0_i32_1 : i32, i32, i32, i32, i32
  }
  func.func @transform_6(%arg0: i32, %arg1: i32) -> (i32, i32, i32, i32) {
    %c0_i32 = arith.constant 0 : i32
    %c0_i32_0 = arith.constant 0 : i32
    %c0_i32_1 = arith.constant 0 : i32
    return %arg0, %arg1, %c0_i32, %c0_i32_0 : i32, i32, i32, i32
  }
  func.func @transform_7(%arg0: i32, %arg1: i32) -> (i32, i32, i32, i32) {
    %c0_i32 = arith.constant 0 : i32
    %c0_i32_0 = arith.constant 0 : i32
    %c0_i32_1 = arith.constant 0 : i32
    return %arg0, %arg1, %c0_i32, %c0_i32_0 : i32, i32, i32, i32
  }
}

module attributes {stable_mosaic.version = 11 : i64} {
  func.func @_fused_bn_relu_conv_kernel(%arg0: i32, %arg1: i32, %arg2: memref<1x8x8x8x16xf32, #tpu.memory_space<vmem>>, %arg3: memref<1x16xf32, #tpu.memory_space<vmem>>, %arg4: memref<1x16xf32, #tpu.memory_space<vmem>>, %arg5: memref<9x48x16xbf16, #tpu.memory_space<vmem>>, %arg6: memref<1x16xf32, #tpu.memory_space<vmem>>, %arg7: memref<1x4x8x8x16xf32, #tpu.memory_space<vmem>>, %arg8: memref<1x4x8x8x16xf32, #tpu.memory_space<vmem>>, %arg9: memref<4x10x8x48xbf16, #tpu.memory_space<vmem>>) attributes {dimension_semantics = [#tpu.dimension_semantics<parallel>, #tpu.dimension_semantics<parallel>], iteration_bounds = array<i64: 2, 2>, scalar_prefetch = 0 : i64, scratch_operands = 1 : i64, tpu.core_type = #tpu.core_type<tc>, window_params = [{transform_indices = @transform_0, window_bounds = array<i64: 1, 8, 8, 8, 16>}, {pipeline_mode = #tpu.pipeline_mode<synchronous>, transform_indices = @transform_1, window_bounds = array<i64: 1, 16>}, {pipeline_mode = #tpu.pipeline_mode<synchronous>, transform_indices = @transform_2, window_bounds = array<i64: 1, 16>}, {pipeline_mode = #tpu.pipeline_mode<synchronous>, transform_indices = @transform_3, window_bounds = array<i64: 9, 48, 16>}, {pipeline_mode = #tpu.pipeline_mode<synchronous>, transform_indices = @transform_4, window_bounds = array<i64: 1, 16>}, {transform_indices = @transform_5, window_bounds = array<i64: 1, 4, 8, 8, 16>}, {transform_indices = @transform_6, window_bounds = array<i64: 1, 4, 8, 8, 16>}]} {
    %c4_i32 = arith.constant 4 : i32
    %0 = arith.muli %arg1, %c4_i32 : i32
    %c0 = arith.constant 0 : index
    %c0_0 = arith.constant 0 : index
    %1 = vector.load %arg3[%c0, %c0_0] : memref<1x16xf32, #tpu.memory_space<vmem>>, vector<1x16xf32>
    %c0_1 = arith.constant 0 : index
    %c0_2 = arith.constant 0 : index
    %2 = vector.load %arg4[%c0_1, %c0_2] : memref<1x16xf32, #tpu.memory_space<vmem>>, vector<1x16xf32>
    %c0_3 = arith.constant 0 : index
    %c0_4 = arith.constant 0 : index
    %3 = vector.load %arg6[%c0_3, %c0_4] : memref<1x16xf32, #tpu.memory_space<vmem>>, vector<1x16xf32>
    %c1_i32 = arith.constant 1 : i32
    %4 = arith.subi %0, %c1_i32 : i32
    %c0_i32 = arith.constant 0 : i32
    %5 = arith.cmpi sge, %4, %c0_i32 : i32
    %c8_i32 = arith.constant 8 : i32
    %6 = arith.cmpi slt, %4, %c8_i32 : i32
    %7 = arith.andi %5, %6 : i1
    %c0_i32_5 = arith.constant 0 : i32
    %c7_i32 = arith.constant 7 : i32
    %8 = arith.maxsi %c0_i32_5, %4 : i32
    %9 = arith.minsi %c7_i32, %8 : i32
    %cst = arith.constant 0.000000e+00 : f32
    %10 = vector.broadcast %cst : f32 to vector<1x16xf32>
    %11 = arith.select %7, %1, %10 : vector<1x16xf32>
    %cst_6 = arith.constant 0.000000e+00 : f32
    %12 = vector.broadcast %cst_6 : f32 to vector<1x16xf32>
    %13 = arith.select %7, %2, %12 : vector<1x16xf32>
    %c0_7 = arith.constant 0 : index
    %14 = arith.index_cast %9 : i32 to index
    %c0_8 = arith.constant 0 : index
    %c0_9 = arith.constant 0 : index
    %c0_10 = arith.constant 0 : index
    %15 = vector.load %arg2[%c0_7, %14, %c0_8, %c0_9, %c0_10] : memref<1x8x8x8x16xf32, #tpu.memory_space<vmem>>, vector<1x1x8x8x16xf32>
    %16 = vector.shape_cast %15 : vector<1x1x8x8x16xf32> to vector<8x8x16xf32>
    %17 = vector.shape_cast %11 : vector<1x16xf32> to vector<1x1x16xf32>
    %18 = vector.broadcast %17 : vector<1x1x16xf32> to vector<8x8x16xf32>
    %19 = arith.mulf %16, %18 : vector<8x8x16xf32>
    %20 = vector.shape_cast %13 : vector<1x16xf32> to vector<1x1x16xf32>
    %21 = vector.broadcast %20 : vector<1x1x16xf32> to vector<8x8x16xf32>
    %22 = arith.addf %19, %21 : vector<8x8x16xf32>
    %cst_11 = arith.constant 0.000000e+00 : f32
    %23 = vector.broadcast %cst_11 : f32 to vector<8x8x16xf32>
    %24 = arith.cmpf ogt, %22, %23 : vector<8x8x16xf32>
    %cst_12 = arith.constant 0.00999999977 : f32
    %25 = vector.broadcast %cst_12 : f32 to vector<8x8x16xf32>
    %26 = arith.mulf %25, %22 : vector<8x8x16xf32>
    %27 = arith.select %24, %22, %26 : vector<8x8x16xi1>, vector<8x8x16xf32>
    %cst_13 = arith.constant 0.000000e+00 : f32
    %28 = vector.broadcast %cst_13 : f32 to vector<8x1x16xf32>
    %29 = tpu.concatenate %28, %27, %28 in 1 : vector<8x1x16xf32>, vector<8x8x16xf32>, vector<8x1x16xf32> -> vector<8x10x16xf32>
    %30 = vector.extract_strided_slice %29 {offsets = [0, 0, 0], sizes = [8, 8, 16], strides = [1, 1, 1]} : vector<8x10x16xf32> to vector<8x8x16xf32>
    %31 = vector.extract_strided_slice %29 {offsets = [0, 1, 0], sizes = [8, 8, 16], strides = [1, 1, 1]} : vector<8x10x16xf32> to vector<8x8x16xf32>
    %32 = vector.extract_strided_slice %29 {offsets = [0, 2, 0], sizes = [8, 8, 16], strides = [1, 1, 1]} : vector<8x10x16xf32> to vector<8x8x16xf32>
    %33 = tpu.concatenate %30, %31, %32 in 2 : vector<8x8x16xf32>, vector<8x8x16xf32>, vector<8x8x16xf32> -> vector<8x8x48xf32>
    %34 = arith.truncf %33 : vector<8x8x48xf32> to vector<8x8x48xbf16>
    %cst_14 = arith.constant 0.000000e+00 : bf16
    %35 = vector.broadcast %cst_14 : bf16 to vector<1x8x48xbf16>
    %36 = tpu.concatenate %35, %34, %35 in 0 : vector<1x8x48xbf16>, vector<8x8x48xbf16>, vector<1x8x48xbf16> -> vector<10x8x48xbf16>
    %c0_15 = arith.constant 0 : index
    %c0_16 = arith.constant 0 : index
    %c0_17 = arith.constant 0 : index
    %c0_18 = arith.constant 0 : index
    %37 = vector.load %arg9[%c0_15, %c0_16, %c0_17, %c0_18] : memref<4x10x8x48xbf16, #tpu.memory_space<vmem>>, vector<1x10x8x48xbf16>
    %38 = vector.shape_cast %37 : vector<1x10x8x48xbf16> to vector<10x8x48xbf16>
    %39 = vector.shape_cast %36 : vector<10x8x48xbf16> to vector<1x10x8x48xbf16>
    tpu.vector_store %arg9[%c0_15, %c0_16, %c0_17, %c0_18], %39 {strides = array<i32>} : memref<4x10x8x48xbf16, #tpu.memory_space<vmem>>, vector<1x10x8x48xbf16>,
    %c0_i32_19 = arith.constant 0 : i32
    %40 = arith.cmpi sge, %0, %c0_i32_19 : i32
    %c8_i32_20 = arith.constant 8 : i32
    %41 = arith.cmpi slt, %0, %c8_i32_20 : i32
    %42 = arith.andi %40, %41 : i1
    %c0_i32_21 = arith.constant 0 : i32
    %c7_i32_22 = arith.constant 7 : i32
    %43 = arith.maxsi %c0_i32_21, %0 : i32
    %44 = arith.minsi %c7_i32_22, %43 : i32
    %cst_23 = arith.constant 0.000000e+00 : f32
    %45 = vector.broadcast %cst_23 : f32 to vector<1x16xf32>
    %46 = arith.select %42, %1, %45 : vector<1x16xf32>
    %cst_24 = arith.constant 0.000000e+00 : f32
    %47 = vector.broadcast %cst_24 : f32 to vector<1x16xf32>
    %48 = arith.select %42, %2, %47 : vector<1x16xf32>
    %c0_25 = arith.constant 0 : index
    %49 = arith.index_cast %44 : i32 to index
    %c0_26 = arith.constant 0 : index
    %c0_27 = arith.constant 0 : index
    %c0_28 = arith.constant 0 : index
    %50 = vector.load %arg2[%c0_25, %49, %c0_26, %c0_27, %c0_28] : memref<1x8x8x8x16xf32, #tpu.memory_space<vmem>>, vector<1x1x8x8x16xf32>
    %51 = vector.shape_cast %50 : vector<1x1x8x8x16xf32> to vector<8x8x16xf32>
    %52 = vector.shape_cast %46 : vector<1x16xf32> to vector<1x1x16xf32>
    %53 = vector.broadcast %52 : vector<1x1x16xf32> to vector<8x8x16xf32>
    %54 = arith.mulf %51, %53 : vector<8x8x16xf32>
    %55 = vector.shape_cast %48 : vector<1x16xf32> to vector<1x1x16xf32>
    %56 = vector.broadcast %55 : vector<1x1x16xf32> to vector<8x8x16xf32>
    %57 = arith.addf %54, %56 : vector<8x8x16xf32>
    %cst_29 = arith.constant 0.000000e+00 : f32
    %58 = vector.broadcast %cst_29 : f32 to vector<8x8x16xf32>
    %59 = arith.cmpf ogt, %57, %58 : vector<8x8x16xf32>
    %cst_30 = arith.constant 0.00999999977 : f32
    %60 = vector.broadcast %cst_30 : f32 to vector<8x8x16xf32>
    %61 = arith.mulf %60, %57 : vector<8x8x16xf32>
    %62 = arith.select %59, %57, %61 : vector<8x8x16xi1>, vector<8x8x16xf32>
    %cst_31 = arith.constant 0.000000e+00 : f32
    %63 = vector.broadcast %cst_31 : f32 to vector<8x1x16xf32>
    %64 = tpu.concatenate %63, %62, %63 in 1 : vector<8x1x16xf32>, vector<8x8x16xf32>, vector<8x1x16xf32> -> vector<8x10x16xf32>
    %65 = vector.extract_strided_slice %64 {offsets = [0, 0, 0], sizes = [8, 8, 16], strides = [1, 1, 1]} : vector<8x10x16xf32> to vector<8x8x16xf32>
    %66 = vector.extract_strided_slice %64 {offsets = [0, 1, 0], sizes = [8, 8, 16], strides = [1, 1, 1]} : vector<8x10x16xf32> to vector<8x8x16xf32>
    %67 = vector.extract_strided_slice %64 {offsets = [0, 2, 0], sizes = [8, 8, 16], strides = [1, 1, 1]} : vector<8x10x16xf32> to vector<8x8x16xf32>
    %68 = tpu.concatenate %65, %66, %67 in 2 : vector<8x8x16xf32>, vector<8x8x16xf32>, vector<8x8x16xf32> -> vector<8x8x48xf32>
    %69 = arith.truncf %68 : vector<8x8x48xf32> to vector<8x8x48xbf16>
    %cst_32 = arith.constant 0.000000e+00 : bf16
    %70 = vector.broadcast %cst_32 : bf16 to vector<1x8x48xbf16>
    %71 = tpu.concatenate %70, %69, %70 in 0 : vector<1x8x48xbf16>, vector<8x8x48xbf16>, vector<1x8x48xbf16> -> vector<10x8x48xbf16>
    %c1 = arith.constant 1 : index
    %c0_33 = arith.constant 0 : index
    %c0_34 = arith.constant 0 : index
    %c0_35 = arith.constant 0 : index
    %72 = vector.load %arg9[%c1, %c0_33, %c0_34, %c0_35] : memref<4x10x8x48xbf16, #tpu.memory_space<vmem>>, vector<1x10x8x48xbf16>
    %73 = vector.shape_cast %72 : vector<1x10x8x48xbf16> to vector<10x8x48xbf16>
    %74 = vector.shape_cast %71 : vector<10x8x48xbf16> to vector<1x10x8x48xbf16>
    tpu.vector_store %arg9[%c1, %c0_33, %c0_34, %c0_35], %74 {strides = array<i32>} : memref<4x10x8x48xbf16, #tpu.memory_space<vmem>>, vector<1x10x8x48xbf16>,
    %c0_i32_36 = arith.constant 0 : i32
    %c4_i32_37 = arith.constant 4 : i32
    %75 = arith.addi %c0_i32_36, %c4_i32_37 : i32
    %c1_i32_38 = arith.constant 1 : i32
    scf.for %arg10 = %c0_i32_36 to %75 step %c1_i32_38  : i32 {
      %c1_i32_40 = arith.constant 1 : i32
      %76 = arith.muli %arg10, %c1_i32_40 : i32
      %c0_i32_41 = arith.constant 0 : i32
      %77 = arith.addi %c0_i32_41, %76 : i32
      %c2_i32 = arith.constant 2 : i32
      %78 = arith.addi %77, %c2_i32 : i32
      %c3_i32 = arith.constant 3 : i32
      %79 = arith.andi %78, %c3_i32 : i32
      %80 = arith.addi %0, %77 : i32
      %c1_i32_42 = arith.constant 1 : i32
      %81 = arith.addi %80, %c1_i32_42 : i32
      %c0_i32_43 = arith.constant 0 : i32
      %82 = arith.cmpi sge, %81, %c0_i32_43 : i32
      %c8_i32_44 = arith.constant 8 : i32
      %83 = arith.cmpi slt, %81, %c8_i32_44 : i32
      %84 = arith.andi %82, %83 : i1
      %c0_i32_45 = arith.constant 0 : i32
      %c7_i32_46 = arith.constant 7 : i32
      %85 = arith.maxsi %c0_i32_45, %81 : i32
      %86 = arith.minsi %c7_i32_46, %85 : i32
      %cst_47 = arith.constant 0.000000e+00 : f32
      %87 = vector.broadcast %cst_47 : f32 to vector<1x16xf32>
      %88 = arith.select %84, %1, %87 : vector<1x16xf32>
      %cst_48 = arith.constant 0.000000e+00 : f32
      %89 = vector.broadcast %cst_48 : f32 to vector<1x16xf32>
      %90 = arith.select %84, %2, %89 : vector<1x16xf32>
      %c0_49 = arith.constant 0 : index
      %91 = arith.index_cast %86 : i32 to index
      %c0_50 = arith.constant 0 : index
      %c0_51 = arith.constant 0 : index
      %c0_52 = arith.constant 0 : index
      %92 = vector.load %arg2[%c0_49, %91, %c0_50, %c0_51, %c0_52] : memref<1x8x8x8x16xf32, #tpu.memory_space<vmem>>, vector<1x1x8x8x16xf32>
      %93 = vector.shape_cast %92 : vector<1x1x8x8x16xf32> to vector<8x8x16xf32>
      %94 = vector.shape_cast %88 : vector<1x16xf32> to vector<1x1x16xf32>
      %95 = vector.broadcast %94 : vector<1x1x16xf32> to vector<8x8x16xf32>
      %96 = arith.mulf %93, %95 : vector<8x8x16xf32>
      %97 = vector.shape_cast %90 : vector<1x16xf32> to vector<1x1x16xf32>
      %98 = vector.broadcast %97 : vector<1x1x16xf32> to vector<8x8x16xf32>
      %99 = arith.addf %96, %98 : vector<8x8x16xf32>
      %cst_53 = arith.constant 0.000000e+00 : f32
      %100 = vector.broadcast %cst_53 : f32 to vector<8x8x16xf32>
      %101 = arith.cmpf ogt, %99, %100 : vector<8x8x16xf32>
      %cst_54 = arith.constant 0.00999999977 : f32
      %102 = vector.broadcast %cst_54 : f32 to vector<8x8x16xf32>
      %103 = arith.mulf %102, %99 : vector<8x8x16xf32>
      %104 = arith.select %101, %99, %103 : vector<8x8x16xi1>, vector<8x8x16xf32>
      %cst_55 = arith.constant 0.000000e+00 : f32
      %105 = vector.broadcast %cst_55 : f32 to vector<8x1x16xf32>
      %106 = tpu.concatenate %105, %104, %105 in 1 : vector<8x1x16xf32>, vector<8x8x16xf32>, vector<8x1x16xf32> -> vector<8x10x16xf32>
      %107 = vector.extract_strided_slice %106 {offsets = [0, 0, 0], sizes = [8, 8, 16], strides = [1, 1, 1]} : vector<8x10x16xf32> to vector<8x8x16xf32>
      %108 = vector.extract_strided_slice %106 {offsets = [0, 1, 0], sizes = [8, 8, 16], strides = [1, 1, 1]} : vector<8x10x16xf32> to vector<8x8x16xf32>
      %109 = vector.extract_strided_slice %106 {offsets = [0, 2, 0], sizes = [8, 8, 16], strides = [1, 1, 1]} : vector<8x10x16xf32> to vector<8x8x16xf32>
      %110 = tpu.concatenate %107, %108, %109 in 2 : vector<8x8x16xf32>, vector<8x8x16xf32>, vector<8x8x16xf32> -> vector<8x8x48xf32>
      %111 = arith.truncf %110 : vector<8x8x48xf32> to vector<8x8x48xbf16>
      %cst_56 = arith.constant 0.000000e+00 : bf16
      %112 = vector.broadcast %cst_56 : bf16 to vector<1x8x48xbf16>
      %113 = tpu.concatenate %112, %111, %112 in 0 : vector<1x8x48xbf16>, vector<8x8x48xbf16>, vector<1x8x48xbf16> -> vector<10x8x48xbf16>
      %114 = arith.index_cast %79 : i32 to index
      %c0_57 = arith.constant 0 : index
      %c0_58 = arith.constant 0 : index
      %c0_59 = arith.constant 0 : index
      %115 = vector.load %arg9[%114, %c0_57, %c0_58, %c0_59] : memref<4x10x8x48xbf16, #tpu.memory_space<vmem>>, vector<1x10x8x48xbf16>
      %116 = vector.shape_cast %115 : vector<1x10x8x48xbf16> to vector<10x8x48xbf16>
      %117 = vector.shape_cast %113 : vector<10x8x48xbf16> to vector<1x10x8x48xbf16>
      tpu.vector_store %arg9[%114, %c0_57, %c0_58, %c0_59], %117 {strides = array<i32>} : memref<4x10x8x48xbf16, #tpu.memory_space<vmem>>, vector<1x10x8x48xbf16>,
      %c0_i32_60 = arith.constant 0 : i32
      %118 = arith.addi %77, %c0_i32_60 : i32
      %c3_i32_61 = arith.constant 3 : i32
      %119 = arith.andi %118, %c3_i32_61 : i32
      %120 = arith.index_cast %119 : i32 to index
      %c0_62 = arith.constant 0 : index
      %c0_63 = arith.constant 0 : index
      %c0_64 = arith.constant 0 : index
      %121 = vector.load %arg9[%120, %c0_62, %c0_63, %c0_64] : memref<4x10x8x48xbf16, #tpu.memory_space<vmem>>, vector<1x8x8x48xbf16>
      %122 = vector.shape_cast %121 : vector<1x8x8x48xbf16> to vector<8x8x48xbf16>
      %123 = vector.shape_cast %122 : vector<8x8x48xbf16> to vector<64x48xbf16>
      %c0_65 = arith.constant 0 : index
      %c0_66 = arith.constant 0 : index
      %c0_67 = arith.constant 0 : index
      %124 = vector.load %arg5[%c0_65, %c0_66, %c0_67] : memref<9x48x16xbf16, #tpu.memory_space<vmem>>, vector<1x48x16xbf16>
      %125 = vector.shape_cast %124 : vector<1x48x16xbf16> to vector<48x16xbf16>
      %cst_68 = arith.constant dense<0.000000e+00> : vector<64x16xf32>
      %126 = tpu.matmul %123, %125, %cst_68 {dimension_numbers = #tpu.dot_dimension_numbers<[1], [0], [0], [1], [0, 0, 1, 1], [], []>} : vector<64x48xbf16>, vector<48x16xbf16>, vector<64x16xf32> -> vector<64x16xf32>
      %127 = arith.index_cast %119 : i32 to index
      %c1_69 = arith.constant 1 : index
      %c0_70 = arith.constant 0 : index
      %c0_71 = arith.constant 0 : index
      %128 = vector.load %arg9[%127, %c1_69, %c0_70, %c0_71] : memref<4x10x8x48xbf16, #tpu.memory_space<vmem>>, vector<1x8x8x48xbf16>
      %129 = vector.shape_cast %128 : vector<1x8x8x48xbf16> to vector<8x8x48xbf16>
      %130 = vector.shape_cast %129 : vector<8x8x48xbf16> to vector<64x48xbf16>
      %c1_72 = arith.constant 1 : index
      %c0_73 = arith.constant 0 : index
      %c0_74 = arith.constant 0 : index
      %131 = vector.load %arg5[%c1_72, %c0_73, %c0_74] : memref<9x48x16xbf16, #tpu.memory_space<vmem>>, vector<1x48x16xbf16>
      %132 = vector.shape_cast %131 : vector<1x48x16xbf16> to vector<48x16xbf16>
      %cst_75 = arith.constant dense<0.000000e+00> : vector<64x16xf32>
      %133 = tpu.matmul %130, %132, %cst_75 {dimension_numbers = #tpu.dot_dimension_numbers<[1], [0], [0], [1], [0, 0, 1, 1], [], []>} : vector<64x48xbf16>, vector<48x16xbf16>, vector<64x16xf32> -> vector<64x16xf32>
      %134 = arith.addf %126, %133 : vector<64x16xf32>
      %135 = arith.index_cast %119 : i32 to index
      %c2 = arith.constant 2 : index
      %c0_76 = arith.constant 0 : index
      %c0_77 = arith.constant 0 : index
      %136 = vector.load %arg9[%135, %c2, %c0_76, %c0_77] : memref<4x10x8x48xbf16, #tpu.memory_space<vmem>>, vector<1x8x8x48xbf16>
      %137 = vector.shape_cast %136 : vector<1x8x8x48xbf16> to vector<8x8x48xbf16>
      %138 = vector.shape_cast %137 : vector<8x8x48xbf16> to vector<64x48xbf16>
      %c2_78 = arith.constant 2 : index
      %c0_79 = arith.constant 0 : index
      %c0_80 = arith.constant 0 : index
      %139 = vector.load %arg5[%c2_78, %c0_79, %c0_80] : memref<9x48x16xbf16, #tpu.memory_space<vmem>>, vector<1x48x16xbf16>
      %140 = vector.shape_cast %139 : vector<1x48x16xbf16> to vector<48x16xbf16>
      %cst_81 = arith.constant dense<0.000000e+00> : vector<64x16xf32>
      %141 = tpu.matmul %138, %140, %cst_81 {dimension_numbers = #tpu.dot_dimension_numbers<[1], [0], [0], [1], [0, 0, 1, 1], [], []>} : vector<64x48xbf16>, vector<48x16xbf16>, vector<64x16xf32> -> vector<64x16xf32>
      %142 = arith.addf %134, %141 : vector<64x16xf32>
      %c1_i32_82 = arith.constant 1 : i32
      %143 = arith.addi %77, %c1_i32_82 : i32
      %c3_i32_83 = arith.constant 3 : i32
      %144 = arith.andi %143, %c3_i32_83 : i32
      %145 = arith.index_cast %144 : i32 to index
      %c0_84 = arith.constant 0 : index
      %c0_85 = arith.constant 0 : index
      %c0_86 = arith.constant 0 : index
      %146 = vector.load %arg9[%145, %c0_84, %c0_85, %c0_86] : memref<4x10x8x48xbf16, #tpu.memory_space<vmem>>, vector<1x8x8x48xbf16>
      %147 = vector.shape_cast %146 : vector<1x8x8x48xbf16> to vector<8x8x48xbf16>
      %148 = vector.shape_cast %147 : vector<8x8x48xbf16> to vector<64x48xbf16>
      %c3 = arith.constant 3 : index
      %c0_87 = arith.constant 0 : index
      %c0_88 = arith.constant 0 : index
      %149 = vector.load %arg5[%c3, %c0_87, %c0_88] : memref<9x48x16xbf16, #tpu.memory_space<vmem>>, vector<1x48x16xbf16>
      %150 = vector.shape_cast %149 : vector<1x48x16xbf16> to vector<48x16xbf16>
      %cst_89 = arith.constant dense<0.000000e+00> : vector<64x16xf32>
      %151 = tpu.matmul %148, %150, %cst_89 {dimension_numbers = #tpu.dot_dimension_numbers<[1], [0], [0], [1], [0, 0, 1, 1], [], []>} : vector<64x48xbf16>, vector<48x16xbf16>, vector<64x16xf32> -> vector<64x16xf32>
      %152 = arith.addf %142, %151 : vector<64x16xf32>
      %153 = arith.index_cast %144 : i32 to index
      %c1_90 = arith.constant 1 : index
      %c0_91 = arith.constant 0 : index
      %c0_92 = arith.constant 0 : index
      %154 = vector.load %arg9[%153, %c1_90, %c0_91, %c0_92] : memref<4x10x8x48xbf16, #tpu.memory_space<vmem>>, vector<1x8x8x48xbf16>
      %155 = vector.shape_cast %154 : vector<1x8x8x48xbf16> to vector<8x8x48xbf16>
      %156 = vector.shape_cast %155 : vector<8x8x48xbf16> to vector<64x48xbf16>
      %c4 = arith.constant 4 : index
      %c0_93 = arith.constant 0 : index
      %c0_94 = arith.constant 0 : index
      %157 = vector.load %arg5[%c4, %c0_93, %c0_94] : memref<9x48x16xbf16, #tpu.memory_space<vmem>>, vector<1x48x16xbf16>
      %158 = vector.shape_cast %157 : vector<1x48x16xbf16> to vector<48x16xbf16>
      %cst_95 = arith.constant dense<0.000000e+00> : vector<64x16xf32>
      %159 = tpu.matmul %156, %158, %cst_95 {dimension_numbers = #tpu.dot_dimension_numbers<[1], [0], [0], [1], [0, 0, 1, 1], [], []>} : vector<64x48xbf16>, vector<48x16xbf16>, vector<64x16xf32> -> vector<64x16xf32>
      %160 = arith.addf %152, %159 : vector<64x16xf32>
      %161 = arith.index_cast %144 : i32 to index
      %c2_96 = arith.constant 2 : index
      %c0_97 = arith.constant 0 : index
      %c0_98 = arith.constant 0 : index
      %162 = vector.load %arg9[%161, %c2_96, %c0_97, %c0_98] : memref<4x10x8x48xbf16, #tpu.memory_space<vmem>>, vector<1x8x8x48xbf16>
      %163 = vector.shape_cast %162 : vector<1x8x8x48xbf16> to vector<8x8x48xbf16>
      %164 = vector.shape_cast %163 : vector<8x8x48xbf16> to vector<64x48xbf16>
      %c5 = arith.constant 5 : index
      %c0_99 = arith.constant 0 : index
      %c0_100 = arith.constant 0 : index
      %165 = vector.load %arg5[%c5, %c0_99, %c0_100] : memref<9x48x16xbf16, #tpu.memory_space<vmem>>, vector<1x48x16xbf16>
      %166 = vector.shape_cast %165 : vector<1x48x16xbf16> to vector<48x16xbf16>
      %cst_101 = arith.constant dense<0.000000e+00> : vector<64x16xf32>
      %167 = tpu.matmul %164, %166, %cst_101 {dimension_numbers = #tpu.dot_dimension_numbers<[1], [0], [0], [1], [0, 0, 1, 1], [], []>} : vector<64x48xbf16>, vector<48x16xbf16>, vector<64x16xf32> -> vector<64x16xf32>
      %168 = arith.addf %160, %167 : vector<64x16xf32>
      %c2_i32_102 = arith.constant 2 : i32
      %169 = arith.addi %77, %c2_i32_102 : i32
      %c3_i32_103 = arith.constant 3 : i32
      %170 = arith.andi %169, %c3_i32_103 : i32
      %171 = arith.index_cast %170 : i32 to index
      %c0_104 = arith.constant 0 : index
      %c0_105 = arith.constant 0 : index
      %c0_106 = arith.constant 0 : index
      %172 = vector.load %arg9[%171, %c0_104, %c0_105, %c0_106] : memref<4x10x8x48xbf16, #tpu.memory_space<vmem>>, vector<1x8x8x48xbf16>
      %173 = vector.shape_cast %172 : vector<1x8x8x48xbf16> to vector<8x8x48xbf16>
      %174 = vector.shape_cast %173 : vector<8x8x48xbf16> to vector<64x48xbf16>
      %c6 = arith.constant 6 : index
      %c0_107 = arith.constant 0 : index
      %c0_108 = arith.constant 0 : index
      %175 = vector.load %arg5[%c6, %c0_107, %c0_108] : memref<9x48x16xbf16, #tpu.memory_space<vmem>>, vector<1x48x16xbf16>
      %176 = vector.shape_cast %175 : vector<1x48x16xbf16> to vector<48x16xbf16>
      %cst_109 = arith.constant dense<0.000000e+00> : vector<64x16xf32>
      %177 = tpu.matmul %174, %176, %cst_109 {dimension_numbers = #tpu.dot_dimension_numbers<[1], [0], [0], [1], [0, 0, 1, 1], [], []>} : vector<64x48xbf16>, vector<48x16xbf16>, vector<64x16xf32> -> vector<64x16xf32>
      %178 = arith.addf %168, %177 : vector<64x16xf32>
      %179 = arith.index_cast %170 : i32 to index
      %c1_110 = arith.constant 1 : index
      %c0_111 = arith.constant 0 : index
      %c0_112 = arith.constant 0 : index
      %180 = vector.load %arg9[%179, %c1_110, %c0_111, %c0_112] : memref<4x10x8x48xbf16, #tpu.memory_space<vmem>>, vector<1x8x8x48xbf16>
      %181 = vector.shape_cast %180 : vector<1x8x8x48xbf16> to vector<8x8x48xbf16>
      %182 = vector.shape_cast %181 : vector<8x8x48xbf16> to vector<64x48xbf16>
      %c7 = arith.constant 7 : index
      %c0_113 = arith.constant 0 : index
      %c0_114 = arith.constant 0 : index
      %183 = vector.load %arg5[%c7, %c0_113, %c0_114] : memref<9x48x16xbf16, #tpu.memory_space<vmem>>, vector<1x48x16xbf16>
      %184 = vector.shape_cast %183 : vector<1x48x16xbf16> to vector<48x16xbf16>
      %cst_115 = arith.constant dense<0.000000e+00> : vector<64x16xf32>
      %185 = tpu.matmul %182, %184, %cst_115 {dimension_numbers = #tpu.dot_dimension_numbers<[1], [0], [0], [1], [0, 0, 1, 1], [], []>} : vector<64x48xbf16>, vector<48x16xbf16>, vector<64x16xf32> -> vector<64x16xf32>
      %186 = arith.addf %178, %185 : vector<64x16xf32>
      %187 = arith.index_cast %170 : i32 to index
      %c2_116 = arith.constant 2 : index
      %c0_117 = arith.constant 0 : index
      %c0_118 = arith.constant 0 : index
      %188 = vector.load %arg9[%187, %c2_116, %c0_117, %c0_118] : memref<4x10x8x48xbf16, #tpu.memory_space<vmem>>, vector<1x8x8x48xbf16>
      %189 = vector.shape_cast %188 : vector<1x8x8x48xbf16> to vector<8x8x48xbf16>
      %190 = vector.shape_cast %189 : vector<8x8x48xbf16> to vector<64x48xbf16>
      %c8 = arith.constant 8 : index
      %c0_119 = arith.constant 0 : index
      %c0_120 = arith.constant 0 : index
      %191 = vector.load %arg5[%c8, %c0_119, %c0_120] : memref<9x48x16xbf16, #tpu.memory_space<vmem>>, vector<1x48x16xbf16>
      %192 = vector.shape_cast %191 : vector<1x48x16xbf16> to vector<48x16xbf16>
      %cst_121 = arith.constant dense<0.000000e+00> : vector<64x16xf32>
      %193 = tpu.matmul %190, %192, %cst_121 {dimension_numbers = #tpu.dot_dimension_numbers<[1], [0], [0], [1], [0, 0, 1, 1], [], []>} : vector<64x48xbf16>, vector<48x16xbf16>, vector<64x16xf32> -> vector<64x16xf32>
      %194 = arith.addf %186, %193 : vector<64x16xf32>
      %195 = vector.broadcast %3 : vector<1x16xf32> to vector<64x16xf32>
      %196 = arith.addf %194, %195 : vector<64x16xf32>
      %197 = vector.shape_cast %196 : vector<64x16xf32> to vector<8x8x16xf32>
      %c0_122 = arith.constant 0 : index
      %198 = arith.index_cast %77 : i32 to index
      %c0_123 = arith.constant 0 : index
      %c0_124 = arith.constant 0 : index
      %c0_125 = arith.constant 0 : index
      %199 = vector.load %arg7[%c0_122, %198, %c0_123, %c0_124, %c0_125] : memref<1x4x8x8x16xf32, #tpu.memory_space<vmem>>, vector<1x1x8x8x16xf32>
      %200 = vector.shape_cast %199 : vector<1x1x8x8x16xf32> to vector<8x8x16xf32>
      %201 = arith.addf %197, %200 : vector<8x8x16xf32>
      %c0_126 = arith.constant 0 : index
      %202 = arith.index_cast %77 : i32 to index
      %c0_127 = arith.constant 0 : index
      %c0_128 = arith.constant 0 : index
      %c0_129 = arith.constant 0 : index
      %203 = vector.load %arg8[%c0_126, %202, %c0_127, %c0_128, %c0_129] : memref<1x4x8x8x16xf32, #tpu.memory_space<vmem>>, vector<1x1x8x8x16xf32>
      %204 = vector.shape_cast %203 : vector<1x1x8x8x16xf32> to vector<8x8x16xf32>
      %205 = vector.shape_cast %201 : vector<8x8x16xf32> to vector<1x1x8x8x16xf32>
      tpu.vector_store %arg8[%c0_126, %202, %c0_127, %c0_128, %c0_129], %205 {strides = array<i32>} : memref<1x4x8x8x16xf32, #tpu.memory_space<vmem>>, vector<1x1x8x8x16xf32>,
    }
    %c4_i32_39 = arith.constant 4 : i32
    return
  }
  func.func @transform_0(%arg0: i32, %arg1: i32) -> (i32, i32, i32, i32, i32) {
    %c0_i32 = arith.constant 0 : i32
    %c0_i32_0 = arith.constant 0 : i32
    %c0_i32_1 = arith.constant 0 : i32
    %c0_i32_2 = arith.constant 0 : i32
    %c0_i32_3 = arith.constant 0 : i32
    return %arg0, %c0_i32, %c0_i32_0, %c0_i32_1, %c0_i32_2 : i32, i32, i32, i32, i32
  }
  func.func @transform_1(%arg0: i32, %arg1: i32) -> (i32, i32) {
    %c0_i32 = arith.constant 0 : i32
    %c0_i32_0 = arith.constant 0 : i32
    %c0_i32_1 = arith.constant 0 : i32
    return %c0_i32, %c0_i32_0 : i32, i32
  }
  func.func @transform_2(%arg0: i32, %arg1: i32) -> (i32, i32) {
    %c0_i32 = arith.constant 0 : i32
    %c0_i32_0 = arith.constant 0 : i32
    %c0_i32_1 = arith.constant 0 : i32
    return %c0_i32, %c0_i32_0 : i32, i32
  }
  func.func @transform_3(%arg0: i32, %arg1: i32) -> (i32, i32, i32) {
    %c0_i32 = arith.constant 0 : i32
    %c0_i32_0 = arith.constant 0 : i32
    %c0_i32_1 = arith.constant 0 : i32
    %c0_i32_2 = arith.constant 0 : i32
    return %c0_i32, %c0_i32_0, %c0_i32_1 : i32, i32, i32
  }
  func.func @transform_4(%arg0: i32, %arg1: i32) -> (i32, i32) {
    %c0_i32 = arith.constant 0 : i32
    %c0_i32_0 = arith.constant 0 : i32
    %c0_i32_1 = arith.constant 0 : i32
    return %c0_i32, %c0_i32_0 : i32, i32
  }
  func.func @transform_5(%arg0: i32, %arg1: i32) -> (i32, i32, i32, i32, i32) {
    %c0_i32 = arith.constant 0 : i32
    %c0_i32_0 = arith.constant 0 : i32
    %c0_i32_1 = arith.constant 0 : i32
    %c0_i32_2 = arith.constant 0 : i32
    return %arg0, %arg1, %c0_i32, %c0_i32_0, %c0_i32_1 : i32, i32, i32, i32, i32
  }
  func.func @transform_6(%arg0: i32, %arg1: i32) -> (i32, i32, i32, i32, i32) {
    %c0_i32 = arith.constant 0 : i32
    %c0_i32_0 = arith.constant 0 : i32
    %c0_i32_1 = arith.constant 0 : i32
    %c0_i32_2 = arith.constant 0 : i32
    return %arg0, %arg1, %c0_i32, %c0_i32_0, %c0_i32_1 : i32, i32, i32, i32, i32
  }
}

</mosaic_0001>

<llo_original>
// kernel: en_block2_forward.3
$region0: #{en_block2_forward.3}
  #allocation0 [shape = 'u32[]', space=smem, size = 0x4, offset = 0x4, fixed_abs, tag = 'smem constant byte address 0x4 - core index']
  #allocation1 [shape = 'u32[72,128]{1,0:T(1,128)}', space=vmem, size = 0x9000, scoped, tag = 'internal scratch']
  %s0 = inlined_call_operand.hbm [shape: f32[2,8,8,8,16], index: 0, kind: input, shape index: {}]
  %s1 = inlined_call_operand.vmem [shape: f32[1,16], index: 1, kind: output, shape index: {0}]
  %s2 = inlined_call_operand.vmem [shape: f32[1,16], index: 2, kind: output, shape index: {1}]
  %3 = xla_tuple %s1, %s2
  %s4 = sld [smem:[#allocation0]]
  $region53: #{en_block2_forward.3} parent=0
    _
  %s6 = ssub.s32 1, %s4
  %s7 = scalar_select 0, %s6, %s4
  $region1: #{en_block2_forward.3} parent=0
    #allocation2 [shape = 'u8[524288]{0}', space=vmem, size = 0x80000, scoped, tag = 'input window, operand 0']
    #allocation3 [shape = 's32[2]{0}', space=sflag, size = 0x8, scoped, tag = 'scoped memory for en_block2_forward.3']
    %8 = vsyncpa [#allocation3], 0
    %s9 = scalar_lea.sflag [#allocation3], 1
    %10 = vsyncpa %s9, 0
    loop: start=0, step=1, limit=4
    $region2: #{en_block2_forward.3} parent=1 // loop_pre_header
      _
    $region3: #{en_block2_forward.3} parent=1 // loop_header
      %s12 = sphi 0, %s16
      %p13 = scmp.ge.s32.totalorder %s12, 4
      %s19 = sphi 0, %s31
      %s20 = sphi 0, %s27
      %s21 = sphi 0, %s19
      %s22 = sphi 0, %s20
      %s23 = sphi 0, %s21
      %s24 = sphi 0, %s22
      %s36 = sphi 0, %s38
      %s39 = sphi 0, %s36
      %s40 = sphi 0, %s39
      %s56 = sphi 0, %s40
      %s60 = sphi 0, %s60
      %s62 = sphi 0, %s60
      %s63 = sphi 0, %s62
      %s77 = sphi 0, %s63
      %s81 = sphi 0, %s81
      %s83 = sphi 0, %s81
      %s84 = sphi 0, %s83
      %s98 = sphi 0, %s84
    $region4: #{en_block2_forward.3} parent=1 // loop_header_branch
      %15 = sbr.rel (%p13) target = $region8
    $region5: #{en_block2_forward.3} parent=1 // loop_body
      %s17 = ssub.s32 %s12, 1
      %s18 = ssub.s32 %s12, 2
      %s25 = sadd.s32 1, %s20
      %p26 = scmp.ge.s32.totalorder %s25, 1
      %s27 = scalar_select %p26, 0, %s25
      %s28 = sadd.s32 1, %s19
      %s29 = scalar_select %p26, %s28, %s19
      %p30 = scmp.ge.s32.totalorder %s29, 2
      %s31 = scalar_select %p30, 0, %s29
      %s32 = ssub.s32 %s19, %s31
      %s33 = ssub.s32 %s20, %s27
      %s34 = sor.u32 %s32, %s33
      %p35 = scmp.eq.s32.totalorder %s34, 0
      %s37 = sadd.s32 %s36, 1
      %s38 = scalar_select %p35, %s36, %s37
      %p41 = pneg %p35
      %p42 = scmp.eq.s32.totalorder %s12, 1
      %p43 = por %p41, %p42
      %p44 = scmp.ne.s32.totalorder %s36, %s39
      %p45 = scmp.eq.s32.totalorder %s12, 0
      %p46 = por %p44, %p45
      %p47 = scmp.ne.s32.totalorder %s36, %s39
      %p48 = scmp.eq.s32.totalorder %s17, 1
      %p49 = por %p47, %p48
      %p50 = scmp.ne.s32.totalorder %s39, %s40
      %p51 = scmp.eq.s32.totalorder %s17, 0
      %p52 = por %p50, %p51
      %p53 = scmp.ne.s32.totalorder %s39, %s40
      %p54 = scmp.eq.s32.totalorder %s18, 1
      %p55 = por %p53, %p54
      %p57 = scmp.ne.s32.totalorder %s40, %s56
      %p58 = scmp.eq.s32.totalorder %s18, 0
      %p59 = por %p57, %p58
      %s61 = sadd.s32 %s60, 1
      %p64 = scmp.eq.s32.totalorder %s12, 1
      %p65 = scmp.ne.s32.totalorder %s60, %s62
      %p66 = scmp.eq.s32.totalorder %s12, 0
      %p67 = por %p65, %p66
      %p68 = scmp.ne.s32.totalorder %s60, %s62
      %p69 = scmp.eq.s32.totalorder %s17, 1
      %p70 = por %p68, %p69
      %p71 = scmp.ne.s32.totalorder %s62, %s63
      %p72 = scmp.eq.s32.totalorder %s17, 0
      %p73 = por %p71, %p72
      %p74 = scmp.ne.s32.totalorder %s62, %s63
      %p75 = scmp.eq.s32.totalorder %s18, 1
      %p76 = por %p74, %p75
      %p78 = scmp.ne.s32.totalorder %s63, %s77
      %p79 = scmp.eq.s32.totalorder %s18, 0
      %p80 = por %p78, %p79
      %s82 = sadd.s32 %s81, 1
      %p85 = scmp.eq.s32.totalorder %s12, 1
      %p86 = scmp.ne.s32.totalorder %s81, %s83
      %p87 = scmp.eq.s32.totalorder %s12, 0
      %p88 = por %p86, %p87
      %p89 = scmp.ne.s32.totalorder %s81, %s83
      %p90 = scmp.eq.s32.totalorder %s17, 1
      %p91 = por %p89, %p90
      %p92 = scmp.ne.s32.totalorder %s83, %s84
      %p93 = scmp.eq.s32.totalorder %s17, 0
      %p94 = por %p92, %p93
      %p95 = scmp.ne.s32.totalorder %s83, %s84
      %p96 = scmp.eq.s32.totalorder %s18, 1
      %p97 = por %p95, %p96
      %p99 = scmp.ne.s32.totalorder %s84, %s98
      %p100 = scmp.eq.s32.totalorder %s18, 0
      %p101 = por %p99, %p100
      %p102 = scmp.le.s32.totalorder 1, %s12
      %p103 = scmp.lt.s32.totalorder %s12, 3
      %p104 = pnand %p102, %p103
      %p105 = pneg %p104
      // Predicated region
      $region9: #{en_block2_forward.3} parent=5 // pred_check
        _
      $region10: #{en_block2_forward.3} parent=5 // pred_check_branch
        %107 = sbr.rel (%p104) target = $region12
      $region11: #{en_block2_forward.3} parent=5 // pred_region
        %s108 = ssub.s32 %s12, 1
      $region12: #{en_block2_forward.3} parent=5 // pred_fallthru
        _
      %p109 = scmp.lt.s32.totalorder %s12, 2
      // Predicated region
      $region13: #{en_block2_forward.3} parent=5 // pred_check
        %p110 = pneg %p109
      $region14: #{en_block2_forward.3} parent=5 // pred_check_branch
        %112 = sbr.rel (%p110) target = $region16
      $region15: #{en_block2_forward.3} parent=5 // pred_region
        // Predicated region
        $region17: #{en_block2_forward.3} parent=15 // pred_check
          %p113 = pneg %p46
        $region18: #{en_block2_forward.3} parent=15 // pred_check_branch
          %115 = sbr.rel (%p113) target = $region20
        $region19: #{en_block2_forward.3} parent=15 // pred_region
          %s116 = sand.u32 %s36, 1
          %s117 = scalar_lea.sflag [#allocation3], %s116
          %s118 = sand.u32 %s36, 1
          %s119 = smul.addr %s118, 512
          %s120 = scalar_lea.vmem [#allocation2], %s119
          %s121 = smul.u32 8, %s20
          %123 = vsyncadd %s117, 0
          %s124 = smul.addr %s121, 8
          %s125 = smul.addr %s19, 64
          %s126 = sadd.s32 %s124, %s125
          %s127 = smul.addr %s126, 8
          %s128 = scalar_lea.hbm %s0, %s127
          %s129 = sshll.u32 %s128, 4
          %s130 = int_to_ptr.hbm [resolvable:$true] %s129
          %s131 = sshll.u32 %s120, 4
          %s132 = int_to_ptr.vmem [resolvable:$true] %s131
          %137 = dma.hbm_to_vmem [thread:$0]  %s130, 8192, %s132, %s117, 128, 128, 8
        $region20: #{en_block2_forward.3} parent=15 // pred_fallthru
          _
      $region16: #{en_block2_forward.3} parent=5 // pred_fallthru
        _
      %p138 = scmp.le.s32.totalorder 1, %s12
      %p139 = scmp.lt.s32.totalorder %s12, 3
      %p140 = pnand %p138, %p139
      %p141 = pneg %p140
      // Predicated region
      $region21: #{en_block2_forward.3} parent=5 // pred_check
        _
      $region22: #{en_block2_forward.3} parent=5 // pred_check_branch
        %143 = sbr.rel (%p140) target = $region24
      $region23: #{en_block2_forward.3} parent=5 // pred_region
        %s144 = ssub.s32 %s12, 1
        %s145 = sand.u32 %s39, 1
        %s146 = scalar_lea.sflag [#allocation3], %s145
        %s147 = sand.u32 %s39, 1
        %s148 = smul.addr %s147, 512
        %s149 = scalar_lea.vmem [#allocation2], %s148
        // Predicated region
        $region25: #{en_block2_forward.3} parent=23 // pred_check
          %p150 = pneg %p52
        $region26: #{en_block2_forward.3} parent=23 // pred_check_branch
          %152 = sbr.rel (%p150) target = $region28
        $region27: #{en_block2_forward.3} parent=23 // pred_region
          %154 = dma.done %s146, 8192
        $region28: #{en_block2_forward.3} parent=23 // pred_fallthru
          _
        %s155 = sand.u32 %s39, 1
        %s156 = scalar_lea.sflag [#allocation3], %s155
        %s157 = sand.u32 %s39, 1
        %s158 = smul.addr %s157, 512
        %s159 = scalar_lea.vmem [#allocation2], %s158
        %p160 = pneg %p52
        %p161 = pneg %p49
        %p162 = pneg %p73
        %p163 = pneg %p70
        %p164 = pneg %p94
        %p165 = pneg %p91
        %s166 = smul.u32 8, %s22
        %p167 = scmp.eq.s32.totalorder %s21, 0
        %p168 = scmp.eq.s32.totalorder %s22, 0
        %p169 = pnand %p167, %p168
        %p170 = pneg %p169
        // Predicated region
        $region29: #{en_block2_forward.3} parent=23 // pred_check
          _
        $region30: #{en_block2_forward.3} parent=23 // pred_check_branch
          %172 = sbr.rel (%p169) target = $region32
        $region31: #{en_block2_forward.3} parent=23 // pred_region
          %vm173 = vcmask 122880
          %174 = vst.msk [vmem:[%s1] sm:$0x1] %vm173, 0.0
          %175 = vst.msk [vmem:[%s2] sm:$0x1] %vm173, 0.0
        $region32: #{en_block2_forward.3} parent=23 // pred_fallthru
          _
        %v176 = vld [vmem:[%s149] sm:$0xff]
        %v177 = vld [vmem:[%s149 + $0x8] sm:$0xff]
        %v178 = vld [vmem:[%s149 + $0x10] sm:$0xff]
        %v179 = vld [vmem:[%s149 + $0x18] sm:$0xff]
        %v180 = vld [vmem:[%s149 + $0x20] sm:$0xff]
        %v181 = vld [vmem:[%s149 + $0x28] sm:$0xff]
        %v182 = vld [vmem:[%s149 + $0x30] sm:$0xff]
        %v183 = vld [vmem:[%s149 + $0x38] sm:$0xff]
        %v184 = vld [vmem:[%s149 + $0x40] sm:$0xff]
        %v185 = vld [vmem:[%s149 + $0x48] sm:$0xff]
        %v186 = vld [vmem:[%s149 + $0x50] sm:$0xff]
        %v187 = vld [vmem:[%s149 + $0x58] sm:$0xff]
        %v188 = vld [vmem:[%s149 + $0x60] sm:$0xff]
        %v189 = vld [vmem:[%s149 + $0x68] sm:$0xff]
        %v190 = vld [vmem:[%s149 + $0x70] sm:$0xff]
        %v191 = vld [vmem:[%s149 + $0x78] sm:$0xff]
        %v192 = vld [vmem:[%s149 + $0x80] sm:$0xff]
        %v193 = vld [vmem:[%s149 + $0x88] sm:$0xff]
        %v194 = vld [vmem:[%s149 + $0x90] sm:$0xff]
        %v195 = vld [vmem:[%s149 + $0x98] sm:$0xff]
        %v196 = vld [vmem:[%s149 + $0xa0] sm:$0xff]
        %v197 = vld [vmem:[%s149 + $0xa8] sm:$0xff]
        %v198 = vld [vmem:[%s149 + $0xb0] sm:$0xff]
        %v199 = vld [vmem:[%s149 + $0xb8] sm:$0xff]
        %v200 = vld [vmem:[%s149 + $0xc0] sm:$0xff]
        %v201 = vld [vmem:[%s149 + $0xc8] sm:$0xff]
        %v202 = vld [vmem:[%s149 + $0xd0] sm:$0xff]
        %v203 = vld [vmem:[%s149 + $0xd8] sm:$0xff]
        %v204 = vld [vmem:[%s149 + $0xe0] sm:$0xff]
        %v205 = vld [vmem:[%s149 + $0xe8] sm:$0xff]
        %v206 = vld [vmem:[%s149 + $0xf0] sm:$0xff]
        %v207 = vld [vmem:[%s149 + $0xf8] sm:$0xff]
        %v208 = vld [vmem:[%s149 + $0x100] sm:$0xff]
        %v209 = vld [vmem:[%s149 + $0x108] sm:$0xff]
        %v210 = vld [vmem:[%s149 + $0x110] sm:$0xff]
        %v211 = vld [vmem:[%s149 + $0x118] sm:$0xff]
        %v212 = vld [vmem:[%s149 + $0x120] sm:$0xff]
        %v213 = vld [vmem:[%s149 + $0x128] sm:$0xff]
        %v214 = vld [vmem:[%s149 + $0x130] sm:$0xff]
        %v215 = vld [vmem:[%s149 + $0x138] sm:$0xff]
        %v216 = vld [vmem:[%s149 + $0x140] sm:$0xff]
        %v217 = vld [vmem:[%s149 + $0x148] sm:$0xff]
        %v218 = vld [vmem:[%s149 + $0x150] sm:$0xff]
        %v219 = vld [vmem:[%s149 + $0x158] sm:$0xff]
        %v220 = vld [vmem:[%s149 + $0x160] sm:$0xff]
        %v221 = vld [vmem:[%s149 + $0x168] sm:$0xff]
        %v222 = vld [vmem:[%s149 + $0x170] sm:$0xff]
        %v223 = vld [vmem:[%s149 + $0x178] sm:$0xff]
        %v224 = vld [vmem:[%s149 + $0x180] sm:$0xff]
        %v225 = vld [vmem:[%s149 + $0x188] sm:$0xff]
        %v226 = vld [vmem:[%s149 + $0x190] sm:$0xff]
        %v227 = vld [vmem:[%s149 + $0x198] sm:$0xff]
        %v228 = vld [vmem:[%s149 + $0x1a0] sm:$0xff]
        %v229 = vld [vmem:[%s149 + $0x1a8] sm:$0xff]
        %v230 = vld [vmem:[%s149 + $0x1b0] sm:$0xff]
        %v231 = vld [vmem:[%s149 + $0x1b8] sm:$0xff]
        %v232 = vld [vmem:[%s149 + $0x1c0] sm:$0xff]
        %v233 = vld [vmem:[%s149 + $0x1c8] sm:$0xff]
        %v234 = vld [vmem:[%s149 + $0x1d0] sm:$0xff]
        %v235 = vld [vmem:[%s149 + $0x1d8] sm:$0xff]
        %v236 = vld [vmem:[%s149 + $0x1e0] sm:$0xff]
        %v237 = vld [vmem:[%s149 + $0x1e8] sm:$0xff]
        %v238 = vld [vmem:[%s149 + $0x1f0] sm:$0xff]
        %v239 = vld [vmem:[%s149 + $0x1f8] sm:$0xff]
        %v240 = vld [vmem:[%s1] sm:$0x1]
        %vm241 = vcmask 130048
        %v242 = vsel %vm241, %v176, 0.0
        %v243 = vsel %vm241, %v177, 0.0
        %v244 = vadd.f32 %v242, %v243
        %v245 = vsel %vm241, %v178, 0.0
        %v246 = vadd.f32 %v244, %v245
        %v247 = vsel %vm241, %v179, 0.0
        %v248 = vadd.f32 %v246, %v247
        %v249 = vsel %vm241, %v180, 0.0
        %v250 = vadd.f32 %v248, %v249
        %v251 = vsel %vm241, %v181, 0.0
        %v252 = vadd.f32 %v250, %v251
        %v253 = vsel %vm241, %v182, 0.0
        %v254 = vadd.f32 %v252, %v253
        %v255 = vsel %vm241, %v183, 0.0
        %v256 = vadd.f32 %v254, %v255
        %v257 = vsel %vm241, %v184, 0.0
        %v258 = vadd.f32 %v256, %v257
        %v259 = vsel %vm241, %v185, 0.0
        %v260 = vadd.f32 %v258, %v259
        %v261 = vsel %vm241, %v186, 0.0
        %v262 = vadd.f32 %v260, %v261
        %v263 = vsel %vm241, %v187, 0.0
        %v264 = vadd.f32 %v262, %v263
        %v265 = vsel %vm241, %v188, 0.0
        %v266 = vadd.f32 %v264, %v265
        %v267 = vsel %vm241, %v189, 0.0
        %v268 = vadd.f32 %v266, %v267
        %v269 = vsel %vm241, %v190, 0.0
        %v270 = vadd.f32 %v268, %v269
        %v271 = vsel %vm241, %v191, 0.0
        %v272 = vadd.f32 %v270, %v271
        %v273 = vsel %vm241, %v192, 0.0
        %v274 = vadd.f32 %v272, %v273
        %v275 = vsel %vm241, %v193, 0.0
        %v276 = vadd.f32 %v274, %v275
        %v277 = vsel %vm241, %v194, 0.0
        %v278 = vadd.f32 %v276, %v277
        %v279 = vsel %vm241, %v195, 0.0
        %v280 = vadd.f32 %v278, %v279
        %v281 = vsel %vm241, %v196, 0.0
        %v282 = vadd.f32 %v280, %v281
        %v283 = vsel %vm241, %v197, 0.0
        %v284 = vadd.f32 %v282, %v283
        %v285 = vsel %vm241, %v198, 0.0
        %v286 = vadd.f32 %v284, %v285
        %v287 = vsel %vm241, %v199, 0.0
        %v288 = vadd.f32 %v286, %v287
        %v289 = vsel %vm241, %v200, 0.0
        %v290 = vadd.f32 %v288, %v289
        %v291 = vsel %vm241, %v201, 0.0
        %v292 = vadd.f32 %v290, %v291
        %v293 = vsel %vm241, %v202, 0.0
        %v294 = vadd.f32 %v292, %v293
        %v295 = vsel %vm241, %v203, 0.0
        %v296 = vadd.f32 %v294, %v295
        %v297 = vsel %vm241, %v204, 0.0
        %v298 = vadd.f32 %v296, %v297
        %v299 = vsel %vm241, %v205, 0.0
        %v300 = vadd.f32 %v298, %v299
        %v301 = vsel %vm241, %v206, 0.0
        %v302 = vadd.f32 %v300, %v301
        %v303 = vsel %vm241, %v207, 0.0
        %v304 = vadd.f32 %v302, %v303
        %v305 = vsel %vm241, %v208, 0.0
        %v306 = vadd.f32 %v304, %v305
        %v307 = vsel %vm241, %v209, 0.0
        %v308 = vadd.f32 %v306, %v307
        %v309 = vsel %vm241, %v210, 0.0
        %v310 = vadd.f32 %v308, %v309
        %v311 = vsel %vm241, %v211, 0.0
        %v312 = vadd.f32 %v310, %v311
        %v313 = vsel %vm241, %v212, 0.0
        %v314 = vadd.f32 %v312, %v313
        %v315 = vsel %vm241, %v213, 0.0
        %v316 = vadd.f32 %v314, %v315
        %v317 = vsel %vm241, %v214, 0.0
        %v318 = vadd.f32 %v316, %v317
        %v319 = vsel %vm241, %v215, 0.0
        %v320 = vadd.f32 %v318, %v319
        %v321 = vsel %vm241, %v216, 0.0
        %v322 = vadd.f32 %v320, %v321
        %v323 = vsel %vm241, %v217, 0.0
        %v324 = vadd.f32 %v322, %v323
        %v325 = vsel %vm241, %v218, 0.0
        %v326 = vadd.f32 %v324, %v325
        %v327 = vsel %vm241, %v219, 0.0
        %v328 = vadd.f32 %v326, %v327
        %v329 = vsel %vm241, %v220, 0.0
        %v330 = vadd.f32 %v328, %v329
        %v331 = vsel %vm241, %v221, 0.0
        %v332 = vadd.f32 %v330, %v331
        %v333 = vsel %vm241, %v222, 0.0
        %v334 = vadd.f32 %v332, %v333
        %v335 = vsel %vm241, %v223, 0.0
        %v336 = vadd.f32 %v334, %v335
        %v337 = vsel %vm241, %v224, 0.0
        %v338 = vadd.f32 %v336, %v337
        %v339 = vsel %vm241, %v225, 0.0
        %v340 = vadd.f32 %v338, %v339
        %v341 = vsel %vm241, %v226, 0.0
        %v342 = vadd.f32 %v340, %v341
        %v343 = vsel %vm241, %v227, 0.0
        %v344 = vadd.f32 %v342, %v343
        %v345 = vsel %vm241, %v228, 0.0
        %v346 = vadd.f32 %v344, %v345
        %v347 = vsel %vm241, %v229, 0.0
        %v348 = vadd.f32 %v346, %v347
        %v349 = vsel %vm241, %v230, 0.0
        %v350 = vadd.f32 %v348, %v349
        %v351 = vsel %vm241, %v231, 0.0
        %v352 = vadd.f32 %v350, %v351
        %v353 = vsel %vm241, %v232, 0.0
        %v354 = vadd.f32 %v352, %v353
        %v355 = vsel %vm241, %v233, 0.0
        %v356 = vadd.f32 %v354, %v355
        %v357 = vsel %vm241, %v234, 0.0
        %v358 = vadd.f32 %v356, %v357
        %v359 = vsel %vm241, %v235, 0.0
        %v360 = vadd.f32 %v358, %v359
        %v361 = vsel %vm241, %v236, 0.0
        %v362 = vadd.f32 %v360, %v361
        %v363 = vsel %vm241, %v237, 0.0
        %v364 = vadd.f32 %v362, %v363
        %v365 = vsel %vm241, %v238, 0.0
        %v366 = vadd.f32 %v364, %v365
        %v367 = vsel %vm241, %v239, 0.0
        %v368 = vadd.f32 %v366, %v367
        %v369 = vrot.slane %v368, 4
        %v370 = vadd.f32 %v368, %v369
        %v371 = vrot.slane %v370, 2
        %v372 = vadd.f32 %v370, %v371
        %v373 = vrot.slane %v372, 1
        %v374 = vadd.f32 %v372, %v373
        %v375 = vadd.f32 %v240, %v374
        %vm376 = vcmask 122880
        %377 = vst.msk [vmem:[%s1] sm:$0x1] %vm376, %v375
        %v378 = vld [vmem:[%s2] sm:$0x1]
        %v379 = vmul.f32 %v176, %v176
        %v380 = vmul.f32 %v177, %v177
        %v381 = vmul.f32 %v178, %v178
        %v382 = vmul.f32 %v179, %v179
        %v383 = vmul.f32 %v180, %v180
        %v384 = vmul.f32 %v181, %v181
        %v385 = vmul.f32 %v182, %v182
        %v386 = vmul.f32 %v183, %v183
        %v387 = vmul.f32 %v184, %v184
        %v388 = vmul.f32 %v185, %v185
        %v389 = vmul.f32 %v186, %v186
        %v390 = vmul.f32 %v187, %v187
        %v391 = vmul.f32 %v188, %v188
        %v392 = vmul.f32 %v189, %v189
        %v393 = vmul.f32 %v190, %v190
        %v394 = vmul.f32 %v191, %v191
        %v395 = vmul.f32 %v192, %v192
        %v396 = vmul.f32 %v193, %v193
        %v397 = vmul.f32 %v194, %v194
        %v398 = vmul.f32 %v195, %v195
        %v399 = vmul.f32 %v196, %v196
        %v400 = vmul.f32 %v197, %v197
        %v401 = vmul.f32 %v198, %v198
        %v402 = vmul.f32 %v199, %v199
        %v403 = vmul.f32 %v200, %v200
        %v404 = vmul.f32 %v201, %v201
        %v405 = vmul.f32 %v202, %v202
        %v406 = vmul.f32 %v203, %v203
        %v407 = vmul.f32 %v204, %v204
        %v408 = vmul.f32 %v205, %v205
        %v409 = vmul.f32 %v206, %v206
        %v410 = vmul.f32 %v207, %v207
        %v411 = vmul.f32 %v208, %v208
        %v412 = vmul.f32 %v209, %v209
        %v413 = vmul.f32 %v210, %v210
        %v414 = vmul.f32 %v211, %v211
        %v415 = vmul.f32 %v212, %v212
        %v416 = vmul.f32 %v213, %v213
        %v417 = vmul.f32 %v214, %v214
        %v418 = vmul.f32 %v215, %v215
        %v419 = vmul.f32 %v216, %v216
        %v420 = vmul.f32 %v217, %v217
        %v421 = vmul.f32 %v218, %v218
        %v422 = vmul.f32 %v219, %v219
        %v423 = vmul.f32 %v220, %v220
        %v424 = vmul.f32 %v221, %v221
        %v425 = vmul.f32 %v222, %v222
        %v426 = vmul.f32 %v223, %v223
        %v427 = vmul.f32 %v224, %v224
        %v428 = vmul.f32 %v225, %v225
        %v429 = vmul.f32 %v226, %v226
        %v430 = vmul.f32 %v227, %v227
        %v431 = vmul.f32 %v228, %v228
        %v432 = vmul.f32 %v229, %v229
        %v433 = vmul.f32 %v230, %v230
        %v434 = vmul.f32 %v231, %v231
        %v435 = vmul.f32 %v232, %v232
        %v436 = vmul.f32 %v233, %v233
        %v437 = vmul.f32 %v234, %v234
        %v438 = vmul.f32 %v235, %v235
        %v439 = vmul.f32 %v236, %v236
        %v440 = vmul.f32 %v237, %v237
        %v441 = vmul.f32 %v238, %v238
        %v442 = vmul.f32 %v239, %v239
        %v443 = vsel %vm241, %v379, 0.0
        %v444 = vsel %vm241, %v380, 0.0
        %v445 = vadd.f32 %v443, %v444
        %v446 = vsel %vm241, %v381, 0.0
        %v447 = vadd.f32 %v445, %v446
        %v448 = vsel %vm241, %v382, 0.0
        %v449 = vadd.f32 %v447, %v448
        %v450 = vsel %vm241, %v383, 0.0
        %v451 = vadd.f32 %v449, %v450
        %v452 = vsel %vm241, %v384, 0.0
        %v453 = vadd.f32 %v451, %v452
        %v454 = vsel %vm241, %v385, 0.0
        %v455 = vadd.f32 %v453, %v454
        %v456 = vsel %vm241, %v386, 0.0
        %v457 = vadd.f32 %v455, %v456
        %v458 = vsel %vm241, %v387, 0.0
        %v459 = vadd.f32 %v457, %v458
        %v460 = vsel %vm241, %v388, 0.0
        %v461 = vadd.f32 %v459, %v460
        %v462 = vsel %vm241, %v389, 0.0
        %v463 = vadd.f32 %v461, %v462
        %v464 = vsel %vm241, %v390, 0.0
        %v465 = vadd.f32 %v463, %v464
        %v466 = vsel %vm241, %v391, 0.0
        %v467 = vadd.f32 %v465, %v466
        %v468 = vsel %vm241, %v392, 0.0
        %v469 = vadd.f32 %v467, %v468
        %v470 = vsel %vm241, %v393, 0.0
        %v471 = vadd.f32 %v469, %v470
        %v472 = vsel %vm241, %v394, 0.0
        %v473 = vadd.f32 %v471, %v472
        %v474 = vsel %vm241, %v395, 0.0
        %v475 = vadd.f32 %v473, %v474
        %v476 = vsel %vm241, %v396, 0.0
        %v477 = vadd.f32 %v475, %v476
        %v478 = vsel %vm241, %v397, 0.0
        %v479 = vadd.f32 %v477, %v478
        %v480 = vsel %vm241, %v398, 0.0
        %v481 = vadd.f32 %v479, %v480
        %v482 = vsel %vm241, %v399, 0.0
        %v483 = vadd.f32 %v481, %v482
        %v484 = vsel %vm241, %v400, 0.0
        %v485 = vadd.f32 %v483, %v484
        %v486 = vsel %vm241, %v401, 0.0
        %v487 = vadd.f32 %v485, %v486
        %v488 = vsel %vm241, %v402, 0.0
        %v489 = vadd.f32 %v487, %v488
        %v490 = vsel %vm241, %v403, 0.0
        %v491 = vadd.f32 %v489, %v490
        %v492 = vsel %vm241, %v404, 0.0
        %v493 = vadd.f32 %v491, %v492
        %v494 = vsel %vm241, %v405, 0.0
        %v495 = vadd.f32 %v493, %v494
        %v496 = vsel %vm241, %v406, 0.0
        %v497 = vadd.f32 %v495, %v496
        %v498 = vsel %vm241, %v407, 0.0
        %v499 = vadd.f32 %v497, %v498
        %v500 = vsel %vm241, %v408, 0.0
        %v501 = vadd.f32 %v499, %v500
        %v502 = vsel %vm241, %v409, 0.0
        %v503 = vadd.f32 %v501, %v502
        %v504 = vsel %vm241, %v410, 0.0
        %v505 = vadd.f32 %v503, %v504
        %v506 = vsel %vm241, %v411, 0.0
        %v507 = vadd.f32 %v505, %v506
        %v508 = vsel %vm241, %v412, 0.0
        %v509 = vadd.f32 %v507, %v508
        %v510 = vsel %vm241, %v413, 0.0
        %v511 = vadd.f32 %v509, %v510
        %v512 = vsel %vm241, %v414, 0.0
        %v513 = vadd.f32 %v511, %v512
        %v514 = vsel %vm241, %v415, 0.0
        %v515 = vadd.f32 %v513, %v514
        %v516 = vsel %vm241, %v416, 0.0
        %v517 = vadd.f32 %v515, %v516
        %v518 = vsel %vm241, %v417, 0.0
        %v519 = vadd.f32 %v517, %v518
        %v520 = vsel %vm241, %v418, 0.0
        %v521 = vadd.f32 %v519, %v520
        %v522 = vsel %vm241, %v419, 0.0
        %v523 = vadd.f32 %v521, %v522
        %v524 = vsel %vm241, %v420, 0.0
        %v525 = vadd.f32 %v523, %v524
        %v526 = vsel %vm241, %v421, 0.0
        %v527 = vadd.f32 %v525, %v526
        %v528 = vsel %vm241, %v422, 0.0
        %v529 = vadd.f32 %v527, %v528
        %v530 = vsel %vm241, %v423, 0.0
        %v531 = vadd.f32 %v529, %v530
        %v532 = vsel %vm241, %v424, 0.0
        %v533 = vadd.f32 %v531, %v532
        %v534 = vsel %vm241, %v425, 0.0
        %v535 = vadd.f32 %v533, %v534
        %v536 = vsel %vm241, %v426, 0.0
        %v537 = vadd.f32 %v535, %v536
        %v538 = vsel %vm241, %v427, 0.0
        %v539 = vadd.f32 %v537, %v538
        %v540 = vsel %vm241, %v428, 0.0
        %v541 = vadd.f32 %v539, %v540
        %v542 = vsel %vm241, %v429, 0.0
        %v543 = vadd.f32 %v541, %v542
        %v544 = vsel %vm241, %v430, 0.0
        %v545 = vadd.f32 %v543, %v544
        %v546 = vsel %vm241, %v431, 0.0
        %v547 = vadd.f32 %v545, %v546
        %v548 = vsel %vm241, %v432, 0.0
        %v549 = vadd.f32 %v547, %v548
        %v550 = vsel %vm241, %v433, 0.0
        %v551 = vadd.f32 %v549, %v550
        %v552 = vsel %vm241, %v434, 0.0
        %v553 = vadd.f32 %v551, %v552
        %v554 = vsel %vm241, %v435, 0.0
        %v555 = vadd.f32 %v553, %v554
        %v556 = vsel %vm241, %v436, 0.0
        %v557 = vadd.f32 %v555, %v556
        %v558 = vsel %vm241, %v437, 0.0
        %v559 = vadd.f32 %v557, %v558
        %v560 = vsel %vm241, %v438, 0.0
        %v561 = vadd.f32 %v559, %v560
        %v562 = vsel %vm241, %v439, 0.0
        %v563 = vadd.f32 %v561, %v562
        %v564 = vsel %vm241, %v440, 0.0
        %v565 = vadd.f32 %v563, %v564
        %v566 = vsel %vm241, %v441, 0.0
        %v567 = vadd.f32 %v565, %v566
        %v568 = vsel %vm241, %v442, 0.0
        %v569 = vadd.f32 %v567, %v568
        %v570 = vrot.slane %v569, 4
        %v571 = vadd.f32 %v569, %v570
        %v572 = vrot.slane %v571, 2
        %v573 = vadd.f32 %v571, %v572
        %v574 = vrot.slane %v573, 1
        %v575 = vadd.f32 %v573, %v574
        %v576 = vadd.f32 %v378, %v575
        %577 = vst.msk [vmem:[%s2] sm:$0x1] %vm376, %v576
        // Predicated region
        $region33: #{en_block2_forward.3} parent=23 // pred_check
          %p578 = pneg %p70
        $region34: #{en_block2_forward.3} parent=23 // pred_check_branch
          %580 = sbr.rel (%p578) target = $region36
        $region35: #{en_block2_forward.3} parent=23 // pred_region
          _
        $region36: #{en_block2_forward.3} parent=23 // pred_fallthru
          _
        // Predicated region
        $region37: #{en_block2_forward.3} parent=23 // pred_check
          %p581 = pneg %p91
        $region38: #{en_block2_forward.3} parent=23 // pred_check_branch
          %583 = sbr.rel (%p581) target = $region40
        $region39: #{en_block2_forward.3} parent=23 // pred_region
          _
        $region40: #{en_block2_forward.3} parent=23 // pred_fallthru
          _
        // Predicated region
        $region41: #{en_block2_forward.3} parent=23 // pred_check
          %p584 = pneg %p70
        $region42: #{en_block2_forward.3} parent=23 // pred_check_branch
          %586 = sbr.rel (%p584) target = $region44
        $region43: #{en_block2_forward.3} parent=23 // pred_region
          _
        $region44: #{en_block2_forward.3} parent=23 // pred_fallthru
          _
        // Predicated region
        $region45: #{en_block2_forward.3} parent=23 // pred_check
          %p587 = pneg %p91
        $region46: #{en_block2_forward.3} parent=23 // pred_check_branch
          %589 = sbr.rel (%p587) target = $region48
        $region47: #{en_block2_forward.3} parent=23 // pred_region
          _
        $region48: #{en_block2_forward.3} parent=23 // pred_fallthru
          _
      $region24: #{en_block2_forward.3} parent=5 // pred_fallthru
        _
      %p590 = scmp.le.s32.totalorder 2, %s12
      // Predicated region
      $region49: #{en_block2_forward.3} parent=5 // pred_check
        %p591 = pneg %p590
      $region50: #{en_block2_forward.3} parent=5 // pred_check_branch
        %593 = sbr.rel (%p591) target = $region52
      $region51: #{en_block2_forward.3} parent=5 // pred_region
        %s594 = ssub.s32 %s12, 2
      $region52: #{en_block2_forward.3} parent=5 // pred_fallthru
        _
    $region6: #{en_block2_forward.3} parent=1 // loop_footer
      %s16 = sadd.s32 1, %s12
    $region7: #{en_block2_forward.3} parent=1 // loop_footer_branch
      %11 = sbr.rel target = $region3
    $region8: #{en_block2_forward.3} parent=1 // loop_exit
      _
    %595 = vsyncpa [#allocation3], 1
    %s596 = scalar_lea.sflag [#allocation3], 1
    %597 = vsyncpa %s596, 1

// kernel: en_block2_forward.5
$region0: #{en_block2_forward.5}
  #allocation0 [shape = 'u32[]', space=smem, size = 0x4, offset = 0x4, fixed_abs, tag = 'smem constant byte address 0x4 - core index']
  #allocation1 [shape = 'u32[72,128]{1,0:T(1,128)}', space=vmem, size = 0x9000, scoped, tag = 'internal scratch']
  #allocation2 [shape = 'bf16[4,10,8,48]{3,2,1,0:T(8,128)(2,1)}', space=vmem, size = 0x14000, scoped, tag = 'scratch operand']
  %s0 = inlined_call_operand.vmem [shape: f32[2,8,8,8,16], index: 0, kind: input, shape index: {}]
  %s1 = inlined_call_operand.vmem [shape: f32[1,16], index: 1, kind: input, shape index: {}]
  %s2 = inlined_call_operand.vmem [shape: f32[1,16], index: 2, kind: input, shape index: {}]
  %s3 = inlined_call_operand.vmem [shape: bf16[9,48,16], index: 3, kind: input, shape index: {}]
  %s4 = inlined_call_operand.vmem [shape: f32[1,16], index: 4, kind: input, shape index: {}]
  %s5 = inlined_call_operand.hbm [shape: f32[2,8,8,8,16], index: 5, kind: input, shape index: {}]
  %s6 = inlined_call_operand.hbm [shape: f32[2,8,8,8,16], index: 6, kind: output, shape index: {}]
  %s7 = sld [smem:[#allocation0]]
  $region68: #{en_block2_forward.5} parent=0
    _
  %s9 = ssub.s32 1, %s7
  %s10 = scalar_select 0, %s9, %s7
  $region1: #{en_block2_forward.5} parent=0
    #allocation3 [shape = 'u8[262144]{0}', space=vmem, size = 0x40000, scoped, tag = 'input window, operand 5']
    #allocation4 [shape = 's32[2]{0}', space=sflag, size = 0x8, scoped, tag = 'scoped memory for en_block2_forward.5']
    #allocation5 [shape = 's32[2]{0}', space=sflag, size = 0x8, scoped, tag = 'scoped memory for en_block2_forward.5']
    #allocation6 [shape = 'u8[262144]{0}', space=vmem, size = 0x40000, scoped, tag = 'output window, operand 0']
    %11 = vsyncpa [#allocation4], 0
    %s12 = scalar_lea.sflag [#allocation4], 1
    %13 = vsyncpa %s12, 0
    %14 = vsyncpa [#allocation5], 0
    %s15 = scalar_lea.sflag [#allocation5], 1
    %16 = vsyncpa %s15, 0
    loop: start=0, step=1, limit=6
    $region2: #{en_block2_forward.5} parent=1 // loop_pre_header
      _
    $region3: #{en_block2_forward.5} parent=1 // loop_header
      %s18 = sphi 0, %s22
      %p19 = scmp.ge.s32.totalorder %s18, 6
      %s25 = sphi 0, %s37
      %s26 = sphi 0, %s33
      %s27 = sphi 0, %s25
      %s28 = sphi 0, %s26
      %s29 = sphi 0, %s27
      %s30 = sphi 0, %s28
      %s40 = sphi 0, %s42
      %s43 = sphi 0, %s40
      %s44 = sphi 0, %s43
      %s60 = sphi 0, %s44
      %s64 = sphi 0, %s64
      %s66 = sphi 0, %s64
      %s67 = sphi 0, %s66
      %s81 = sphi 0, %s67
      %s85 = sphi 0, %s85
      %s87 = sphi 0, %s85
      %s88 = sphi 0, %s87
      %s102 = sphi 0, %s88
      %s106 = sphi 0, %s106
      %s108 = sphi 0, %s106
      %s109 = sphi 0, %s108
      %s123 = sphi 0, %s109
      %s127 = sphi 0, %s127
      %s129 = sphi 0, %s127
      %s130 = sphi 0, %s129
      %s144 = sphi 0, %s130
      %s152 = sphi 0, %s154
      %s155 = sphi 0, %s152
      %s156 = sphi 0, %s155
      %s172 = sphi 0, %s156
      %s180 = sphi 0, %s182
      %s183 = sphi 0, %s180
      %s184 = sphi 0, %s183
      %s200 = sphi 0, %s184
    $region4: #{en_block2_forward.5} parent=1 // loop_header_branch
      %21 = sbr.rel (%p19) target = $region8
    $region5: #{en_block2_forward.5} parent=1 // loop_body
      %s23 = ssub.s32 %s18, 1
      %s24 = ssub.s32 %s18, 2
      %s31 = sadd.s32 1, %s26
      %p32 = scmp.ge.s32.totalorder %s31, 2
      %s33 = scalar_select %p32, 0, %s31
      %s34 = sadd.s32 1, %s25
      %s35 = scalar_select %p32, %s34, %s25
      %p36 = scmp.ge.s32.totalorder %s35, 2
      %s37 = scalar_select %p36, 0, %s35
      %s38 = ssub.s32 %s25, %s37
      %p39 = scmp.eq.s32.totalorder %s38, 0
      %s41 = sadd.s32 %s40, 1
      %s42 = scalar_select %p39, %s40, %s41
      %p45 = pneg %p39
      %p46 = scmp.eq.s32.totalorder %s18, 3
      %p47 = por %p45, %p46
      %p48 = scmp.ne.s32.totalorder %s40, %s43
      %p49 = scmp.eq.s32.totalorder %s18, 0
      %p50 = por %p48, %p49
      %p51 = scmp.ne.s32.totalorder %s40, %s43
      %p52 = scmp.eq.s32.totalorder %s23, 3
      %p53 = por %p51, %p52
      %p54 = scmp.ne.s32.totalorder %s43, %s44
      %p55 = scmp.eq.s32.totalorder %s23, 0
      %p56 = por %p54, %p55
      %p57 = scmp.ne.s32.totalorder %s43, %s44
      %p58 = scmp.eq.s32.totalorder %s24, 3
      %p59 = por %p57, %p58
      %p61 = scmp.ne.s32.totalorder %s44, %s60
      %p62 = scmp.eq.s32.totalorder %s24, 0
      %p63 = por %p61, %p62
      %s65 = sadd.s32 %s64, 1
      %p68 = scmp.eq.s32.totalorder %s18, 3
      %p69 = scmp.ne.s32.totalorder %s64, %s66
      %p70 = scmp.eq.s32.totalorder %s18, 0
      %p71 = por %p69, %p70
      %p72 = scmp.ne.s32.totalorder %s64, %s66
      %p73 = scmp.eq.s32.totalorder %s23, 3
      %p74 = por %p72, %p73
      %p75 = scmp.ne.s32.totalorder %s66, %s67
      %p76 = scmp.eq.s32.totalorder %s23, 0
      %p77 = por %p75, %p76
      %p78 = scmp.ne.s32.totalorder %s66, %s67
      %p79 = scmp.eq.s32.totalorder %s24, 3
      %p80 = por %p78, %p79
      %p82 = scmp.ne.s32.totalorder %s67, %s81
      %p83 = scmp.eq.s32.totalorder %s24, 0
      %p84 = por %p82, %p83
      %s86 = sadd.s32 %s85, 1
      %p89 = scmp.eq.s32.totalorder %s18, 3
      %p90 = scmp.ne.s32.totalorder %s85, %s87
      %p91 = scmp.eq.s32.totalorder %s18, 0
      %p92 = por %p90, %p91
      %p93 = scmp.ne.s32.totalorder %s85, %s87
      %p94 = scmp.eq.s32.totalorder %s23, 3
      %p95 = por %p93, %p94
      %p96 = scmp.ne.s32.totalorder %s87, %s88
      %p97 = scmp.eq.s32.totalorder %s23, 0
      %p98 = por %p96, %p97
      %p99 = scmp.ne.s32.totalorder %s87, %s88
      %p100 = scmp.eq.s32.totalorder %s24, 3
      %p101 = por %p99, %p100
      %p103 = scmp.ne.s32.totalorder %s88, %s102
      %p104 = scmp.eq.s32.totalorder %s24, 0
      %p105 = por %p103, %p104
      %s107 = sadd.s32 %s106, 1
      %p110 = scmp.eq.s32.totalorder %s18, 3
      %p111 = scmp.ne.s32.totalorder %s106, %s108
      %p112 = scmp.eq.s32.totalorder %s18, 0
      %p113 = por %p111, %p112
      %p114 = scmp.ne.s32.totalorder %s106, %s108
      %p115 = scmp.eq.s32.totalorder %s23, 3
      %p116 = por %p114, %p115
      %p117 = scmp.ne.s32.totalorder %s108, %s109
      %p118 = scmp.eq.s32.totalorder %s23, 0
      %p119 = por %p117, %p118
      %p120 = scmp.ne.s32.totalorder %s108, %s109
      %p121 = scmp.eq.s32.totalorder %s24, 3
      %p122 = por %p120, %p121
      %p124 = scmp.ne.s32.totalorder %s109, %s123
      %p125 = scmp.eq.s32.totalorder %s24, 0
      %p126 = por %p124, %p125
      %s128 = sadd.s32 %s127, 1
      %p131 = scmp.eq.s32.totalorder %s18, 3
      %p132 = scmp.ne.s32.totalorder %s127, %s129
      %p133 = scmp.eq.s32.totalorder %s18, 0
      %p134 = por %p132, %p133
      %p135 = scmp.ne.s32.totalorder %s127, %s129
      %p136 = scmp.eq.s32.totalorder %s23, 3
      %p137 = por %p135, %p136
      %p138 = scmp.ne.s32.totalorder %s129, %s130
      %p139 = scmp.eq.s32.totalorder %s23, 0
      %p140 = por %p138, %p139
      %p141 = scmp.ne.s32.totalorder %s129, %s130
      %p142 = scmp.eq.s32.totalorder %s24, 3
      %p143 = por %p141, %p142
      %p145 = scmp.ne.s32.totalorder %s130, %s144
      %p146 = scmp.eq.s32.totalorder %s24, 0
      %p147 = por %p145, %p146
      %s148 = ssub.s32 %s25, %s37
      %s149 = ssub.s32 %s26, %s33
      %s150 = sor.u32 %s148, %s149
      %p151 = scmp.eq.s32.totalorder %s150, 0
      %s153 = sadd.s32 %s152, 1
      %s154 = scalar_select %p151, %s152, %s153
      %p157 = pneg %p151
      %p158 = scmp.eq.s32.totalorder %s18, 3
      %p159 = por %p157, %p158
      %p160 = scmp.ne.s32.totalorder %s152, %s155
      %p161 = scmp.eq.s32.totalorder %s18, 0
      %p162 = por %p160, %p161
      %p163 = scmp.ne.s32.totalorder %s152, %s155
      %p164 = scmp.eq.s32.totalorder %s23, 3
      %p165 = por %p163, %p164
      %p166 = scmp.ne.s32.totalorder %s155, %s156
      %p167 = scmp.eq.s32.totalorder %s23, 0
      %p168 = por %p166, %p167
      %p169 = scmp.ne.s32.totalorder %s155, %s156
      %p170 = scmp.eq.s32.totalorder %s24, 3
      %p171 = por %p169, %p170
      %p173 = scmp.ne.s32.totalorder %s156, %s172
      %p174 = scmp.eq.s32.totalorder %s24, 0
      %p175 = por %p173, %p174
      %s176 = ssub.s32 %s25, %s37
      %s177 = ssub.s32 %s26, %s33
      %s178 = sor.u32 %s176, %s177
      %p179 = scmp.eq.s32.totalorder %s178, 0
      %s181 = sadd.s32 %s180, 1
      %s182 = scalar_select %p179, %s180, %s181
      %p185 = pneg %p179
      %p186 = scmp.eq.s32.totalorder %s18, 3
      %p187 = por %p185, %p186
      %p188 = scmp.ne.s32.totalorder %s180, %s183
      %p189 = scmp.eq.s32.totalorder %s18, 0
      %p190 = por %p188, %p189
      %p191 = scmp.ne.s32.totalorder %s180, %s183
      %p192 = scmp.eq.s32.totalorder %s23, 3
      %p193 = por %p191, %p192
      %p194 = scmp.ne.s32.totalorder %s183, %s184
      %p195 = scmp.eq.s32.totalorder %s23, 0
      %p196 = por %p194, %p195
      %p197 = scmp.ne.s32.totalorder %s183, %s184
      %p198 = scmp.eq.s32.totalorder %s24, 3
      %p199 = por %p197, %p198
      %p201 = scmp.ne.s32.totalorder %s184, %s200
      %p202 = scmp.eq.s32.totalorder %s24, 0
      %p203 = por %p201, %p202
      %p204 = scmp.le.s32.totalorder 1, %s18
      %p205 = scmp.lt.s32.totalorder %s18, 5
      %p206 = pnand %p204, %p205
      %p207 = pneg %p206
      // Predicated region
      $region9: #{en_block2_forward.5} parent=5 // pred_check
        _
      $region10: #{en_block2_forward.5} parent=5 // pred_check_branch
        %209 = sbr.rel (%p206) target = $region12
      $region11: #{en_block2_forward.5} parent=5 // pred_region
        %s210 = ssub.s32 %s18, 1
        // Predicated region
        $region13: #{en_block2_forward.5} parent=11 // pred_check
          %p211 = pneg %p77
        $region14: #{en_block2_forward.5} parent=11 // pred_check_branch
          %213 = sbr.rel (%p211) target = $region16
        $region15: #{en_block2_forward.5} parent=11 // pred_region
          _
        $region16: #{en_block2_forward.5} parent=11 // pred_fallthru
          _
        // Predicated region
        $region17: #{en_block2_forward.5} parent=11 // pred_check
          %p214 = pneg %p98
        $region18: #{en_block2_forward.5} parent=11 // pred_check_branch
          %216 = sbr.rel (%p214) target = $region20
        $region19: #{en_block2_forward.5} parent=11 // pred_region
          _
        $region20: #{en_block2_forward.5} parent=11 // pred_fallthru
          _
        // Predicated region
        $region21: #{en_block2_forward.5} parent=11 // pred_check
          %p217 = pneg %p119
        $region22: #{en_block2_forward.5} parent=11 // pred_check_branch
          %219 = sbr.rel (%p217) target = $region24
        $region23: #{en_block2_forward.5} parent=11 // pred_region
          _
        $region24: #{en_block2_forward.5} parent=11 // pred_fallthru
          _
        // Predicated region
        $region25: #{en_block2_forward.5} parent=11 // pred_check
          %p220 = pneg %p140
        $region26: #{en_block2_forward.5} parent=11 // pred_check_branch
          %222 = sbr.rel (%p220) target = $region28
        $region27: #{en_block2_forward.5} parent=11 // pred_region
          _
        $region28: #{en_block2_forward.5} parent=11 // pred_fallthru
          _
      $region12: #{en_block2_forward.5} parent=5 // pred_fallthru
        _
      %p223 = scmp.lt.s32.totalorder %s18, 4
      // Predicated region
      $region29: #{en_block2_forward.5} parent=5 // pred_check
        %p224 = pneg %p223
      $region30: #{en_block2_forward.5} parent=5 // pred_check_branch
        %226 = sbr.rel (%p224) target = $region32
      $region31: #{en_block2_forward.5} parent=5 // pred_region
        // Predicated region
        $region33: #{en_block2_forward.5} parent=31 // pred_check
          %p227 = pneg %p50
        $region34: #{en_block2_forward.5} parent=31 // pred_check_branch
          %229 = sbr.rel (%p227) target = $region36
        $region35: #{en_block2_forward.5} parent=31 // pred_region
          %p230 = scmp.lt.s32.totalorder %s25, 1
          %s231 = scalar_select %p230, %s25, 1
          %s232 = smul.addr %s231, 64
          %s233 = smul.addr %s232, 8
          %s234 = scalar_lea.vmem %s0, %s233
        $region36: #{en_block2_forward.5} parent=31 // pred_fallthru
          _
        // Predicated region
        $region37: #{en_block2_forward.5} parent=31 // pred_check
          %p235 = pneg %p162
        $region38: #{en_block2_forward.5} parent=31 // pred_check_branch
          %237 = sbr.rel (%p235) target = $region40
        $region39: #{en_block2_forward.5} parent=31 // pred_region
          %s238 = sand.u32 %s152, 1
          %s239 = scalar_lea.sflag [#allocation4], %s238
          %s240 = sand.u32 %s152, 1
          %s241 = smul.addr %s240, 256
          %s242 = scalar_lea.vmem [#allocation3], %s241
          %s243 = smul.u32 4, %s26
          %245 = vsyncadd %s239, 0
          %s246 = smul.addr %s243, 8
          %s247 = smul.addr %s25, 64
          %s248 = sadd.s32 %s246, %s247
          %s249 = smul.addr %s248, 8
          %s250 = scalar_lea.hbm %s5, %s249
          %s251 = sshll.u32 %s250, 4
          %s252 = int_to_ptr.hbm [resolvable:$true] %s251
          %s253 = sshll.u32 %s242, 4
          %s254 = int_to_ptr.vmem [resolvable:$true] %s253
          %259 = dma.hbm_to_vmem [thread:$0]  %s252, 4096, %s254, %s239, 128, 128, 8
        $region40: #{en_block2_forward.5} parent=31 // pred_fallthru
          _
      $region32: #{en_block2_forward.5} parent=5 // pred_fallthru
        _
      %p260 = scmp.le.s32.totalorder 1, %s18
      %p261 = scmp.lt.s32.totalorder %s18, 5
      %p262 = pnand %p260, %p261
      %p263 = pneg %p262
      // Predicated region
      $region41: #{en_block2_forward.5} parent=5 // pred_check
        _
      $region42: #{en_block2_forward.5} parent=5 // pred_check_branch
        %265 = sbr.rel (%p262) target = $region44
      $region43: #{en_block2_forward.5} parent=5 // pred_region
        %s266 = ssub.s32 %s18, 1
        %s267 = sand.u32 %s155, 1
        %s268 = scalar_lea.sflag [#allocation4], %s267
        %s269 = sand.u32 %s155, 1
        %s270 = smul.addr %s269, 256
        %s271 = scalar_lea.vmem [#allocation3], %s270
        // Predicated region
        $region45: #{en_block2_forward.5} parent=43 // pred_check
          %p272 = pneg %p168
        $region46: #{en_block2_forward.5} parent=43 // pred_check_branch
          %274 = sbr.rel (%p272) target = $region48
        $region47: #{en_block2_forward.5} parent=43 // pred_region
          %276 = dma.done %s268, 4096
        $region48: #{en_block2_forward.5} parent=43 // pred_fallthru
          _
        %p277 = scmp.lt.s32.totalorder %s27, 1
        %s278 = scalar_select %p277, %s27, 1
        %s279 = smul.addr %s278, 64
        %s280 = smul.addr %s279, 8
        %s281 = scalar_lea.vmem %s0, %s280
        %p282 = pneg %p56
        %p283 = pneg %p53
        %p284 = pneg %p77
        %p285 = pneg %p74
        %p286 = pneg %p98
        %p287 = pneg %p95
        %p288 = pneg %p119
        %p289 = pneg %p116
        %p290 = pneg %p140
        %p291 = pneg %p137
        %s292 = sand.u32 %s155, 1
        %s293 = scalar_lea.sflag [#allocation4], %s292
        %s294 = sand.u32 %s155, 1
        %s295 = smul.addr %s294, 256
        %s296 = scalar_lea.vmem [#allocation3], %s295
        %p297 = pneg %p168
        %p298 = pneg %p165
        %p299 = pneg %p196
        %p300 = pneg %p193
        %s301 = sand.u32 %s183, 1
        %s302 = scalar_lea.sflag [#allocation5], %s301
        %s303 = sand.u32 %s183, 1
        %s304 = smul.addr %s303, 256
        %s305 = scalar_lea.vmem [#allocation6], %s304
        %p306 = scmp.lt.s32.totalorder %s27, 1
        %s307 = scalar_select %p306, %s27, 1
        %s308 = smul.addr %s307, 64
        %s309 = smul.addr %s308, 8
        %s310 = scalar_lea.vmem %s0, %s309
        %s311 = smul.u32 4, %s28
        %s312 = smul.u32 4, %s28
        %s314 = smul.u32 %s28, 4
        %v315 = vld [vmem:[%s1] sm:$0x1]
        %v316 = vld [vmem:[%s2] sm:$0x1]
        %v317 = vld [vmem:[%s4] sm:$0x1]
        %s318 = ssub.s32 %s314, 1
        %p319 = scmp.ge.s32.totalorder %s318, 0
        %p320 = scmp.lt.s32.totalorder %s318, 8
        %p321 = pnand %p319, %p320
        %p322 = pneg %p321
        %p323 = scmp.gt.s32.totalorder %s318, 0
        %s324 = scalar_select %p323, %s318, 0
        %p325 = scmp.lt.s32.totalorder %s324, 7
        %s326 = scalar_select %p325, %s324, 7
        %s327 = scalar_select %p322, 1, 0
        %v328 = vstv %s327
        %vm329 = vcmp.eq.s32.totalorder %v328, 1
        %v330 = vsel %vm329, %v315, 0.0
        %v331 = vsel %vm329, %v316, 0.0
        %s332 = smul.u32 %s326, 64
        %s333 = scalar_lea.vmem %s310, %s332
        %v334 = vld [vmem:[%s333] sm:$0xff]
        %v335 = vld [vmem:[%s333 + $0x8] sm:$0xff]
        %v336 = vld [vmem:[%s333 + $0x10] sm:$0xff]
        %v337 = vld [vmem:[%s333 + $0x18] sm:$0xff]
        %v338 = vld [vmem:[%s333 + $0x20] sm:$0xff]
        %v339 = vld [vmem:[%s333 + $0x28] sm:$0xff]
        %v340 = vld [vmem:[%s333 + $0x30] sm:$0xff]
        %v341 = vld [vmem:[%s333 + $0x38] sm:$0xff]
        %v343 = vperm.slane %v330, 0
        %v345 = vmul.f32 %v334, %v343
        %v346 = vmul.f32 %v335, %v343
        %v347 = vmul.f32 %v336, %v343
        %v348 = vmul.f32 %v337, %v343
        %v349 = vmul.f32 %v338, %v343
        %v350 = vmul.f32 %v339, %v343
        %v351 = vmul.f32 %v340, %v343
        %v352 = vmul.f32 %v341, %v343
        %v354 = vperm.slane %v331, 0
        %v356 = vadd.f32 %v345, %v354
        %v357 = vadd.f32 %v346, %v354
        %v358 = vadd.f32 %v347, %v354
        %v359 = vadd.f32 %v348, %v354
        %v360 = vadd.f32 %v349, %v354
        %v361 = vadd.f32 %v350, %v354
        %v362 = vadd.f32 %v351, %v354
        %v363 = vadd.f32 %v352, %v354
        %vm364 = vcmp.gt.f32.partialorder %v356, 0.0
        %vm365 = vcmp.gt.f32.partialorder %v357, 0.0
        %vm366 = vcmp.gt.f32.partialorder %v358, 0.0
        %vm367 = vcmp.gt.f32.partialorder %v359, 0.0
        %vm368 = vcmp.gt.f32.partialorder %v360, 0.0
        %vm369 = vcmp.gt.f32.partialorder %v361, 0.0
        %vm370 = vcmp.gt.f32.partialorder %v362, 0.0
        %vm371 = vcmp.gt.f32.partialorder %v363, 0.0
        %v372 = vmul.f32 %v356, 0.01
        %v373 = vmul.f32 %v357, 0.01
        %v374 = vmul.f32 %v358, 0.01
        %v375 = vmul.f32 %v359, 0.01
        %v376 = vmul.f32 %v360, 0.01
        %v377 = vmul.f32 %v361, 0.01
        %v378 = vmul.f32 %v362, 0.01
        %v379 = vmul.f32 %v363, 0.01
        %v380 = vsel %vm364, %v356, %v372
        %v381 = vsel %vm365, %v357, %v373
        %v382 = vsel %vm366, %v358, %v374
        %v383 = vsel %vm367, %v359, %v375
        %v384 = vsel %vm368, %v360, %v376
        %v385 = vsel %vm369, %v361, %v377
        %v386 = vsel %vm370, %v362, %v378
        %v387 = vsel %vm371, %v363, %v379
        %v396 = vrot.slane %v380, 7
        %v397 = vrot.slane %v381, 7
        %v398 = vrot.slane %v382, 7
        %v399 = vrot.slane %v383, 7
        %v400 = vrot.slane %v384, 7
        %v401 = vrot.slane %v385, 7
        %v402 = vrot.slane %v386, 7
        %v403 = vrot.slane %v387, 7
        %vm412 = vcmask 1040384
        %v413 = vsel %vm412, 0.0, %v396
        %v414 = vsel %vm412, 0.0, %v397
        %v415 = vsel %vm412, 0.0, %v398
        %v416 = vsel %vm412, 0.0, %v399
        %v417 = vsel %vm412, 0.0, %v400
        %v418 = vsel %vm412, 0.0, %v401
        %v419 = vsel %vm412, 0.0, %v402
        %v420 = vsel %vm412, 0.0, %v403
        %v421 = vsel %vm412, %v396, 0.0
        %v422 = vsel %vm412, %v397, 0.0
        %v423 = vsel %vm412, %v398, 0.0
        %v424 = vsel %vm412, %v399, 0.0
        %v425 = vsel %vm412, %v400, 0.0
        %v426 = vsel %vm412, %v401, 0.0
        %v427 = vsel %vm412, %v402, 0.0
        %v428 = vsel %vm412, %v403, 0.0
        %vm445 = vcmask 1046528
        %v446 = vrot.slane %v413, 1
        %v447 = vrot.slane %v421, 1
        %v448 = vsel %vm445, %v446, %v447
        %v449 = vrot.slane %v414, 1
        %v450 = vrot.slane %v422, 1
        %v451 = vsel %vm445, %v449, %v450
        %v452 = vrot.slane %v415, 1
        %v453 = vrot.slane %v423, 1
        %v454 = vsel %vm445, %v452, %v453
        %v455 = vrot.slane %v416, 1
        %v456 = vrot.slane %v424, 1
        %v457 = vsel %vm445, %v455, %v456
        %v458 = vrot.slane %v417, 1
        %v459 = vrot.slane %v425, 1
        %v460 = vsel %vm445, %v458, %v459
        %v461 = vrot.slane %v418, 1
        %v462 = vrot.slane %v426, 1
        %v463 = vsel %vm445, %v461, %v462
        %v464 = vrot.slane %v419, 1
        %v465 = vrot.slane %v427, 1
        %v466 = vsel %vm445, %v464, %v465
        %v467 = vrot.slane %v420, 1
        %v468 = vrot.slane %v428, 1
        %v469 = vsel %vm445, %v467, %v468
        %470 = vrot.lane.b32.xlu0 %v448, 16
        %v471 = vpop.permute.xlu0 %470
        %472 = vrot.lane.b32.xlu0 %v451, 16
        %v473 = vpop.permute.xlu0 %472
        %474 = vrot.lane.b32.xlu0 %v454, 16
        %v475 = vpop.permute.xlu0 %474
        %476 = vrot.lane.b32.xlu0 %v457, 16
        %v477 = vpop.permute.xlu0 %476
        %478 = vrot.lane.b32.xlu0 %v460, 16
        %v479 = vpop.permute.xlu0 %478
        %480 = vrot.lane.b32.xlu0 %v463, 16
        %v481 = vpop.permute.xlu0 %480
        %482 = vrot.lane.b32.xlu0 %v466, 16
        %v483 = vpop.permute.xlu0 %482
        %484 = vrot.lane.b32.xlu0 %v469, 16
        %v485 = vpop.permute.xlu0 %484
        %vm494 = vcmask 1045504
        %v495 = vrot.slane %v413, 2
        %v496 = vrot.slane %v421, 2
        %v497 = vsel %vm494, %v495, %v496
        %v498 = vrot.slane %v414, 2
        %v499 = vrot.slane %v422, 2
        %v500 = vsel %vm494, %v498, %v499
        %v501 = vrot.slane %v415, 2
        %v502 = vrot.slane %v423, 2
        %v503 = vsel %vm494, %v501, %v502
        %v504 = vrot.slane %v416, 2
        %v505 = vrot.slane %v424, 2
        %v506 = vsel %vm494, %v504, %v505
        %v507 = vrot.slane %v417, 2
        %v508 = vrot.slane %v425, 2
        %v509 = vsel %vm494, %v507, %v508
        %v510 = vrot.slane %v418, 2
        %v511 = vrot.slane %v426, 2
        %v512 = vsel %vm494, %v510, %v511
        %v513 = vrot.slane %v419, 2
        %v514 = vrot.slane %v427, 2
        %v515 = vsel %vm494, %v513, %v514
        %v516 = vrot.slane %v420, 2
        %v517 = vrot.slane %v428, 2
        %v518 = vsel %vm494, %v516, %v517
        %519 = vrot.lane.b32.xlu0 %v497, 32
        %v520 = vpop.permute.xlu0 %519
        %521 = vrot.lane.b32.xlu0 %v500, 32
        %v522 = vpop.permute.xlu0 %521
        %523 = vrot.lane.b32.xlu0 %v503, 32
        %v524 = vpop.permute.xlu0 %523
        %525 = vrot.lane.b32.xlu0 %v506, 32
        %v526 = vpop.permute.xlu0 %525
        %527 = vrot.lane.b32.xlu0 %v509, 32
        %v528 = vpop.permute.xlu0 %527
        %529 = vrot.lane.b32.xlu0 %v512, 32
        %v530 = vpop.permute.xlu0 %529
        %531 = vrot.lane.b32.xlu0 %v515, 32
        %v532 = vpop.permute.xlu0 %531
        %533 = vrot.lane.b32.xlu0 %v518, 32
        %v534 = vpop.permute.xlu0 %533
        %vm543 = vcmask 130048
        %v544 = vsel %vm543, %v413, %v471
        %v545 = vsel %vm543, %v414, %v473
        %v546 = vsel %vm543, %v415, %v475
        %v547 = vsel %vm543, %v416, %v477
        %v548 = vsel %vm543, %v417, %v479
        %v549 = vsel %vm543, %v418, %v481
        %v550 = vsel %vm543, %v419, %v483
        %v551 = vsel %vm543, %v420, %v485
        %vm552 = vcmask 261120
        %v553 = vsel %vm552, %v544, %v520
        %v554 = vsel %vm552, %v545, %v522
        %v555 = vsel %vm552, %v546, %v524
        %v556 = vsel %vm552, %v547, %v526
        %v557 = vsel %vm552, %v548, %v528
        %v558 = vsel %vm552, %v549, %v530
        %v559 = vsel %vm552, %v550, %v532
        %v560 = vsel %vm552, %v551, %v534
        %v561 = vpack.c.bf16 %v553, %v553
        %v562 = vpack.c.bf16 %v554, %v554
        %v563 = vpack.c.bf16 %v555, %v555
        %v564 = vpack.c.bf16 %v556, %v556
        %v565 = vpack.c.bf16 %v557, %v557
        %v566 = vpack.c.bf16 %v558, %v558
        %v567 = vpack.c.bf16 %v559, %v559
        %v568 = vpack.c.bf16 %v560, %v560
        %vm569 = vcmask 388096
        %570 = vst.msk [vmem:[#allocation2] sm:$0xf] %vm569, 0
        %571 = vst.msk [vmem:[#allocation2 + $0x4] sm:$0xf] %vm569, %v561
        %572 = vst.msk [vmem:[#allocation2 + $0x8] sm:$0xf] %vm569, %v562
        %573 = vst.msk [vmem:[#allocation2 + $0xc] sm:$0xf] %vm569, %v563
        %574 = vst.msk [vmem:[#allocation2 + $0x10] sm:$0xf] %vm569, %v564
        %575 = vst.msk [vmem:[#allocation2 + $0x14] sm:$0xf] %vm569, %v565
        %576 = vst.msk [vmem:[#allocation2 + $0x18] sm:$0xf] %vm569, %v566
        %577 = vst.msk [vmem:[#allocation2 + $0x1c] sm:$0xf] %vm569, %v567
        %578 = vst.msk [vmem:[#allocation2 + $0x20] sm:$0xf] %vm569, %v568
        %579 = vst.msk [vmem:[#allocation2 + $0x24] sm:$0xf] %vm569, 0
        %p580 = scmp.ge.s32.totalorder %s314, 0
        %p581 = scmp.lt.s32.totalorder %s314, 8
        %p582 = pnand %p580, %p581
        %p583 = pneg %p582
        %p584 = scmp.gt.s32.totalorder %s314, 0
        %s585 = scalar_select %p584, %s314, 0
        %p586 = scmp.lt.s32.totalorder %s585, 7
        %s587 = scalar_select %p586, %s585, 7
        %s588 = scalar_select %p583, 1, 0
        %v589 = vstv %s588
        %vm590 = vcmp.eq.s32.totalorder %v589, 1
        %v591 = vsel %vm590, %v315, 0.0
        %v592 = vsel %vm590, %v316, 0.0
        %s593 = smul.u32 %s587, 64
        %s594 = scalar_lea.vmem %s310, %s593
        %v595 = vld [vmem:[%s594] sm:$0xff]
        %v596 = vld [vmem:[%s594 + $0x8] sm:$0xff]
        %v597 = vld [vmem:[%s594 + $0x10] sm:$0xff]
        %v598 = vld [vmem:[%s594 + $0x18] sm:$0xff]
        %v599 = vld [vmem:[%s594 + $0x20] sm:$0xff]
        %v600 = vld [vmem:[%s594 + $0x28] sm:$0xff]
        %v601 = vld [vmem:[%s594 + $0x30] sm:$0xff]
        %v602 = vld [vmem:[%s594 + $0x38] sm:$0xff]
        %v604 = vperm.slane %v591, 0
        %v606 = vmul.f32 %v595, %v604
        %v607 = vmul.f32 %v596, %v604
        %v608 = vmul.f32 %v597, %v604
        %v609 = vmul.f32 %v598, %v604
        %v610 = vmul.f32 %v599, %v604
        %v611 = vmul.f32 %v600, %v604
        %v612 = vmul.f32 %v601, %v604
        %v613 = vmul.f32 %v602, %v604
        %v615 = vperm.slane %v592, 0
        %v617 = vadd.f32 %v606, %v615
        %v618 = vadd.f32 %v607, %v615
        %v619 = vadd.f32 %v608, %v615
        %v620 = vadd.f32 %v609, %v615
        %v621 = vadd.f32 %v610, %v615
        %v622 = vadd.f32 %v611, %v615
        %v623 = vadd.f32 %v612, %v615
        %v624 = vadd.f32 %v613, %v615
        %vm625 = vcmp.gt.f32.partialorder %v617, 0.0
        %vm626 = vcmp.gt.f32.partialorder %v618, 0.0
        %vm627 = vcmp.gt.f32.partialorder %v619, 0.0
        %vm628 = vcmp.gt.f32.partialorder %v620, 0.0
        %vm629 = vcmp.gt.f32.partialorder %v621, 0.0
        %vm630 = vcmp.gt.f32.partialorder %v622, 0.0
        %vm631 = vcmp.gt.f32.partialorder %v623, 0.0
        %vm632 = vcmp.gt.f32.partialorder %v624, 0.0
        %v633 = vmul.f32 %v617, 0.01
        %v634 = vmul.f32 %v618, 0.01
        %v635 = vmul.f32 %v619, 0.01
        %v636 = vmul.f32 %v620, 0.01
        %v637 = vmul.f32 %v621, 0.01
        %v638 = vmul.f32 %v622, 0.01
        %v639 = vmul.f32 %v623, 0.01
        %v640 = vmul.f32 %v624, 0.01
        %v641 = vsel %vm625, %v617, %v633
        %v642 = vsel %vm626, %v618, %v634
        %v643 = vsel %vm627, %v619, %v635
        %v644 = vsel %vm628, %v620, %v636
        %v645 = vsel %vm629, %v621, %v637
        %v646 = vsel %vm630, %v622, %v638
        %v647 = vsel %vm631, %v623, %v639
        %v648 = vsel %vm632, %v624, %v640
        %v657 = vrot.slane %v641, 7
        %v658 = vrot.slane %v642, 7
        %v659 = vrot.slane %v643, 7
        %v660 = vrot.slane %v644, 7
        %v661 = vrot.slane %v645, 7
        %v662 = vrot.slane %v646, 7
        %v663 = vrot.slane %v647, 7
        %v664 = vrot.slane %v648, 7
        %v673 = vsel %vm412, 0.0, %v657
        %v674 = vsel %vm412, 0.0, %v658
        %v675 = vsel %vm412, 0.0, %v659
        %v676 = vsel %vm412, 0.0, %v660
        %v677 = vsel %vm412, 0.0, %v661
        %v678 = vsel %vm412, 0.0, %v662
        %v679 = vsel %vm412, 0.0, %v663
        %v680 = vsel %vm412, 0.0, %v664
        %v681 = vsel %vm412, %v657, 0.0
        %v682 = vsel %vm412, %v658, 0.0
        %v683 = vsel %vm412, %v659, 0.0
        %v684 = vsel %vm412, %v660, 0.0
        %v685 = vsel %vm412, %v661, 0.0
        %v686 = vsel %vm412, %v662, 0.0
        %v687 = vsel %vm412, %v663, 0.0
        %v688 = vsel %vm412, %v664, 0.0
        %v705 = vrot.slane %v673, 1
        %v706 = vrot.slane %v681, 1
        %v707 = vsel %vm445, %v705, %v706
        %v708 = vrot.slane %v674, 1
        %v709 = vrot.slane %v682, 1
        %v710 = vsel %vm445, %v708, %v709
        %v711 = vrot.slane %v675, 1
        %v712 = vrot.slane %v683, 1
        %v713 = vsel %vm445, %v711, %v712
        %v714 = vrot.slane %v676, 1
        %v715 = vrot.slane %v684, 1
        %v716 = vsel %vm445, %v714, %v715
        %v717 = vrot.slane %v677, 1
        %v718 = vrot.slane %v685, 1
        %v719 = vsel %vm445, %v717, %v718
        %v720 = vrot.slane %v678, 1
        %v721 = vrot.slane %v686, 1
        %v722 = vsel %vm445, %v720, %v721
        %v723 = vrot.slane %v679, 1
        %v724 = vrot.slane %v687, 1
        %v725 = vsel %vm445, %v723, %v724
        %v726 = vrot.slane %v680, 1
        %v727 = vrot.slane %v688, 1
        %v728 = vsel %vm445, %v726, %v727
        %729 = vrot.lane.b32.xlu0 %v707, 16
        %v730 = vpop.permute.xlu0 %729
        %731 = vrot.lane.b32.xlu0 %v710, 16
        %v732 = vpop.permute.xlu0 %731
        %733 = vrot.lane.b32.xlu0 %v713, 16
        %v734 = vpop.permute.xlu0 %733
        %735 = vrot.lane.b32.xlu0 %v716, 16
        %v736 = vpop.permute.xlu0 %735
        %737 = vrot.lane.b32.xlu0 %v719, 16
        %v738 = vpop.permute.xlu0 %737
        %739 = vrot.lane.b32.xlu0 %v722, 16
        %v740 = vpop.permute.xlu0 %739
        %741 = vrot.lane.b32.xlu0 %v725, 16
        %v742 = vpop.permute.xlu0 %741
        %743 = vrot.lane.b32.xlu0 %v728, 16
        %v744 = vpop.permute.xlu0 %743
        %v753 = vrot.slane %v673, 2
        %v754 = vrot.slane %v681, 2
        %v755 = vsel %vm494, %v753, %v754
        %v756 = vrot.slane %v674, 2
        %v757 = vrot.slane %v682, 2
        %v758 = vsel %vm494, %v756, %v757
        %v759 = vrot.slane %v675, 2
        %v760 = vrot.slane %v683, 2
        %v761 = vsel %vm494, %v759, %v760
        %v762 = vrot.slane %v676, 2
        %v763 = vrot.slane %v684, 2
        %v764 = vsel %vm494, %v762, %v763
        %v765 = vrot.slane %v677, 2
        %v766 = vrot.slane %v685, 2
        %v767 = vsel %vm494, %v765, %v766
        %v768 = vrot.slane %v678, 2
        %v769 = vrot.slane %v686, 2
        %v770 = vsel %vm494, %v768, %v769
        %v771 = vrot.slane %v679, 2
        %v772 = vrot.slane %v687, 2
        %v773 = vsel %vm494, %v771, %v772
        %v774 = vrot.slane %v680, 2
        %v775 = vrot.slane %v688, 2
        %v776 = vsel %vm494, %v774, %v775
        %777 = vrot.lane.b32.xlu0 %v755, 32
        %v778 = vpop.permute.xlu0 %777
        %779 = vrot.lane.b32.xlu0 %v758, 32
        %v780 = vpop.permute.xlu0 %779
        %781 = vrot.lane.b32.xlu0 %v761, 32
        %v782 = vpop.permute.xlu0 %781
        %783 = vrot.lane.b32.xlu0 %v764, 32
        %v784 = vpop.permute.xlu0 %783
        %785 = vrot.lane.b32.xlu0 %v767, 32
        %v786 = vpop.permute.xlu0 %785
        %787 = vrot.lane.b32.xlu0 %v770, 32
        %v788 = vpop.permute.xlu0 %787
        %789 = vrot.lane.b32.xlu0 %v773, 32
        %v790 = vpop.permute.xlu0 %789
        %791 = vrot.lane.b32.xlu0 %v776, 32
        %v792 = vpop.permute.xlu0 %791
        %v801 = vsel %vm543, %v673, %v730
        %v802 = vsel %vm543, %v674, %v732
        %v803 = vsel %vm543, %v675, %v734
        %v804 = vsel %vm543, %v676, %v736
        %v805 = vsel %vm543, %v677, %v738
        %v806 = vsel %vm543, %v678, %v740
        %v807 = vsel %vm543, %v679, %v742
        %v808 = vsel %vm543, %v680, %v744
        %v809 = vsel %vm552, %v801, %v778
        %v810 = vsel %vm552, %v802, %v780
        %v811 = vsel %vm552, %v803, %v782
        %v812 = vsel %vm552, %v804, %v784
        %v813 = vsel %vm552, %v805, %v786
        %v814 = vsel %vm552, %v806, %v788
        %v815 = vsel %vm552, %v807, %v790
        %v816 = vsel %vm552, %v808, %v792
        %v817 = vpack.c.bf16 %v809, %v809
        %v818 = vpack.c.bf16 %v810, %v810
        %v819 = vpack.c.bf16 %v811, %v811
        %v820 = vpack.c.bf16 %v812, %v812
        %v821 = vpack.c.bf16 %v813, %v813
        %v822 = vpack.c.bf16 %v814, %v814
        %v823 = vpack.c.bf16 %v815, %v815
        %v824 = vpack.c.bf16 %v816, %v816
        %s825 = scalar_lea.vmem [#allocation2], 40
        %826 = vst.msk [vmem:[%s825] sm:$0xf] %vm569, 0
        %827 = vst.msk [vmem:[%s825 + $0x4] sm:$0xf] %vm569, %v817
        %828 = vst.msk [vmem:[%s825 + $0x8] sm:$0xf] %vm569, %v818
        %829 = vst.msk [vmem:[%s825 + $0xc] sm:$0xf] %vm569, %v819
        %830 = vst.msk [vmem:[%s825 + $0x10] sm:$0xf] %vm569, %v820
        %831 = vst.msk [vmem:[%s825 + $0x14] sm:$0xf] %vm569, %v821
        %832 = vst.msk [vmem:[%s825 + $0x18] sm:$0xf] %vm569, %v822
        %833 = vst.msk [vmem:[%s825 + $0x1c] sm:$0xf] %vm569, %v823
        %834 = vst.msk [vmem:[%s825 + $0x20] sm:$0xf] %vm569, %v824
        %835 = vst.msk [vmem:[%s825 + $0x24] sm:$0xf] %vm569, 0
        loop: start=0, step=1, limit=4
        $region49: #{en_block2_forward.5} parent=43 // loop_pre_header
          _
        $region50: #{en_block2_forward.5} parent=43 // loop_header
          %s837 = sphi 0, %s841
          %p838 = scmp.ge.s32.totalorder %s837, 4
        $region51: #{en_block2_forward.5} parent=43 // loop_header_branch
          %840 = sbr.rel (%p838) target = $region55
        $region52: #{en_block2_forward.5} parent=43 // loop_body
          %s842 = sadd.s32 %s837, 2
          %s843 = sand.u32 %s842, 3
          %s844 = sadd.s32 %s314, %s837
          %s845 = sadd.s32 %s844, 1
          %p846 = scmp.ge.s32.totalorder %s845, 0
          %p847 = scmp.lt.s32.totalorder %s845, 8
          %p848 = pnand %p846, %p847
          %p849 = pneg %p848
          %p850 = scmp.gt.s32.totalorder %s845, 0
          %s851 = scalar_select %p850, %s845, 0
          %p852 = scmp.lt.s32.totalorder %s851, 7
          %s853 = scalar_select %p852, %s851, 7
          %s854 = scalar_select %p849, 1, 0
          %v855 = vstv %s854
          %vm856 = vcmp.eq.s32.totalorder %v855, 1
          %v857 = vsel %vm856, %v315, 0.0
          %v858 = vsel %vm856, %v316, 0.0
          %s859 = smul.u32 %s853, 64
          %s860 = scalar_lea.vmem %s310, %s859
          %v861 = vld [vmem:[%s860] sm:$0xff]
          %v862 = vld [vmem:[%s860 + $0x8] sm:$0xff]
          %v863 = vld [vmem:[%s860 + $0x10] sm:$0xff]
          %v864 = vld [vmem:[%s860 + $0x18] sm:$0xff]
          %v865 = vld [vmem:[%s860 + $0x20] sm:$0xff]
          %v866 = vld [vmem:[%s860 + $0x28] sm:$0xff]
          %v867 = vld [vmem:[%s860 + $0x30] sm:$0xff]
          %v868 = vld [vmem:[%s860 + $0x38] sm:$0xff]
          %v870 = vperm.slane %v857, 0
          %v872 = vmul.f32 %v861, %v870
          %v873 = vmul.f32 %v862, %v870
          %v874 = vmul.f32 %v863, %v870
          %v875 = vmul.f32 %v864, %v870
          %v876 = vmul.f32 %v865, %v870
          %v877 = vmul.f32 %v866, %v870
          %v878 = vmul.f32 %v867, %v870
          %v879 = vmul.f32 %v868, %v870
          %v881 = vperm.slane %v858, 0
          %v883 = vadd.f32 %v872, %v881
          %v884 = vadd.f32 %v873, %v881
          %v885 = vadd.f32 %v874, %v881
          %v886 = vadd.f32 %v875, %v881
          %v887 = vadd.f32 %v876, %v881
          %v888 = vadd.f32 %v877, %v881
          %v889 = vadd.f32 %v878, %v881
          %v890 = vadd.f32 %v879, %v881
          %vm891 = vcmp.gt.f32.partialorder %v883, 0.0
          %vm892 = vcmp.gt.f32.partialorder %v884, 0.0
          %vm893 = vcmp.gt.f32.partialorder %v885, 0.0
          %vm894 = vcmp.gt.f32.partialorder %v886, 0.0
          %vm895 = vcmp.gt.f32.partialorder %v887, 0.0
          %vm896 = vcmp.gt.f32.partialorder %v888, 0.0
          %vm897 = vcmp.gt.f32.partialorder %v889, 0.0
          %vm898 = vcmp.gt.f32.partialorder %v890, 0.0
          %v899 = vmul.f32 %v883, 0.01
          %v900 = vmul.f32 %v884, 0.01
          %v901 = vmul.f32 %v885, 0.01
          %v902 = vmul.f32 %v886, 0.01
          %v903 = vmul.f32 %v887, 0.01
          %v904 = vmul.f32 %v888, 0.01
          %v905 = vmul.f32 %v889, 0.01
          %v906 = vmul.f32 %v890, 0.01
          %v907 = vsel %vm891, %v883, %v899
          %v908 = vsel %vm892, %v884, %v900
          %v909 = vsel %vm893, %v885, %v901
          %v910 = vsel %vm894, %v886, %v902
          %v911 = vsel %vm895, %v887, %v903
          %v912 = vsel %vm896, %v888, %v904
          %v913 = vsel %vm897, %v889, %v905
          %v914 = vsel %vm898, %v890, %v906
          %v923 = vrot.slane %v907, 7
          %v924 = vrot.slane %v908, 7
          %v925 = vrot.slane %v909, 7
          %v926 = vrot.slane %v910, 7
          %v927 = vrot.slane %v911, 7
          %v928 = vrot.slane %v912, 7
          %v929 = vrot.slane %v913, 7
          %v930 = vrot.slane %v914, 7
          %v939 = vsel %vm412, 0.0, %v923
          %v940 = vsel %vm412, 0.0, %v924
          %v941 = vsel %vm412, 0.0, %v925
          %v942 = vsel %vm412, 0.0, %v926
          %v943 = vsel %vm412, 0.0, %v927
          %v944 = vsel %vm412, 0.0, %v928
          %v945 = vsel %vm412, 0.0, %v929
          %v946 = vsel %vm412, 0.0, %v930
          %v947 = vsel %vm412, %v923, 0.0
          %v948 = vsel %vm412, %v924, 0.0
          %v949 = vsel %vm412, %v925, 0.0
          %v950 = vsel %vm412, %v926, 0.0
          %v951 = vsel %vm412, %v927, 0.0
          %v952 = vsel %vm412, %v928, 0.0
          %v953 = vsel %vm412, %v929, 0.0
          %v954 = vsel %vm412, %v930, 0.0
          %v971 = vrot.slane %v939, 1
          %v972 = vrot.slane %v947, 1
          %v973 = vsel %vm445, %v971, %v972
          %v974 = vrot.slane %v940, 1
          %v975 = vrot.slane %v948, 1
          %v976 = vsel %vm445, %v974, %v975
          %v977 = vrot.slane %v941, 1
          %v978 = vrot.slane %v949, 1
          %v979 = vsel %vm445, %v977, %v978
          %v980 = vrot.slane %v942, 1
          %v981 = vrot.slane %v950, 1
          %v982 = vsel %vm445, %v980, %v981
          %v983 = vrot.slane %v943, 1
          %v984 = vrot.slane %v951, 1
          %v985 = vsel %vm445, %v983, %v984
          %v986 = vrot.slane %v944, 1
          %v987 = vrot.slane %v952, 1
          %v988 = vsel %vm445, %v986, %v987
          %v989 = vrot.slane %v945, 1
          %v990 = vrot.slane %v953, 1
          %v991 = vsel %vm445, %v989, %v990
          %v992 = vrot.slane %v946, 1
          %v993 = vrot.slane %v954, 1
          %v994 = vsel %vm445, %v992, %v993
          %995 = vrot.lane.b32.xlu0 %v973, 16
          %v996 = vpop.permute.xlu0 %995
          %997 = vrot.lane.b32.xlu0 %v976, 16
          %v998 = vpop.permute.xlu0 %997
          %999 = vrot.lane.b32.xlu0 %v979, 16
          %v1000 = vpop.permute.xlu0 %999
          %1001 = vrot.lane.b32.xlu0 %v982, 16
          %v1002 = vpop.permute.xlu0 %1001
          %1003 = vrot.lane.b32.xlu0 %v985, 16
          %v1004 = vpop.permute.xlu0 %1003
          %1005 = vrot.lane.b32.xlu0 %v988, 16
          %v1006 = vpop.permute.xlu0 %1005
          %1007 = vrot.lane.b32.xlu0 %v991, 16
          %v1008 = vpop.permute.xlu0 %1007
          %1009 = vrot.lane.b32.xlu0 %v994, 16
          %v1010 = vpop.permute.xlu0 %1009
          %v1019 = vrot.slane %v939, 2
          %v1020 = vrot.slane %v947, 2
          %v1021 = vsel %vm494, %v1019, %v1020
          %v1022 = vrot.slane %v940, 2
          %v1023 = vrot.slane %v948, 2
          %v1024 = vsel %vm494, %v1022, %v1023
          %v1025 = vrot.slane %v941, 2
          %v1026 = vrot.slane %v949, 2
          %v1027 = vsel %vm494, %v1025, %v1026
          %v1028 = vrot.slane %v942, 2
          %v1029 = vrot.slane %v950, 2
          %v1030 = vsel %vm494, %v1028, %v1029
          %v1031 = vrot.slane %v943, 2
          %v1032 = vrot.slane %v951, 2
          %v1033 = vsel %vm494, %v1031, %v1032
          %v1034 = vrot.slane %v944, 2
          %v1035 = vrot.slane %v952, 2
          %v1036 = vsel %vm494, %v1034, %v1035
          %v1037 = vrot.slane %v945, 2
          %v1038 = vrot.slane %v953, 2
          %v1039 = vsel %vm494, %v1037, %v1038
          %v1040 = vrot.slane %v946, 2
          %v1041 = vrot.slane %v954, 2
          %v1042 = vsel %vm494, %v1040, %v1041
          %1043 = vrot.lane.b32.xlu0 %v1021, 32
          %v1044 = vpop.permute.xlu0 %1043
          %1045 = vrot.lane.b32.xlu0 %v1024, 32
          %v1046 = vpop.permute.xlu0 %1045
          %1047 = vrot.lane.b32.xlu0 %v1027, 32
          %v1048 = vpop.permute.xlu0 %1047
          %1049 = vrot.lane.b32.xlu0 %v1030, 32
          %v1050 = vpop.permute.xlu0 %1049
          %1051 = vrot.lane.b32.xlu0 %v1033, 32
          %v1052 = vpop.permute.xlu0 %1051
          %1053 = vrot.lane.b32.xlu0 %v1036, 32
          %v1054 = vpop.permute.xlu0 %1053
          %1055 = vrot.lane.b32.xlu0 %v1039, 32
          %v1056 = vpop.permute.xlu0 %1055
          %1057 = vrot.lane.b32.xlu0 %v1042, 32
          %v1058 = vpop.permute.xlu0 %1057
          %v1067 = vsel %vm543, %v939, %v996
          %v1068 = vsel %vm543, %v940, %v998
          %v1069 = vsel %vm543, %v941, %v1000
          %v1070 = vsel %vm543, %v942, %v1002
          %v1071 = vsel %vm543, %v943, %v1004
          %v1072 = vsel %vm543, %v944, %v1006
          %v1073 = vsel %vm543, %v945, %v1008
          %v1074 = vsel %vm543, %v946, %v1010
          %v1075 = vsel %vm552, %v1067, %v1044
          %v1076 = vsel %vm552, %v1068, %v1046
          %v1077 = vsel %vm552, %v1069, %v1048
          %v1078 = vsel %vm552, %v1070, %v1050
          %v1079 = vsel %vm552, %v1071, %v1052
          %v1080 = vsel %vm552, %v1072, %v1054
          %v1081 = vsel %vm552, %v1073, %v1056
          %v1082 = vsel %vm552, %v1074, %v1058
          %v1083 = vpack.c.bf16 %v1075, %v1075
          %v1084 = vpack.c.bf16 %v1076, %v1076
          %v1085 = vpack.c.bf16 %v1077, %v1077
          %v1086 = vpack.c.bf16 %v1078, %v1078
          %v1087 = vpack.c.bf16 %v1079, %v1079
          %v1088 = vpack.c.bf16 %v1080, %v1080
          %v1089 = vpack.c.bf16 %v1081, %v1081
          %v1090 = vpack.c.bf16 %v1082, %v1082
          %s1091 = smul.u32 %s843, 10
          %s1092 = smul.addr %s1091, 4
          %s1093 = scalar_lea.vmem [#allocation2], %s1092
          %1094 = vst.msk [vmem:[%s1093] sm:$0xf] %vm569, 0
          %1095 = vst.msk [vmem:[%s1093 + $0x4] sm:$0xf] %vm569, %v1083
          %1096 = vst.msk [vmem:[%s1093 + $0x8] sm:$0xf] %vm569, %v1084
          %1097 = vst.msk [vmem:[%s1093 + $0xc] sm:$0xf] %vm569, %v1085
          %1098 = vst.msk [vmem:[%s1093 + $0x10] sm:$0xf] %vm569, %v1086
          %1099 = vst.msk [vmem:[%s1093 + $0x14] sm:$0xf] %vm569, %v1087
          %1100 = vst.msk [vmem:[%s1093 + $0x18] sm:$0xf] %vm569, %v1088
          %1101 = vst.msk [vmem:[%s1093 + $0x1c] sm:$0xf] %vm569, %v1089
          %1102 = vst.msk [vmem:[%s1093 + $0x20] sm:$0xf] %vm569, %v1090
          %1103 = vst.msk [vmem:[%s1093 + $0x24] sm:$0xf] %vm569, 0
          %s1104 = sand.u32 %s837, 3
          %s1105 = smul.u32 %s1104, 10
          %s1106 = smul.addr %s1105, 4
          %s1107 = scalar_lea.vmem [#allocation2], %s1106
          %v1108 = vld [vmem:[%s1107] sm:$0xf]
          %v1109 = vld [vmem:[%s1107 + $0x4] sm:$0xf]
          %v1110 = vld [vmem:[%s1107 + $0x8] sm:$0xf]
          %v1111 = vld [vmem:[%s1107 + $0xc] sm:$0xf]
          %v1112 = vld [vmem:[%s1107 + $0x10] sm:$0xf]
          %v1113 = vld [vmem:[%s1107 + $0x14] sm:$0xf]
          %v1114 = vld [vmem:[%s1107 + $0x18] sm:$0xf]
          %v1115 = vld [vmem:[%s1107 + $0x1c] sm:$0xf]
          %v1116 = vld [vmem:[%s3] sm:$0xf]
          %v1117 = vld [vmem:[%s3 + $0x4] sm:$0xf]
          %v1118 = vld [vmem:[%s3 + $0x8] sm:$0xf]
          %v1119 = vld [vmem:[%s3 + $0xc] sm:$0xf]
          %v1120 = vld [vmem:[%s3 + $0x10] sm:$0xf]
          %v1121 = vld [vmem:[%s3 + $0x14] sm:$0xf]
          %s1122 = sadd.s32 1, %s1105
          %s1123 = smul.addr %s1122, 4
          %s1124 = scalar_lea.vmem [#allocation2], %s1123
          %v1125 = vld [vmem:[%s1124] sm:$0xf]
          %v1126 = vld [vmem:[%s1124 + $0x4] sm:$0xf]
          %v1127 = vld [vmem:[%s1124 + $0x8] sm:$0xf]
          %v1128 = vld [vmem:[%s1124 + $0xc] sm:$0xf]
          %v1129 = vld [vmem:[%s1124 + $0x10] sm:$0xf]
          %v1130 = vld [vmem:[%s1124 + $0x14] sm:$0xf]
          %v1131 = vld [vmem:[%s1124 + $0x18] sm:$0xf]
          %v1132 = vld [vmem:[%s1124 + $0x1c] sm:$0xf]
          %s1133 = scalar_lea.vmem %s3, 24
          %v1134 = vld [vmem:[%s1133] sm:$0xf]
          %v1135 = vld [vmem:[%s1133 + $0x4] sm:$0xf]
          %v1136 = vld [vmem:[%s1133 + $0x8] sm:$0xf]
          %v1137 = vld [vmem:[%s1133 + $0xc] sm:$0xf]
          %v1138 = vld [vmem:[%s1133 + $0x10] sm:$0xf]
          %v1139 = vld [vmem:[%s1133 + $0x14] sm:$0xf]
          %v1148 = vunpack.c.l.b16 %v1125
          %v1149 = vunpack.c.l.b16 %v1126
          %v1150 = vunpack.c.l.b16 %v1127
          %v1151 = vunpack.c.l.b16 %v1128
          %v1152 = vunpack.c.l.b16 %v1129
          %v1153 = vunpack.c.l.b16 %v1130
          %v1154 = vunpack.c.l.b16 %v1131
          %v1155 = vunpack.c.l.b16 %v1132
          %v1156 = vpack.c.b16 %v1149, %v1148
          %v1157 = vpack.c.b16 %v1151, %v1150
          %v1158 = vpack.c.b16 %v1153, %v1152
          %v1159 = vpack.c.b16 %v1155, %v1154
          %v1166 = vunpack.c.l.b16 %v1134
          %v1167 = vunpack.c.l.b16 %v1135
          %v1168 = vunpack.c.l.b16 %v1136
          %v1169 = vunpack.c.l.b16 %v1137
          %v1170 = vunpack.c.l.b16 %v1138
          %v1171 = vunpack.c.l.b16 %v1139
          %v1172 = vpack.c.b16 %v1167, %v1166
          %v1173 = vpack.c.b16 %v1169, %v1168
          %v1174 = vpack.c.b16 %v1171, %v1170
          %vm1178 = vcmask 392192
          %v1180 = vsel %vm1178, %v1156, 0
          %v1183 = vsel %vm1178, %v1157, 0
          %v1186 = vsel %vm1178, %v1158, 0
          %v1189 = vsel %vm1178, %v1159, 0
          %1191 = vmatpush.bf16.msra.mxu0 0
          %1192 = vmatpush.bf16.msra.mxu0 0
          %1193 = vmatpush.bf16.msra.mxu0 0
          %1194 = vmatpush.bf16.msra.mxu0 0
          %1195 = vmatpush.bf16.msra.mxu0 0
          %1196 = vmatpush.bf16.msra.mxu0 %v1174
          %1197 = vmatpush.bf16.msra.mxu0 %v1173
          %1198 = vmatpush.bf16.msra.mxu0 %v1172
          %1199 = vmatmul.bf16.gmra.mxu0 %v1180
          %v1200 = vpop.f32.mrf.mxu0
          %v1201 = vadd.f32 0.0, %v1200
          %v1202 = vpop.f32.mrf.mxu0
          %v1203 = vadd.f32 0.0, %v1202
          %1204 = vmatmul.bf16.gmra.mxu0 %v1183
          %v1205 = vpop.f32.mrf.mxu0
          %v1206 = vadd.f32 0.0, %v1205
          %v1207 = vpop.f32.mrf.mxu0
          %v1208 = vadd.f32 0.0, %v1207
          %1209 = vmatmul.bf16.gmra.mxu0 %v1186
          %v1210 = vpop.f32.mrf.mxu0
          %v1211 = vadd.f32 0.0, %v1210
          %v1212 = vpop.f32.mrf.mxu0
          %v1213 = vadd.f32 0.0, %v1212
          %1214 = vmatmul.bf16.gmra.mxu0 %v1189
          %v1215 = vpop.f32.mrf.mxu0
          %v1216 = vadd.f32 0.0, %v1215
          %v1217 = vpop.f32.mrf.mxu0
          %v1218 = vadd.f32 0.0, %v1217
          %1219 = vdwg.mxu0
          %v1228 = vunpack.c.l.b16 %v1108
          %v1229 = vunpack.c.l.b16 %v1109
          %v1230 = vunpack.c.l.b16 %v1110
          %v1231 = vunpack.c.l.b16 %v1111
          %v1232 = vunpack.c.l.b16 %v1112
          %v1233 = vunpack.c.l.b16 %v1113
          %v1234 = vunpack.c.l.b16 %v1114
          %v1235 = vunpack.c.l.b16 %v1115
          %v1236 = vpack.c.b16 %v1229, %v1228
          %v1237 = vpack.c.b16 %v1231, %v1230
          %v1238 = vpack.c.b16 %v1233, %v1232
          %v1239 = vpack.c.b16 %v1235, %v1234
          %v1246 = vunpack.c.l.b16 %v1116
          %v1247 = vunpack.c.l.b16 %v1117
          %v1248 = vunpack.c.l.b16 %v1118
          %v1249 = vunpack.c.l.b16 %v1119
          %v1250 = vunpack.c.l.b16 %v1120
          %v1251 = vunpack.c.l.b16 %v1121
          %v1252 = vpack.c.b16 %v1247, %v1246
          %v1253 = vpack.c.b16 %v1249, %v1248
          %v1254 = vpack.c.b16 %v1251, %v1250
          %v1259 = vsel %vm1178, %v1236, 0
          %v1262 = vsel %vm1178, %v1237, 0
          %v1265 = vsel %vm1178, %v1238, 0
          %v1268 = vsel %vm1178, %v1239, 0
          %1270 = vmatpush.bf16.msra.mxu0 0
          %1271 = vmatpush.bf16.msra.mxu0 0
          %1272 = vmatpush.bf16.msra.mxu0 0
          %1273 = vmatpush.bf16.msra.mxu0 0
          %1274 = vmatpush.bf16.msra.mxu0 0
          %1275 = vmatpush.bf16.msra.mxu0 %v1254
          %1276 = vmatpush.bf16.msra.mxu0 %v1253
          %1277 = vmatpush.bf16.msra.mxu0 %v1252
          %1278 = vmatmul.bf16.gmra.mxu0 %v1259
          %v1279 = vpop.f32.mrf.mxu0
          %v1280 = vadd.f32 %v1201, %v1279
          %v1281 = vpop.f32.mrf.mxu0
          %v1282 = vadd.f32 %v1203, %v1281
          %1283 = vmatmul.bf16.gmra.mxu0 %v1262
          %v1284 = vpop.f32.mrf.mxu0
          %v1285 = vadd.f32 %v1206, %v1284
          %v1286 = vpop.f32.mrf.mxu0
          %v1287 = vadd.f32 %v1208, %v1286
          %1288 = vmatmul.bf16.gmra.mxu0 %v1265
          %v1289 = vpop.f32.mrf.mxu0
          %v1290 = vadd.f32 %v1211, %v1289
          %v1291 = vpop.f32.mrf.mxu0
          %v1292 = vadd.f32 %v1213, %v1291
          %1293 = vmatmul.bf16.gmra.mxu0 %v1268
          %v1294 = vpop.f32.mrf.mxu0
          %v1295 = vadd.f32 %v1216, %v1294
          %v1296 = vpop.f32.mrf.mxu0
          %v1297 = vadd.f32 %v1218, %v1296
          %1298 = vdwg.mxu0
          %s1299 = sadd.s32 2, %s1105
          %s1300 = smul.addr %s1299, 4
          %s1301 = scalar_lea.vmem [#allocation2], %s1300
          %v1302 = vld [vmem:[%s1301] sm:$0xf]
          %v1303 = vld [vmem:[%s1301 + $0x4] sm:$0xf]
          %v1304 = vld [vmem:[%s1301 + $0x8] sm:$0xf]
          %v1305 = vld [vmem:[%s1301 + $0xc] sm:$0xf]
          %v1306 = vld [vmem:[%s1301 + $0x10] sm:$0xf]
          %v1307 = vld [vmem:[%s1301 + $0x14] sm:$0xf]
          %v1308 = vld [vmem:[%s1301 + $0x18] sm:$0xf]
          %v1309 = vld [vmem:[%s1301 + $0x1c] sm:$0xf]
          %s1310 = scalar_lea.vmem %s3, 48
          %v1311 = vld [vmem:[%s1310] sm:$0xf]
          %v1312 = vld [vmem:[%s1310 + $0x4] sm:$0xf]
          %v1313 = vld [vmem:[%s1310 + $0x8] sm:$0xf]
          %v1314 = vld [vmem:[%s1310 + $0xc] sm:$0xf]
          %v1315 = vld [vmem:[%s1310 + $0x10] sm:$0xf]
          %v1316 = vld [vmem:[%s1310 + $0x14] sm:$0xf]
          %v1325 = vunpack.c.l.b16 %v1302
          %v1326 = vunpack.c.l.b16 %v1303
          %v1327 = vunpack.c.l.b16 %v1304
          %v1328 = vunpack.c.l.b16 %v1305
          %v1329 = vunpack.c.l.b16 %v1306
          %v1330 = vunpack.c.l.b16 %v1307
          %v1331 = vunpack.c.l.b16 %v1308
          %v1332 = vunpack.c.l.b16 %v1309
          %v1333 = vpack.c.b16 %v1326, %v1325
          %v1334 = vpack.c.b16 %v1328, %v1327
          %v1335 = vpack.c.b16 %v1330, %v1329
          %v1336 = vpack.c.b16 %v1332, %v1331
          %v1343 = vunpack.c.l.b16 %v1311
          %v1344 = vunpack.c.l.b16 %v1312
          %v1345 = vunpack.c.l.b16 %v1313
          %v1346 = vunpack.c.l.b16 %v1314
          %v1347 = vunpack.c.l.b16 %v1315
          %v1348 = vunpack.c.l.b16 %v1316
          %v1349 = vpack.c.b16 %v1344, %v1343
          %v1350 = vpack.c.b16 %v1346, %v1345
          %v1351 = vpack.c.b16 %v1348, %v1347
          %v1356 = vsel %vm1178, %v1333, 0
          %v1359 = vsel %vm1178, %v1334, 0
          %v1362 = vsel %vm1178, %v1335, 0
          %v1365 = vsel %vm1178, %v1336, 0
          %1367 = vmatpush.bf16.msra.mxu0 0
          %1368 = vmatpush.bf16.msra.mxu0 0
          %1369 = vmatpush.bf16.msra.mxu0 0
          %1370 = vmatpush.bf16.msra.mxu0 0
          %1371 = vmatpush.bf16.msra.mxu0 0
          %1372 = vmatpush.bf16.msra.mxu0 %v1351
          %1373 = vmatpush.bf16.msra.mxu0 %v1350
          %1374 = vmatpush.bf16.msra.mxu0 %v1349
          %1375 = vmatmul.bf16.gmra.mxu0 %v1356
          %v1376 = vpop.f32.mrf.mxu0
          %v1377 = vadd.f32 0.0, %v1376
          %v1378 = vpop.f32.mrf.mxu0
          %v1379 = vadd.f32 0.0, %v1378
          %1380 = vmatmul.bf16.gmra.mxu0 %v1359
          %v1381 = vpop.f32.mrf.mxu0
          %v1382 = vadd.f32 0.0, %v1381
          %v1383 = vpop.f32.mrf.mxu0
          %v1384 = vadd.f32 0.0, %v1383
          %1385 = vmatmul.bf16.gmra.mxu0 %v1362
          %v1386 = vpop.f32.mrf.mxu0
          %v1387 = vadd.f32 0.0, %v1386
          %v1388 = vpop.f32.mrf.mxu0
          %v1389 = vadd.f32 0.0, %v1388
          %1390 = vmatmul.bf16.gmra.mxu0 %v1365
          %v1391 = vpop.f32.mrf.mxu0
          %v1392 = vadd.f32 0.0, %v1391
          %v1393 = vpop.f32.mrf.mxu0
          %v1394 = vadd.f32 0.0, %v1393
          %1395 = vdwg.mxu0
          %v1396 = vadd.f32 %v1280, %v1377
          %v1397 = vadd.f32 %v1282, %v1379
          %v1398 = vadd.f32 %v1285, %v1382
          %v1399 = vadd.f32 %v1287, %v1384
          %v1400 = vadd.f32 %v1290, %v1387
          %v1401 = vadd.f32 %v1292, %v1389
          %v1402 = vadd.f32 %v1295, %v1392
          %v1403 = vadd.f32 %v1297, %v1394
          %s1404 = sadd.s32 %s837, 1
          %s1405 = sand.u32 %s1404, 3
          %s1406 = smul.u32 %s1405, 10
          %s1407 = smul.addr %s1406, 4
          %s1408 = scalar_lea.vmem [#allocation2], %s1407
          %v1409 = vld [vmem:[%s1408] sm:$0xf]
          %v1410 = vld [vmem:[%s1408 + $0x4] sm:$0xf]
          %v1411 = vld [vmem:[%s1408 + $0x8] sm:$0xf]
          %v1412 = vld [vmem:[%s1408 + $0xc] sm:$0xf]
          %v1413 = vld [vmem:[%s1408 + $0x10] sm:$0xf]
          %v1414 = vld [vmem:[%s1408 + $0x14] sm:$0xf]
          %v1415 = vld [vmem:[%s1408 + $0x18] sm:$0xf]
          %v1416 = vld [vmem:[%s1408 + $0x1c] sm:$0xf]
          %s1417 = scalar_lea.vmem %s3, 72
          %v1418 = vld [vmem:[%s1417] sm:$0xf]
          %v1419 = vld [vmem:[%s1417 + $0x4] sm:$0xf]
          %v1420 = vld [vmem:[%s1417 + $0x8] sm:$0xf]
          %v1421 = vld [vmem:[%s1417 + $0xc] sm:$0xf]
          %v1422 = vld [vmem:[%s1417 + $0x10] sm:$0xf]
          %v1423 = vld [vmem:[%s1417 + $0x14] sm:$0xf]
          %v1432 = vunpack.c.l.b16 %v1409
          %v1433 = vunpack.c.l.b16 %v1410
          %v1434 = vunpack.c.l.b16 %v1411
          %v1435 = vunpack.c.l.b16 %v1412
          %v1436 = vunpack.c.l.b16 %v1413
          %v1437 = vunpack.c.l.b16 %v1414
          %v1438 = vunpack.c.l.b16 %v1415
          %v1439 = vunpack.c.l.b16 %v1416
          %v1440 = vpack.c.b16 %v1433, %v1432
          %v1441 = vpack.c.b16 %v1435, %v1434
          %v1442 = vpack.c.b16 %v1437, %v1436
          %v1443 = vpack.c.b16 %v1439, %v1438
          %v1450 = vunpack.c.l.b16 %v1418
          %v1451 = vunpack.c.l.b16 %v1419
          %v1452 = vunpack.c.l.b16 %v1420
          %v1453 = vunpack.c.l.b16 %v1421
          %v1454 = vunpack.c.l.b16 %v1422
          %v1455 = vunpack.c.l.b16 %v1423
          %v1456 = vpack.c.b16 %v1451, %v1450
          %v1457 = vpack.c.b16 %v1453, %v1452
          %v1458 = vpack.c.b16 %v1455, %v1454
          %v1463 = vsel %vm1178, %v1440, 0
          %v1466 = vsel %vm1178, %v1441, 0
          %v1469 = vsel %vm1178, %v1442, 0
          %v1472 = vsel %vm1178, %v1443, 0
          %1474 = vmatpush.bf16.msra.mxu0 0
          %1475 = vmatpush.bf16.msra.mxu0 0
          %1476 = vmatpush.bf16.msra.mxu0 0
          %1477 = vmatpush.bf16.msra.mxu0 0
          %1478 = vmatpush.bf16.msra.mxu0 0
          %1479 = vmatpush.bf16.msra.mxu0 %v1458
          %1480 = vmatpush.bf16.msra.mxu0 %v1457
          %1481 = vmatpush.bf16.msra.mxu0 %v1456
          %1482 = vmatmul.bf16.gmra.mxu0 %v1463
          %v1483 = vpop.f32.mrf.mxu0
          %v1484 = vadd.f32 0.0, %v1483
          %v1485 = vpop.f32.mrf.mxu0
          %v1486 = vadd.f32 0.0, %v1485
          %1487 = vmatmul.bf16.gmra.mxu0 %v1466
          %v1488 = vpop.f32.mrf.mxu0
          %v1489 = vadd.f32 0.0, %v1488
          %v1490 = vpop.f32.mrf.mxu0
          %v1491 = vadd.f32 0.0, %v1490
          %1492 = vmatmul.bf16.gmra.mxu0 %v1469
          %v1493 = vpop.f32.mrf.mxu0
          %v1494 = vadd.f32 0.0, %v1493
          %v1495 = vpop.f32.mrf.mxu0
          %v1496 = vadd.f32 0.0, %v1495
          %1497 = vmatmul.bf16.gmra.mxu0 %v1472
          %v1498 = vpop.f32.mrf.mxu0
          %v1499 = vadd.f32 0.0, %v1498
          %v1500 = vpop.f32.mrf.mxu0
          %v1501 = vadd.f32 0.0, %v1500
          %1502 = vdwg.mxu0
          %v1503 = vadd.f32 %v1396, %v1484
          %v1504 = vadd.f32 %v1397, %v1486
          %v1505 = vadd.f32 %v1398, %v1489
          %v1506 = vadd.f32 %v1399, %v1491
          %v1507 = vadd.f32 %v1400, %v1494
          %v1508 = vadd.f32 %v1401, %v1496
          %v1509 = vadd.f32 %v1402, %v1499
          %v1510 = vadd.f32 %v1403, %v1501
          %s1511 = sadd.s32 1, %s1406
          %s1512 = smul.addr %s1511, 4
          %s1513 = scalar_lea.vmem [#allocation2], %s1512
          %v1514 = vld [vmem:[%s1513] sm:$0xf]
          %v1515 = vld [vmem:[%s1513 + $0x4] sm:$0xf]
          %v1516 = vld [vmem:[%s1513 + $0x8] sm:$0xf]
          %v1517 = vld [vmem:[%s1513 + $0xc] sm:$0xf]
          %v1518 = vld [vmem:[%s1513 + $0x10] sm:$0xf]
          %v1519 = vld [vmem:[%s1513 + $0x14] sm:$0xf]
          %v1520 = vld [vmem:[%s1513 + $0x18] sm:$0xf]
          %v1521 = vld [vmem:[%s1513 + $0x1c] sm:$0xf]
          %s1522 = scalar_lea.vmem %s3, 96
          %v1523 = vld [vmem:[%s1522] sm:$0xf]
          %v1524 = vld [vmem:[%s1522 + $0x4] sm:$0xf]
          %v1525 = vld [vmem:[%s1522 + $0x8] sm:$0xf]
          %v1526 = vld [vmem:[%s1522 + $0xc] sm:$0xf]
          %v1527 = vld [vmem:[%s1522 + $0x10] sm:$0xf]
          %v1528 = vld [vmem:[%s1522 + $0x14] sm:$0xf]
          %v1537 = vunpack.c.l.b16 %v1514
          %v1538 = vunpack.c.l.b16 %v1515
          %v1539 = vunpack.c.l.b16 %v1516
          %v1540 = vunpack.c.l.b16 %v1517
          %v1541 = vunpack.c.l.b16 %v1518
          %v1542 = vunpack.c.l.b16 %v1519
          %v1543 = vunpack.c.l.b16 %v1520
          %v1544 = vunpack.c.l.b16 %v1521
          %v1545 = vpack.c.b16 %v1538, %v1537
          %v1546 = vpack.c.b16 %v1540, %v1539
          %v1547 = vpack.c.b16 %v1542, %v1541
          %v1548 = vpack.c.b16 %v1544, %v1543
          %v1555 = vunpack.c.l.b16 %v1523
          %v1556 = vunpack.c.l.b16 %v1524
          %v1557 = vunpack.c.l.b16 %v1525
          %v1558 = vunpack.c.l.b16 %v1526
          %v1559 = vunpack.c.l.b16 %v1527
          %v1560 = vunpack.c.l.b16 %v1528
          %v1561 = vpack.c.b16 %v1556, %v1555
          %v1562 = vpack.c.b16 %v1558, %v1557
          %v1563 = vpack.c.b16 %v1560, %v1559
          %v1568 = vsel %vm1178, %v1545, 0
          %v1571 = vsel %vm1178, %v1546, 0
          %v1574 = vsel %vm1178, %v1547, 0
          %v1577 = vsel %vm1178, %v1548, 0
          %1579 = vmatpush.bf16.msra.mxu0 0
          %1580 = vmatpush.bf16.msra.mxu0 0
          %1581 = vmatpush.bf16.msra.mxu0 0
          %1582 = vmatpush.bf16.msra.mxu0 0
          %1583 = vmatpush.bf16.msra.mxu0 0
          %1584 = vmatpush.bf16.msra.mxu0 %v1563
          %1585 = vmatpush.bf16.msra.mxu0 %v1562
          %1586 = vmatpush.bf16.msra.mxu0 %v1561
          %1587 = vmatmul.bf16.gmra.mxu0 %v1568
          %v1588 = vpop.f32.mrf.mxu0
          %v1589 = vadd.f32 0.0, %v1588
          %v1590 = vpop.f32.mrf.mxu0
          %v1591 = vadd.f32 0.0, %v1590
          %1592 = vmatmul.bf16.gmra.mxu0 %v1571
          %v1593 = vpop.f32.mrf.mxu0
          %v1594 = vadd.f32 0.0, %v1593
          %v1595 = vpop.f32.mrf.mxu0
          %v1596 = vadd.f32 0.0, %v1595
          %1597 = vmatmul.bf16.gmra.mxu0 %v1574
          %v1598 = vpop.f32.mrf.mxu0
          %v1599 = vadd.f32 0.0, %v1598
          %v1600 = vpop.f32.mrf.mxu0
          %v1601 = vadd.f32 0.0, %v1600
          %1602 = vmatmul.bf16.gmra.mxu0 %v1577
          %v1603 = vpop.f32.mrf.mxu0
          %v1604 = vadd.f32 0.0, %v1603
          %v1605 = vpop.f32.mrf.mxu0
          %v1606 = vadd.f32 0.0, %v1605
          %1607 = vdwg.mxu0
          %v1608 = vadd.f32 %v1503, %v1589
          %v1609 = vadd.f32 %v1504, %v1591
          %v1610 = vadd.f32 %v1505, %v1594
          %v1611 = vadd.f32 %v1506, %v1596
          %v1612 = vadd.f32 %v1507, %v1599
          %v1613 = vadd.f32 %v1508, %v1601
          %v1614 = vadd.f32 %v1509, %v1604
          %v1615 = vadd.f32 %v1510, %v1606
          %s1616 = sadd.s32 2, %s1406
          %s1617 = smul.addr %s1616, 4
          %s1618 = scalar_lea.vmem [#allocation2], %s1617
          %v1619 = vld [vmem:[%s1618] sm:$0xf]
          %v1620 = vld [vmem:[%s1618 + $0x4] sm:$0xf]
          %v1621 = vld [vmem:[%s1618 + $0x8] sm:$0xf]
          %v1622 = vld [vmem:[%s1618 + $0xc] sm:$0xf]
          %v1623 = vld [vmem:[%s1618 + $0x10] sm:$0xf]
          %v1624 = vld [vmem:[%s1618 + $0x14] sm:$0xf]
          %v1625 = vld [vmem:[%s1618 + $0x18] sm:$0xf]
          %v1626 = vld [vmem:[%s1618 + $0x1c] sm:$0xf]
          %s1627 = scalar_lea.vmem %s3, 120
          %v1628 = vld [vmem:[%s1627] sm:$0xf]
          %v1629 = vld [vmem:[%s1627 + $0x4] sm:$0xf]
          %v1630 = vld [vmem:[%s1627 + $0x8] sm:$0xf]
          %v1631 = vld [vmem:[%s1627 + $0xc] sm:$0xf]
          %v1632 = vld [vmem:[%s1627 + $0x10] sm:$0xf]
          %v1633 = vld [vmem:[%s1627 + $0x14] sm:$0xf]
          %v1642 = vunpack.c.l.b16 %v1619
          %v1643 = vunpack.c.l.b16 %v1620
          %v1644 = vunpack.c.l.b16 %v1621
          %v1645 = vunpack.c.l.b16 %v1622
          %v1646 = vunpack.c.l.b16 %v1623
          %v1647 = vunpack.c.l.b16 %v1624
          %v1648 = vunpack.c.l.b16 %v1625
          %v1649 = vunpack.c.l.b16 %v1626
          %v1650 = vpack.c.b16 %v1643, %v1642
          %v1651 = vpack.c.b16 %v1645, %v1644
          %v1652 = vpack.c.b16 %v1647, %v1646
          %v1653 = vpack.c.b16 %v1649, %v1648
          %v1660 = vunpack.c.l.b16 %v1628
          %v1661 = vunpack.c.l.b16 %v1629
          %v1662 = vunpack.c.l.b16 %v1630
          %v1663 = vunpack.c.l.b16 %v1631
          %v1664 = vunpack.c.l.b16 %v1632
          %v1665 = vunpack.c.l.b16 %v1633
          %v1666 = vpack.c.b16 %v1661, %v1660
          %v1667 = vpack.c.b16 %v1663, %v1662
          %v1668 = vpack.c.b16 %v1665, %v1664
          %v1673 = vsel %vm1178, %v1650, 0
          %v1676 = vsel %vm1178, %v1651, 0
          %v1679 = vsel %vm1178, %v1652, 0
          %v1682 = vsel %vm1178, %v1653, 0
          %1684 = vmatpush.bf16.msra.mxu0 0
          %1685 = vmatpush.bf16.msra.mxu0 0
          %1686 = vmatpush.bf16.msra.mxu0 0
          %1687 = vmatpush.bf16.msra.mxu0 0
          %1688 = vmatpush.bf16.msra.mxu0 0
          %1689 = vmatpush.bf16.msra.mxu0 %v1668
          %1690 = vmatpush.bf16.msra.mxu0 %v1667
          %1691 = vmatpush.bf16.msra.mxu0 %v1666
          %1692 = vmatmul.bf16.gmra.mxu0 %v1673
          %v1693 = vpop.f32.mrf.mxu0
          %v1694 = vadd.f32 0.0, %v1693
          %v1695 = vpop.f32.mrf.mxu0
          %v1696 = vadd.f32 0.0, %v1695
          %1697 = vmatmul.bf16.gmra.mxu0 %v1676
          %v1698 = vpop.f32.mrf.mxu0
          %v1699 = vadd.f32 0.0, %v1698
          %v1700 = vpop.f32.mrf.mxu0
          %v1701 = vadd.f32 0.0, %v1700
          %1702 = vmatmul.bf16.gmra.mxu0 %v1679
          %v1703 = vpop.f32.mrf.mxu0
          %v1704 = vadd.f32 0.0, %v1703
          %v1705 = vpop.f32.mrf.mxu0
          %v1706 = vadd.f32 0.0, %v1705
          %1707 = vmatmul.bf16.gmra.mxu0 %v1682
          %v1708 = vpop.f32.mrf.mxu0
          %v1709 = vadd.f32 0.0, %v1708
          %v1710 = vpop.f32.mrf.mxu0
          %v1711 = vadd.f32 0.0, %v1710
          %1712 = vdwg.mxu0
          %v1713 = vadd.f32 %v1608, %v1694
          %v1714 = vadd.f32 %v1609, %v1696
          %v1715 = vadd.f32 %v1610, %v1699
          %v1716 = vadd.f32 %v1611, %v1701
          %v1717 = vadd.f32 %v1612, %v1704
          %v1718 = vadd.f32 %v1613, %v1706
          %v1719 = vadd.f32 %v1614, %v1709
          %v1720 = vadd.f32 %v1615, %v1711
          %v1721 = vld [vmem:[%s1093] sm:$0xf]
          %v1722 = vld [vmem:[%s1093 + $0x4] sm:$0xf]
          %v1723 = vld [vmem:[%s1093 + $0x8] sm:$0xf]
          %v1724 = vld [vmem:[%s1093 + $0xc] sm:$0xf]
          %v1725 = vld [vmem:[%s1093 + $0x10] sm:$0xf]
          %v1726 = vld [vmem:[%s1093 + $0x14] sm:$0xf]
          %v1727 = vld [vmem:[%s1093 + $0x18] sm:$0xf]
          %v1728 = vld [vmem:[%s1093 + $0x1c] sm:$0xf]
          %s1729 = scalar_lea.vmem %s3, 144
          %v1730 = vld [vmem:[%s1729] sm:$0xf]
          %v1731 = vld [vmem:[%s1729 + $0x4] sm:$0xf]
          %v1732 = vld [vmem:[%s1729 + $0x8] sm:$0xf]
          %v1733 = vld [vmem:[%s1729 + $0xc] sm:$0xf]
          %v1734 = vld [vmem:[%s1729 + $0x10] sm:$0xf]
          %v1735 = vld [vmem:[%s1729 + $0x14] sm:$0xf]
          %v1744 = vunpack.c.l.b16 %v1721
          %v1745 = vunpack.c.l.b16 %v1722
          %v1746 = vunpack.c.l.b16 %v1723
          %v1747 = vunpack.c.l.b16 %v1724
          %v1748 = vunpack.c.l.b16 %v1725
          %v1749 = vunpack.c.l.b16 %v1726
          %v1750 = vunpack.c.l.b16 %v1727
          %v1751 = vunpack.c.l.b16 %v1728
          %v1752 = vpack.c.b16 %v1745, %v1744
          %v1753 = vpack.c.b16 %v1747, %v1746
          %v1754 = vpack.c.b16 %v1749, %v1748
          %v1755 = vpack.c.b16 %v1751, %v1750
          %v1762 = vunpack.c.l.b16 %v1730
          %v1763 = vunpack.c.l.b16 %v1731
          %v1764 = vunpack.c.l.b16 %v1732
          %v1765 = vunpack.c.l.b16 %v1733
          %v1766 = vunpack.c.l.b16 %v1734
          %v1767 = vunpack.c.l.b16 %v1735
          %v1768 = vpack.c.b16 %v1763, %v1762
          %v1769 = vpack.c.b16 %v1765, %v1764
          %v1770 = vpack.c.b16 %v1767, %v1766
          %v1775 = vsel %vm1178, %v1752, 0
          %v1778 = vsel %vm1178, %v1753, 0
          %v1781 = vsel %vm1178, %v1754, 0
          %v1784 = vsel %vm1178, %v1755, 0
          %1786 = vmatpush.bf16.msra.mxu0 0
          %1787 = vmatpush.bf16.msra.mxu0 0
          %1788 = vmatpush.bf16.msra.mxu0 0
          %1789 = vmatpush.bf16.msra.mxu0 0
          %1790 = vmatpush.bf16.msra.mxu0 0
          %1791 = vmatpush.bf16.msra.mxu0 %v1770
          %1792 = vmatpush.bf16.msra.mxu0 %v1769
          %1793 = vmatpush.bf16.msra.mxu0 %v1768
          %1794 = vmatmul.bf16.gmra.mxu0 %v1775
          %v1795 = vpop.f32.mrf.mxu0
          %v1796 = vadd.f32 0.0, %v1795
          %v1797 = vpop.f32.mrf.mxu0
          %v1798 = vadd.f32 0.0, %v1797
          %1799 = vmatmul.bf16.gmra.mxu0 %v1778
          %v1800 = vpop.f32.mrf.mxu0
          %v1801 = vadd.f32 0.0, %v1800
          %v1802 = vpop.f32.mrf.mxu0
          %v1803 = vadd.f32 0.0, %v1802
          %1804 = vmatmul.bf16.gmra.mxu0 %v1781
          %v1805 = vpop.f32.mrf.mxu0
          %v1806 = vadd.f32 0.0, %v1805
          %v1807 = vpop.f32.mrf.mxu0
          %v1808 = vadd.f32 0.0, %v1807
          %1809 = vmatmul.bf16.gmra.mxu0 %v1784
          %v1810 = vpop.f32.mrf.mxu0
          %v1811 = vadd.f32 0.0, %v1810
          %v1812 = vpop.f32.mrf.mxu0
          %v1813 = vadd.f32 0.0, %v1812
          %1814 = vdwg.mxu0
          %v1815 = vadd.f32 %v1713, %v1796
          %v1816 = vadd.f32 %v1714, %v1798
          %v1817 = vadd.f32 %v1715, %v1801
          %v1818 = vadd.f32 %v1716, %v1803
          %v1819 = vadd.f32 %v1717, %v1806
          %v1820 = vadd.f32 %v1718, %v1808
          %v1821 = vadd.f32 %v1719, %v1811
          %v1822 = vadd.f32 %v1720, %v1813
          %s1823 = sadd.s32 1, %s1091
          %s1824 = smul.addr %s1823, 4
          %s1825 = scalar_lea.vmem [#allocation2], %s1824
          %v1826 = vld [vmem:[%s1825] sm:$0xf]
          %v1827 = vld [vmem:[%s1825 + $0x4] sm:$0xf]
          %v1828 = vld [vmem:[%s1825 + $0x8] sm:$0xf]
          %v1829 = vld [vmem:[%s1825 + $0xc] sm:$0xf]
          %v1830 = vld [vmem:[%s1825 + $0x10] sm:$0xf]
          %v1831 = vld [vmem:[%s1825 + $0x14] sm:$0xf]
          %v1832 = vld [vmem:[%s1825 + $0x18] sm:$0xf]
          %v1833 = vld [vmem:[%s1825 + $0x1c] sm:$0xf]
          %s1834 = scalar_lea.vmem %s3, 168
          %v1835 = vld [vmem:[%s1834] sm:$0xf]
          %v1836 = vld [vmem:[%s1834 + $0x4] sm:$0xf]
          %v1837 = vld [vmem:[%s1834 + $0x8] sm:$0xf]
          %v1838 = vld [vmem:[%s1834 + $0xc] sm:$0xf]
          %v1839 = vld [vmem:[%s1834 + $0x10] sm:$0xf]
          %v1840 = vld [vmem:[%s1834 + $0x14] sm:$0xf]
          %v1849 = vunpack.c.l.b16 %v1826
          %v1850 = vunpack.c.l.b16 %v1827
          %v1851 = vunpack.c.l.b16 %v1828
          %v1852 = vunpack.c.l.b16 %v1829
          %v1853 = vunpack.c.l.b16 %v1830
          %v1854 = vunpack.c.l.b16 %v1831
          %v1855 = vunpack.c.l.b16 %v1832
          %v1856 = vunpack.c.l.b16 %v1833
          %v1857 = vpack.c.b16 %v1850, %v1849
          %v1858 = vpack.c.b16 %v1852, %v1851
          %v1859 = vpack.c.b16 %v1854, %v1853
          %v1860 = vpack.c.b16 %v1856, %v1855
          %v1867 = vunpack.c.l.b16 %v1835
          %v1868 = vunpack.c.l.b16 %v1836
          %v1869 = vunpack.c.l.b16 %v1837
          %v1870 = vunpack.c.l.b16 %v1838
          %v1871 = vunpack.c.l.b16 %v1839
          %v1872 = vunpack.c.l.b16 %v1840
          %v1873 = vpack.c.b16 %v1868, %v1867
          %v1874 = vpack.c.b16 %v1870, %v1869
          %v1875 = vpack.c.b16 %v1872, %v1871
          %v1880 = vsel %vm1178, %v1857, 0
          %v1883 = vsel %vm1178, %v1858, 0
          %v1886 = vsel %vm1178, %v1859, 0
          %v1889 = vsel %vm1178, %v1860, 0
          %1891 = vmatpush.bf16.msra.mxu0 0
          %1892 = vmatpush.bf16.msra.mxu0 0
          %1893 = vmatpush.bf16.msra.mxu0 0
          %1894 = vmatpush.bf16.msra.mxu0 0
          %1895 = vmatpush.bf16.msra.mxu0 0
          %1896 = vmatpush.bf16.msra.mxu0 %v1875
          %1897 = vmatpush.bf16.msra.mxu0 %v1874
          %1898 = vmatpush.bf16.msra.mxu0 %v1873
          %1899 = vmatmul.bf16.gmra.mxu0 %v1880
          %v1900 = vpop.f32.mrf.mxu0
          %v1901 = vadd.f32 0.0, %v1900
          %v1902 = vpop.f32.mrf.mxu0
          %v1903 = vadd.f32 0.0, %v1902
          %1904 = vmatmul.bf16.gmra.mxu0 %v1883
          %v1905 = vpop.f32.mrf.mxu0
          %v1906 = vadd.f32 0.0, %v1905
          %v1907 = vpop.f32.mrf.mxu0
          %v1908 = vadd.f32 0.0, %v1907
          %1909 = vmatmul.bf16.gmra.mxu0 %v1886
          %v1910 = vpop.f32.mrf.mxu0
          %v1911 = vadd.f32 0.0, %v1910
          %v1912 = vpop.f32.mrf.mxu0
          %v1913 = vadd.f32 0.0, %v1912
          %1914 = vmatmul.bf16.gmra.mxu0 %v1889
          %v1915 = vpop.f32.mrf.mxu0
          %v1916 = vadd.f32 0.0, %v1915
          %v1917 = vpop.f32.mrf.mxu0
          %v1918 = vadd.f32 0.0, %v1917
          %1919 = vdwg.mxu0
          %v1920 = vadd.f32 %v1815, %v1901
          %v1921 = vadd.f32 %v1816, %v1903
          %v1922 = vadd.f32 %v1817, %v1906
          %v1923 = vadd.f32 %v1818, %v1908
          %v1924 = vadd.f32 %v1819, %v1911
          %v1925 = vadd.f32 %v1820, %v1913
          %v1926 = vadd.f32 %v1821, %v1916
          %v1927 = vadd.f32 %v1822, %v1918
          %s1928 = sadd.s32 2, %s1091
          %s1929 = smul.addr %s1928, 4
          %s1930 = scalar_lea.vmem [#allocation2], %s1929
          %v1931 = vld [vmem:[%s1930] sm:$0xf]
          %v1932 = vld [vmem:[%s1930 + $0x4] sm:$0xf]
          %v1933 = vld [vmem:[%s1930 + $0x8] sm:$0xf]
          %v1934 = vld [vmem:[%s1930 + $0xc] sm:$0xf]
          %v1935 = vld [vmem:[%s1930 + $0x10] sm:$0xf]
          %v1936 = vld [vmem:[%s1930 + $0x14] sm:$0xf]
          %v1937 = vld [vmem:[%s1930 + $0x18] sm:$0xf]
          %v1938 = vld [vmem:[%s1930 + $0x1c] sm:$0xf]
          %s1939 = scalar_lea.vmem %s3, 192
          %v1940 = vld [vmem:[%s1939] sm:$0xf]
          %v1941 = vld [vmem:[%s1939 + $0x4] sm:$0xf]
          %v1942 = vld [vmem:[%s1939 + $0x8] sm:$0xf]
          %v1943 = vld [vmem:[%s1939 + $0xc] sm:$0xf]
          %v1944 = vld [vmem:[%s1939 + $0x10] sm:$0xf]
          %v1945 = vld [vmem:[%s1939 + $0x14] sm:$0xf]
          %v1954 = vunpack.c.l.b16 %v1931
          %v1955 = vunpack.c.l.b16 %v1932
          %v1956 = vunpack.c.l.b16 %v1933
          %v1957 = vunpack.c.l.b16 %v1934
          %v1958 = vunpack.c.l.b16 %v1935
          %v1959 = vunpack.c.l.b16 %v1936
          %v1960 = vunpack.c.l.b16 %v1937
          %v1961 = vunpack.c.l.b16 %v1938
          %v1962 = vpack.c.b16 %v1955, %v1954
          %v1963 = vpack.c.b16 %v1957, %v1956
          %v1964 = vpack.c.b16 %v1959, %v1958
          %v1965 = vpack.c.b16 %v1961, %v1960
          %v1972 = vunpack.c.l.b16 %v1940
          %v1973 = vunpack.c.l.b16 %v1941
          %v1974 = vunpack.c.l.b16 %v1942
          %v1975 = vunpack.c.l.b16 %v1943
          %v1976 = vunpack.c.l.b16 %v1944
          %v1977 = vunpack.c.l.b16 %v1945
          %v1978 = vpack.c.b16 %v1973, %v1972
          %v1979 = vpack.c.b16 %v1975, %v1974
          %v1980 = vpack.c.b16 %v1977, %v1976
          %v1985 = vsel %vm1178, %v1962, 0
          %v1988 = vsel %vm1178, %v1963, 0
          %v1991 = vsel %vm1178, %v1964, 0
          %v1994 = vsel %vm1178, %v1965, 0
          %1996 = vmatpush.bf16.msra.mxu0 0
          %1997 = vmatpush.bf16.msra.mxu0 0
          %1998 = vmatpush.bf16.msra.mxu0 0
          %1999 = vmatpush.bf16.msra.mxu0 0
          %2000 = vmatpush.bf16.msra.mxu0 0
          %2001 = vmatpush.bf16.msra.mxu0 %v1980
          %2002 = vmatpush.bf16.msra.mxu0 %v1979
          %2003 = vmatpush.bf16.msra.mxu0 %v1978
          %2004 = vmatmul.bf16.gmra.mxu0 %v1985
          %v2005 = vpop.f32.mrf.mxu0
          %v2006 = vadd.f32 0.0, %v2005
          %v2007 = vpop.f32.mrf.mxu0
          %v2008 = vadd.f32 0.0, %v2007
          %2009 = vmatmul.bf16.gmra.mxu0 %v1988
          %v2010 = vpop.f32.mrf.mxu0
          %v2011 = vadd.f32 0.0, %v2010
          %v2012 = vpop.f32.mrf.mxu0
          %v2013 = vadd.f32 0.0, %v2012
          %2014 = vmatmul.bf16.gmra.mxu0 %v1991
          %v2015 = vpop.f32.mrf.mxu0
          %v2016 = vadd.f32 0.0, %v2015
          %v2017 = vpop.f32.mrf.mxu0
          %v2018 = vadd.f32 0.0, %v2017
          %2019 = vmatmul.bf16.gmra.mxu0 %v1994
          %v2020 = vpop.f32.mrf.mxu0
          %v2021 = vadd.f32 0.0, %v2020
          %v2022 = vpop.f32.mrf.mxu0
          %v2023 = vadd.f32 0.0, %v2022
          %2024 = vdwg.mxu0
          %v2025 = vadd.f32 %v1920, %v2006
          %v2026 = vadd.f32 %v1921, %v2008
          %v2027 = vadd.f32 %v1922, %v2011
          %v2028 = vadd.f32 %v1923, %v2013
          %v2029 = vadd.f32 %v1924, %v2016
          %v2030 = vadd.f32 %v1925, %v2018
          %v2031 = vadd.f32 %v1926, %v2021
          %v2032 = vadd.f32 %v1927, %v2023
          %v2034 = vperm.slane %v317, 0
          %v2036 = vadd.f32 %v2025, %v2034
          %v2037 = vadd.f32 %v2026, %v2034
          %v2038 = vadd.f32 %v2027, %v2034
          %v2039 = vadd.f32 %v2028, %v2034
          %v2040 = vadd.f32 %v2029, %v2034
          %v2041 = vadd.f32 %v2030, %v2034
          %v2042 = vadd.f32 %v2031, %v2034
          %v2043 = vadd.f32 %v2032, %v2034
          %s2044 = smul.u32 %s837, 64
          %s2045 = scalar_lea.vmem %s271, %s2044 [#allocation3]
          %v2046 = vld [vmem:[%s2045] sm:$0xff]
          %v2047 = vld [vmem:[%s2045 + $0x8] sm:$0xff]
          %v2048 = vld [vmem:[%s2045 + $0x10] sm:$0xff]
          %v2049 = vld [vmem:[%s2045 + $0x18] sm:$0xff]
          %v2050 = vld [vmem:[%s2045 + $0x20] sm:$0xff]
          %v2051 = vld [vmem:[%s2045 + $0x28] sm:$0xff]
          %v2052 = vld [vmem:[%s2045 + $0x30] sm:$0xff]
          %v2053 = vld [vmem:[%s2045 + $0x38] sm:$0xff]
          %v2054 = vadd.f32 %v2036, %v2046
          %v2055 = vadd.f32 %v2037, %v2047
          %v2056 = vadd.f32 %v2038, %v2048
          %v2057 = vadd.f32 %v2039, %v2049
          %v2058 = vadd.f32 %v2040, %v2050
          %v2059 = vadd.f32 %v2041, %v2051
          %v2060 = vadd.f32 %v2042, %v2052
          %v2061 = vadd.f32 %v2043, %v2053
          %s2062 = scalar_lea.vmem %s305, %s2044 [#allocation6]
          %2063 = vst.msk [vmem:[%s2062] sm:$0xff] %vm543, %v2054
          %2064 = vst.msk [vmem:[%s2062 + $0x8] sm:$0xff] %vm543, %v2055
          %2065 = vst.msk [vmem:[%s2062 + $0x10] sm:$0xff] %vm543, %v2056
          %2066 = vst.msk [vmem:[%s2062 + $0x18] sm:$0xff] %vm543, %v2057
          %2067 = vst.msk [vmem:[%s2062 + $0x20] sm:$0xff] %vm543, %v2058
          %2068 = vst.msk [vmem:[%s2062 + $0x28] sm:$0xff] %vm543, %v2059
          %2069 = vst.msk [vmem:[%s2062 + $0x30] sm:$0xff] %vm543, %v2060
          %2070 = vst.msk [vmem:[%s2062 + $0x38] sm:$0xff] %vm543, %v2061
        $region53: #{en_block2_forward.5} parent=43 // loop_footer
          %s841 = sadd.s32 1, %s837
        $region54: #{en_block2_forward.5} parent=43 // loop_footer_branch
          %836 = sbr.rel target = $region50
        $region55: #{en_block2_forward.5} parent=43 // loop_exit
          _
        %s2071 = sand.u32 %s183, 1
        %s2072 = scalar_lea.sflag [#allocation5], %s2071
        %s2073 = sand.u32 %s183, 1
        %s2074 = smul.addr %s2073, 256
        %s2075 = scalar_lea.vmem [#allocation6], %s2074
        // Predicated region
        $region56: #{en_block2_forward.5} parent=43 // pred_check
          %p2076 = pneg %p193
        $region57: #{en_block2_forward.5} parent=43 // pred_check_branch
          %2078 = sbr.rel (%p2076) target = $region59
        $region58: #{en_block2_forward.5} parent=43 // pred_region
          %s2079 = smul.u32 4, %s28
          %2081 = vsyncadd %s2072, 0
          %s2082 = smul.addr %s2079, 8
          %s2083 = smul.addr %s27, 64
          %s2084 = sadd.s32 %s2082, %s2083
          %s2085 = smul.addr %s2084, 8
          %s2086 = scalar_lea.hbm %s6, %s2085
          %s2087 = sshll.u32 %s2075, 4
          %s2088 = int_to_ptr.vmem [resolvable:$true] %s2087
          %s2089 = sshll.u32 %s2086, 4
          %s2090 = int_to_ptr.hbm [resolvable:$true] %s2089
          %2095 = dma.vmem_to_hbm [thread:$0]  %s2088, 4096, %s2090, %s2072, 128, 128, 8
        $region59: #{en_block2_forward.5} parent=43 // pred_fallthru
          _
      $region44: #{en_block2_forward.5} parent=5 // pred_fallthru
        _
      %p2096 = scmp.le.s32.totalorder 2, %s18
      // Predicated region
      $region60: #{en_block2_forward.5} parent=5 // pred_check
        %p2097 = pneg %p2096
      $region61: #{en_block2_forward.5} parent=5 // pred_check_branch
        %2099 = sbr.rel (%p2097) target = $region63
      $region62: #{en_block2_forward.5} parent=5 // pred_region
        %s2100 = ssub.s32 %s18, 2
        // Predicated region
        $region64: #{en_block2_forward.5} parent=62 // pred_check
          %p2101 = pneg %p199
        $region65: #{en_block2_forward.5} parent=62 // pred_check_branch
          %2103 = sbr.rel (%p2101) target = $region67
        $region66: #{en_block2_forward.5} parent=62 // pred_region
          %s2104 = sand.u32 %s184, 1
          %s2105 = scalar_lea.sflag [#allocation5], %s2104
          %s2106 = sand.u32 %s184, 1
          %s2107 = smul.addr %s2106, 256
          %s2108 = scalar_lea.vmem [#allocation6], %s2107
          %2110 = dma.done %s2105, 4096
        $region67: #{en_block2_forward.5} parent=62 // pred_fallthru
          _
      $region63: #{en_block2_forward.5} parent=5 // pred_fallthru
        _
    $region6: #{en_block2_forward.5} parent=1 // loop_footer
      %s22 = sadd.s32 1, %s18
    $region7: #{en_block2_forward.5} parent=1 // loop_footer_branch
      %17 = sbr.rel target = $region3
    $region8: #{en_block2_forward.5} parent=1 // loop_exit
      _
    %2111 = vsyncpa [#allocation4], 1
    %s2112 = scalar_lea.sflag [#allocation4], 1
    %2113 = vsyncpa %s2112, 1
    %2114 = vsyncpa [#allocation5], 1
    %s2115 = scalar_lea.sflag [#allocation5], 1
    %2116 = vsyncpa %s2115, 1

// kernel: en_block2_forward.4
$region0: #{en_block2_forward.4}
  #allocation0 [shape = 'u32[]', space=smem, size = 0x4, offset = 0x4, fixed_abs, tag = 'smem constant byte address 0x4 - core index']
  #allocation1 [shape = 'u32[72,128]{1,0:T(1,128)}', space=vmem, size = 0x9000, scoped, tag = 'internal scratch']
  #allocation2 [shape = 'bf16[4,10,8,48]{3,2,1,0:T(8,128)(2,1)}', space=vmem, size = 0x14000, scoped, tag = 'scratch operand']
  %s0 = inlined_call_operand.hbm [shape: f32[2,8,8,8,16], index: 0, kind: input, shape index: {}]
  %s1 = inlined_call_operand.vmem [shape: f32[1,16], index: 1, kind: input, shape index: {}]
  %s2 = inlined_call_operand.vmem [shape: f32[1,16], index: 2, kind: input, shape index: {}]
  %s3 = inlined_call_operand.vmem [shape: bf16[9,48,16], index: 3, kind: input, shape index: {}]
  %s4 = inlined_call_operand.vmem [shape: f32[1,16], index: 4, kind: input, shape index: {}]
  %s5 = inlined_call_operand.vmem [shape: f32[2,8,8,8,16], index: 5, kind: output, shape index: {0}]
  %s6 = inlined_call_operand.vmem [shape: f32[2,2,1,16], index: 6, kind: output, shape index: {1}]
  %s7 = inlined_call_operand.vmem [shape: f32[2,2,1,16], index: 7, kind: output, shape index: {2}]
  %8 = xla_tuple %s5, %s6, %s7
  %s9 = sld [smem:[#allocation0]]
  $region80: #{en_block2_forward.4} parent=0
    _
  %s11 = ssub.s32 1, %s9
  %s12 = scalar_select 0, %s11, %s9
  $region1: #{en_block2_forward.4} parent=0
    #allocation3 [shape = 'u8[524288]{0}', space=vmem, size = 0x80000, scoped, tag = 'input window, operand 0']
    #allocation4 [shape = 's32[2]{0}', space=sflag, size = 0x8, scoped, tag = 'scoped memory for en_block2_forward.4']
    %13 = vsyncpa [#allocation4], 0
    %s14 = scalar_lea.sflag [#allocation4], 1
    %15 = vsyncpa %s14, 0
    loop: start=0, step=1, limit=6
    $region2: #{en_block2_forward.4} parent=1 // loop_pre_header
      _
    $region3: #{en_block2_forward.4} parent=1 // loop_header
      %s17 = sphi 0, %s21
      %p18 = scmp.ge.s32.totalorder %s17, 6
      %s24 = sphi 0, %s36
      %s25 = sphi 0, %s32
      %s26 = sphi 0, %s24
      %s27 = sphi 0, %s25
      %s28 = sphi 0, %s26
      %s29 = sphi 0, %s27
      %s39 = sphi 0, %s41
      %s42 = sphi 0, %s39
      %s43 = sphi 0, %s42
      %s59 = sphi 0, %s43
      %s63 = sphi 0, %s63
      %s65 = sphi 0, %s63
      %s66 = sphi 0, %s65
      %s80 = sphi 0, %s66
      %s84 = sphi 0, %s84
      %s86 = sphi 0, %s84
      %s87 = sphi 0, %s86
      %s101 = sphi 0, %s87
      %s105 = sphi 0, %s105
      %s107 = sphi 0, %s105
      %s108 = sphi 0, %s107
      %s122 = sphi 0, %s108
      %s126 = sphi 0, %s126
      %s128 = sphi 0, %s126
      %s129 = sphi 0, %s128
      %s143 = sphi 0, %s129
      %s151 = sphi 0, %s153
      %s154 = sphi 0, %s151
      %s155 = sphi 0, %s154
      %s171 = sphi 0, %s155
      %s179 = sphi 0, %s181
      %s182 = sphi 0, %s179
      %s183 = sphi 0, %s182
      %s199 = sphi 0, %s183
      %s207 = sphi 0, %s209
      %s210 = sphi 0, %s207
      %s211 = sphi 0, %s210
      %s227 = sphi 0, %s211
    $region4: #{en_block2_forward.4} parent=1 // loop_header_branch
      %20 = sbr.rel (%p18) target = $region8
    $region5: #{en_block2_forward.4} parent=1 // loop_body
      %s22 = ssub.s32 %s17, 1
      %s23 = ssub.s32 %s17, 2
      %s30 = sadd.s32 1, %s25
      %p31 = scmp.ge.s32.totalorder %s30, 2
      %s32 = scalar_select %p31, 0, %s30
      %s33 = sadd.s32 1, %s24
      %s34 = scalar_select %p31, %s33, %s24
      %p35 = scmp.ge.s32.totalorder %s34, 2
      %s36 = scalar_select %p35, 0, %s34
      %s37 = ssub.s32 %s24, %s36
      %p38 = scmp.eq.s32.totalorder %s37, 0
      %s40 = sadd.s32 %s39, 1
      %s41 = scalar_select %p38, %s39, %s40
      %p44 = pneg %p38
      %p45 = scmp.eq.s32.totalorder %s17, 3
      %p46 = por %p44, %p45
      %p47 = scmp.ne.s32.totalorder %s39, %s42
      %p48 = scmp.eq.s32.totalorder %s17, 0
      %p49 = por %p47, %p48
      %p50 = scmp.ne.s32.totalorder %s39, %s42
      %p51 = scmp.eq.s32.totalorder %s22, 3
      %p52 = por %p50, %p51
      %p53 = scmp.ne.s32.totalorder %s42, %s43
      %p54 = scmp.eq.s32.totalorder %s22, 0
      %p55 = por %p53, %p54
      %p56 = scmp.ne.s32.totalorder %s42, %s43
      %p57 = scmp.eq.s32.totalorder %s23, 3
      %p58 = por %p56, %p57
      %p60 = scmp.ne.s32.totalorder %s43, %s59
      %p61 = scmp.eq.s32.totalorder %s23, 0
      %p62 = por %p60, %p61
      %s64 = sadd.s32 %s63, 1
      %p67 = scmp.eq.s32.totalorder %s17, 3
      %p68 = scmp.ne.s32.totalorder %s63, %s65
      %p69 = scmp.eq.s32.totalorder %s17, 0
      %p70 = por %p68, %p69
      %p71 = scmp.ne.s32.totalorder %s63, %s65
      %p72 = scmp.eq.s32.totalorder %s22, 3
      %p73 = por %p71, %p72
      %p74 = scmp.ne.s32.totalorder %s65, %s66
      %p75 = scmp.eq.s32.totalorder %s22, 0
      %p76 = por %p74, %p75
      %p77 = scmp.ne.s32.totalorder %s65, %s66
      %p78 = scmp.eq.s32.totalorder %s23, 3
      %p79 = por %p77, %p78
      %p81 = scmp.ne.s32.totalorder %s66, %s80
      %p82 = scmp.eq.s32.totalorder %s23, 0
      %p83 = por %p81, %p82
      %s85 = sadd.s32 %s84, 1
      %p88 = scmp.eq.s32.totalorder %s17, 3
      %p89 = scmp.ne.s32.totalorder %s84, %s86
      %p90 = scmp.eq.s32.totalorder %s17, 0
      %p91 = por %p89, %p90
      %p92 = scmp.ne.s32.totalorder %s84, %s86
      %p93 = scmp.eq.s32.totalorder %s22, 3
      %p94 = por %p92, %p93
      %p95 = scmp.ne.s32.totalorder %s86, %s87
      %p96 = scmp.eq.s32.totalorder %s22, 0
      %p97 = por %p95, %p96
      %p98 = scmp.ne.s32.totalorder %s86, %s87
      %p99 = scmp.eq.s32.totalorder %s23, 3
      %p100 = por %p98, %p99
      %p102 = scmp.ne.s32.totalorder %s87, %s101
      %p103 = scmp.eq.s32.totalorder %s23, 0
      %p104 = por %p102, %p103
      %s106 = sadd.s32 %s105, 1
      %p109 = scmp.eq.s32.totalorder %s17, 3
      %p110 = scmp.ne.s32.totalorder %s105, %s107
      %p111 = scmp.eq.s32.totalorder %s17, 0
      %p112 = por %p110, %p111
      %p113 = scmp.ne.s32.totalorder %s105, %s107
      %p114 = scmp.eq.s32.totalorder %s22, 3
      %p115 = por %p113, %p114
      %p116 = scmp.ne.s32.totalorder %s107, %s108
      %p117 = scmp.eq.s32.totalorder %s22, 0
      %p118 = por %p116, %p117
      %p119 = scmp.ne.s32.totalorder %s107, %s108
      %p120 = scmp.eq.s32.totalorder %s23, 3
      %p121 = por %p119, %p120
      %p123 = scmp.ne.s32.totalorder %s108, %s122
      %p124 = scmp.eq.s32.totalorder %s23, 0
      %p125 = por %p123, %p124
      %s127 = sadd.s32 %s126, 1
      %p130 = scmp.eq.s32.totalorder %s17, 3
      %p131 = scmp.ne.s32.totalorder %s126, %s128
      %p132 = scmp.eq.s32.totalorder %s17, 0
      %p133 = por %p131, %p132
      %p134 = scmp.ne.s32.totalorder %s126, %s128
      %p135 = scmp.eq.s32.totalorder %s22, 3
      %p136 = por %p134, %p135
      %p137 = scmp.ne.s32.totalorder %s128, %s129
      %p138 = scmp.eq.s32.totalorder %s22, 0
      %p139 = por %p137, %p138
      %p140 = scmp.ne.s32.totalorder %s128, %s129
      %p141 = scmp.eq.s32.totalorder %s23, 3
      %p142 = por %p140, %p141
      %p144 = scmp.ne.s32.totalorder %s129, %s143
      %p145 = scmp.eq.s32.totalorder %s23, 0
      %p146 = por %p144, %p145
      %s147 = ssub.s32 %s24, %s36
      %s148 = ssub.s32 %s25, %s32
      %s149 = sor.u32 %s147, %s148
      %p150 = scmp.eq.s32.totalorder %s149, 0
      %s152 = sadd.s32 %s151, 1
      %s153 = scalar_select %p150, %s151, %s152
      %p156 = pneg %p150
      %p157 = scmp.eq.s32.totalorder %s17, 3
      %p158 = por %p156, %p157
      %p159 = scmp.ne.s32.totalorder %s151, %s154
      %p160 = scmp.eq.s32.totalorder %s17, 0
      %p161 = por %p159, %p160
      %p162 = scmp.ne.s32.totalorder %s151, %s154
      %p163 = scmp.eq.s32.totalorder %s22, 3
      %p164 = por %p162, %p163
      %p165 = scmp.ne.s32.totalorder %s154, %s155
      %p166 = scmp.eq.s32.totalorder %s22, 0
      %p167 = por %p165, %p166
      %p168 = scmp.ne.s32.totalorder %s154, %s155
      %p169 = scmp.eq.s32.totalorder %s23, 3
      %p170 = por %p168, %p169
      %p172 = scmp.ne.s32.totalorder %s155, %s171
      %p173 = scmp.eq.s32.totalorder %s23, 0
      %p174 = por %p172, %p173
      %s175 = ssub.s32 %s24, %s36
      %s176 = ssub.s32 %s25, %s32
      %s177 = sor.u32 %s175, %s176
      %p178 = scmp.eq.s32.totalorder %s177, 0
      %s180 = sadd.s32 %s179, 1
      %s181 = scalar_select %p178, %s179, %s180
      %p184 = pneg %p178
      %p185 = scmp.eq.s32.totalorder %s17, 3
      %p186 = por %p184, %p185
      %p187 = scmp.ne.s32.totalorder %s179, %s182
      %p188 = scmp.eq.s32.totalorder %s17, 0
      %p189 = por %p187, %p188
      %p190 = scmp.ne.s32.totalorder %s179, %s182
      %p191 = scmp.eq.s32.totalorder %s22, 3
      %p192 = por %p190, %p191
      %p193 = scmp.ne.s32.totalorder %s182, %s183
      %p194 = scmp.eq.s32.totalorder %s22, 0
      %p195 = por %p193, %p194
      %p196 = scmp.ne.s32.totalorder %s182, %s183
      %p197 = scmp.eq.s32.totalorder %s23, 3
      %p198 = por %p196, %p197
      %p200 = scmp.ne.s32.totalorder %s183, %s199
      %p201 = scmp.eq.s32.totalorder %s23, 0
      %p202 = por %p200, %p201
      %s203 = ssub.s32 %s24, %s36
      %s204 = ssub.s32 %s25, %s32
      %s205 = sor.u32 %s203, %s204
      %p206 = scmp.eq.s32.totalorder %s205, 0
      %s208 = sadd.s32 %s207, 1
      %s209 = scalar_select %p206, %s207, %s208
      %p212 = pneg %p206
      %p213 = scmp.eq.s32.totalorder %s17, 3
      %p214 = por %p212, %p213
      %p215 = scmp.ne.s32.totalorder %s207, %s210
      %p216 = scmp.eq.s32.totalorder %s17, 0
      %p217 = por %p215, %p216
      %p218 = scmp.ne.s32.totalorder %s207, %s210
      %p219 = scmp.eq.s32.totalorder %s22, 3
      %p220 = por %p218, %p219
      %p221 = scmp.ne.s32.totalorder %s210, %s211
      %p222 = scmp.eq.s32.totalorder %s22, 0
      %p223 = por %p221, %p222
      %p224 = scmp.ne.s32.totalorder %s210, %s211
      %p225 = scmp.eq.s32.totalorder %s23, 3
      %p226 = por %p224, %p225
      %p228 = scmp.ne.s32.totalorder %s211, %s227
      %p229 = scmp.eq.s32.totalorder %s23, 0
      %p230 = por %p228, %p229
      %p231 = scmp.le.s32.totalorder 1, %s17
      %p232 = scmp.lt.s32.totalorder %s17, 5
      %p233 = pnand %p231, %p232
      %p234 = pneg %p233
      // Predicated region
      $region9: #{en_block2_forward.4} parent=5 // pred_check
        _
      $region10: #{en_block2_forward.4} parent=5 // pred_check_branch
        %236 = sbr.rel (%p233) target = $region12
      $region11: #{en_block2_forward.4} parent=5 // pred_region
        %s237 = ssub.s32 %s17, 1
        // Predicated region
        $region13: #{en_block2_forward.4} parent=11 // pred_check
          %p238 = pneg %p76
        $region14: #{en_block2_forward.4} parent=11 // pred_check_branch
          %240 = sbr.rel (%p238) target = $region16
        $region15: #{en_block2_forward.4} parent=11 // pred_region
          _
        $region16: #{en_block2_forward.4} parent=11 // pred_fallthru
          _
        // Predicated region
        $region17: #{en_block2_forward.4} parent=11 // pred_check
          %p241 = pneg %p97
        $region18: #{en_block2_forward.4} parent=11 // pred_check_branch
          %243 = sbr.rel (%p241) target = $region20
        $region19: #{en_block2_forward.4} parent=11 // pred_region
          _
        $region20: #{en_block2_forward.4} parent=11 // pred_fallthru
          _
        // Predicated region
        $region21: #{en_block2_forward.4} parent=11 // pred_check
          %p244 = pneg %p118
        $region22: #{en_block2_forward.4} parent=11 // pred_check_branch
          %246 = sbr.rel (%p244) target = $region24
        $region23: #{en_block2_forward.4} parent=11 // pred_region
          _
        $region24: #{en_block2_forward.4} parent=11 // pred_fallthru
          _
        // Predicated region
        $region25: #{en_block2_forward.4} parent=11 // pred_check
          %p247 = pneg %p139
        $region26: #{en_block2_forward.4} parent=11 // pred_check_branch
          %249 = sbr.rel (%p247) target = $region28
        $region27: #{en_block2_forward.4} parent=11 // pred_region
          _
        $region28: #{en_block2_forward.4} parent=11 // pred_fallthru
          _
      $region12: #{en_block2_forward.4} parent=5 // pred_fallthru
        _
      %p250 = scmp.lt.s32.totalorder %s17, 4
      // Predicated region
      $region29: #{en_block2_forward.4} parent=5 // pred_check
        %p251 = pneg %p250
      $region30: #{en_block2_forward.4} parent=5 // pred_check_branch
        %253 = sbr.rel (%p251) target = $region32
      $region31: #{en_block2_forward.4} parent=5 // pred_region
        // Predicated region
        $region33: #{en_block2_forward.4} parent=31 // pred_check
          %p254 = pneg %p49
        $region34: #{en_block2_forward.4} parent=31 // pred_check_branch
          %256 = sbr.rel (%p254) target = $region36
        $region35: #{en_block2_forward.4} parent=31 // pred_region
          %s257 = sand.u32 %s39, 1
          %s258 = scalar_lea.sflag [#allocation4], %s257
          %s259 = sand.u32 %s39, 1
          %s260 = smul.addr %s259, 512
          %s261 = scalar_lea.vmem [#allocation3], %s260
          %263 = vsyncadd %s258, 0
          %s264 = smul.addr %s24, 64
          %s265 = smul.addr %s264, 8
          %s266 = scalar_lea.hbm %s0, %s265
          %s267 = sshll.u32 %s266, 4
          %s268 = int_to_ptr.hbm [resolvable:$true] %s267
          %s269 = sshll.u32 %s261, 4
          %s270 = int_to_ptr.vmem [resolvable:$true] %s269
          %275 = dma.hbm_to_vmem [thread:$0]  %s268, 8192, %s270, %s258, 128, 128, 8
        $region36: #{en_block2_forward.4} parent=31 // pred_fallthru
          _
      $region32: #{en_block2_forward.4} parent=5 // pred_fallthru
        _
      %p276 = scmp.le.s32.totalorder 1, %s17
      %p277 = scmp.lt.s32.totalorder %s17, 5
      %p278 = pnand %p276, %p277
      %p279 = pneg %p278
      // Predicated region
      $region37: #{en_block2_forward.4} parent=5 // pred_check
        _
      $region38: #{en_block2_forward.4} parent=5 // pred_check_branch
        %281 = sbr.rel (%p278) target = $region40
      $region39: #{en_block2_forward.4} parent=5 // pred_region
        %s282 = ssub.s32 %s17, 1
        %s283 = sand.u32 %s42, 1
        %s284 = scalar_lea.sflag [#allocation4], %s283
        %s285 = sand.u32 %s42, 1
        %s286 = smul.addr %s285, 512
        %s287 = scalar_lea.vmem [#allocation3], %s286
        // Predicated region
        $region41: #{en_block2_forward.4} parent=39 // pred_check
          %p288 = pneg %p55
        $region42: #{en_block2_forward.4} parent=39 // pred_check_branch
          %290 = sbr.rel (%p288) target = $region44
        $region43: #{en_block2_forward.4} parent=39 // pred_region
          %292 = dma.done %s284, 8192
        $region44: #{en_block2_forward.4} parent=39 // pred_fallthru
          _
        %s293 = sand.u32 %s42, 1
        %s294 = scalar_lea.sflag [#allocation4], %s293
        %s295 = sand.u32 %s42, 1
        %s296 = smul.addr %s295, 512
        %s297 = scalar_lea.vmem [#allocation3], %s296
        %p298 = pneg %p55
        %p299 = pneg %p52
        %p300 = pneg %p76
        %p301 = pneg %p73
        %p302 = pneg %p97
        %p303 = pneg %p94
        %p304 = pneg %p118
        %p305 = pneg %p115
        %p306 = pneg %p139
        %p307 = pneg %p136
        %p308 = pneg %p167
        %p309 = pneg %p164
        %s310 = smul.u32 4, %s27
        %p311 = scmp.lt.s32.totalorder %s26, 1
        %s312 = scalar_select %p311, %s26, 1
        %p313 = scmp.lt.s32.totalorder %s310, 7
        %s314 = scalar_select %p313, %s310, 7
        %s315 = smul.addr %s314, 8
        %s316 = smul.addr %s312, 64
        %s317 = sadd.s32 %s315, %s316
        %s318 = smul.addr %s317, 8
        %s319 = scalar_lea.vmem %s5, %s318
        %p320 = pneg %p195
        %p321 = pneg %p192
        %p322 = scmp.lt.s32.totalorder %s26, 1
        %s323 = scalar_select %p322, %s26, 1
        %p324 = scmp.lt.s32.totalorder %s27, 1
        %s325 = scalar_select %p324, %s27, 1
        %s326 = smul.addr %s323, 2
        %s327 = sadd.s32 %s325, %s326
        %s328 = scalar_lea.vmem %s6, %s327
        %p329 = pneg %p223
        %p330 = pneg %p220
        %p331 = scmp.lt.s32.totalorder %s26, 1
        %s332 = scalar_select %p331, %s26, 1
        %p333 = scmp.lt.s32.totalorder %s27, 1
        %s334 = scalar_select %p333, %s27, 1
        %s335 = smul.addr %s332, 2
        %s336 = sadd.s32 %s334, %s335
        %s337 = scalar_lea.vmem %s7, %s336
        %s338 = smul.u32 4, %s27
        %p339 = scmp.lt.s32.totalorder %s26, 1
        %s340 = scalar_select %p339, %s26, 1
        %p341 = scmp.lt.s32.totalorder %s338, 7
        %s342 = scalar_select %p341, %s338, 7
        %s343 = smul.addr %s342, 8
        %s344 = smul.addr %s340, 64
        %s345 = sadd.s32 %s343, %s344
        %s346 = smul.addr %s345, 8
        %s347 = scalar_lea.vmem %s5, %s346
        %s348 = smul.u32 4, %s27
        %p349 = scmp.lt.s32.totalorder %s26, 1
        %s350 = scalar_select %p349, %s26, 1
        %p351 = scmp.lt.s32.totalorder %s27, 1
        %s352 = scalar_select %p351, %s27, 1
        %s353 = smul.addr %s350, 2
        %s354 = sadd.s32 %s352, %s353
        %s355 = scalar_lea.vmem %s6, %s354
        %p356 = scmp.lt.s32.totalorder %s26, 1
        %s357 = scalar_select %p356, %s26, 1
        %p358 = scmp.lt.s32.totalorder %s27, 1
        %s359 = scalar_select %p358, %s27, 1
        %s360 = smul.addr %s357, 2
        %s361 = sadd.s32 %s359, %s360
        %s362 = scalar_lea.vmem %s7, %s361
        %s364 = smul.u32 %s27, 4
        %v365 = vld [vmem:[%s1] sm:$0x1]
        %v366 = vld [vmem:[%s2] sm:$0x1]
        %v367 = vld [vmem:[%s4] sm:$0x1]
        %vm368 = vcmask 122880
        %369 = vst.msk [vmem:[%s355] sm:$0x1] %vm368, 0.0
        %370 = vst.msk [vmem:[%s362] sm:$0x1] %vm368, 0.0
        %s371 = ssub.s32 %s364, 1
        %p372 = scmp.ge.s32.totalorder %s371, 0
        %p373 = scmp.lt.s32.totalorder %s371, 8
        %p374 = pnand %p372, %p373
        %p375 = pneg %p374
        %p376 = scmp.gt.s32.totalorder %s371, 0
        %s377 = scalar_select %p376, %s371, 0
        %p378 = scmp.lt.s32.totalorder %s377, 7
        %s379 = scalar_select %p378, %s377, 7
        %s380 = scalar_select %p375, 1, 0
        %v381 = vstv %s380
        %vm382 = vcmp.eq.s32.totalorder %v381, 1
        %v383 = vsel %vm382, %v365, 0.0
        %v384 = vsel %vm382, %v366, 0.0
        %s385 = smul.u32 %s379, 64
        %s386 = scalar_lea.vmem %s287, %s385 [#allocation3]
        %v387 = vld [vmem:[%s386] sm:$0xff]
        %v388 = vld [vmem:[%s386 + $0x8] sm:$0xff]
        %v389 = vld [vmem:[%s386 + $0x10] sm:$0xff]
        %v390 = vld [vmem:[%s386 + $0x18] sm:$0xff]
        %v391 = vld [vmem:[%s386 + $0x20] sm:$0xff]
        %v392 = vld [vmem:[%s386 + $0x28] sm:$0xff]
        %v393 = vld [vmem:[%s386 + $0x30] sm:$0xff]
        %v394 = vld [vmem:[%s386 + $0x38] sm:$0xff]
        %v396 = vperm.slane %v383, 0
        %v398 = vmul.f32 %v387, %v396
        %v399 = vmul.f32 %v388, %v396
        %v400 = vmul.f32 %v389, %v396
        %v401 = vmul.f32 %v390, %v396
        %v402 = vmul.f32 %v391, %v396
        %v403 = vmul.f32 %v392, %v396
        %v404 = vmul.f32 %v393, %v396
        %v405 = vmul.f32 %v394, %v396
        %v407 = vperm.slane %v384, 0
        %v409 = vadd.f32 %v398, %v407
        %v410 = vadd.f32 %v399, %v407
        %v411 = vadd.f32 %v400, %v407
        %v412 = vadd.f32 %v401, %v407
        %v413 = vadd.f32 %v402, %v407
        %v414 = vadd.f32 %v403, %v407
        %v415 = vadd.f32 %v404, %v407
        %v416 = vadd.f32 %v405, %v407
        %vm417 = vcmp.gt.f32.partialorder %v409, 0.0
        %vm418 = vcmp.gt.f32.partialorder %v410, 0.0
        %vm419 = vcmp.gt.f32.partialorder %v411, 0.0
        %vm420 = vcmp.gt.f32.partialorder %v412, 0.0
        %vm421 = vcmp.gt.f32.partialorder %v413, 0.0
        %vm422 = vcmp.gt.f32.partialorder %v414, 0.0
        %vm423 = vcmp.gt.f32.partialorder %v415, 0.0
        %vm424 = vcmp.gt.f32.partialorder %v416, 0.0
        %v425 = vmul.f32 %v409, 0.01
        %v426 = vmul.f32 %v410, 0.01
        %v427 = vmul.f32 %v411, 0.01
        %v428 = vmul.f32 %v412, 0.01
        %v429 = vmul.f32 %v413, 0.01
        %v430 = vmul.f32 %v414, 0.01
        %v431 = vmul.f32 %v415, 0.01
        %v432 = vmul.f32 %v416, 0.01
        %v433 = vsel %vm417, %v409, %v425
        %v434 = vsel %vm418, %v410, %v426
        %v435 = vsel %vm419, %v411, %v427
        %v436 = vsel %vm420, %v412, %v428
        %v437 = vsel %vm421, %v413, %v429
        %v438 = vsel %vm422, %v414, %v430
        %v439 = vsel %vm423, %v415, %v431
        %v440 = vsel %vm424, %v416, %v432
        %v449 = vrot.slane %v433, 7
        %v450 = vrot.slane %v434, 7
        %v451 = vrot.slane %v435, 7
        %v452 = vrot.slane %v436, 7
        %v453 = vrot.slane %v437, 7
        %v454 = vrot.slane %v438, 7
        %v455 = vrot.slane %v439, 7
        %v456 = vrot.slane %v440, 7
        %vm465 = vcmask 1040384
        %v466 = vsel %vm465, 0.0, %v449
        %v467 = vsel %vm465, 0.0, %v450
        %v468 = vsel %vm465, 0.0, %v451
        %v469 = vsel %vm465, 0.0, %v452
        %v470 = vsel %vm465, 0.0, %v453
        %v471 = vsel %vm465, 0.0, %v454
        %v472 = vsel %vm465, 0.0, %v455
        %v473 = vsel %vm465, 0.0, %v456
        %v474 = vsel %vm465, %v449, 0.0
        %v475 = vsel %vm465, %v450, 0.0
        %v476 = vsel %vm465, %v451, 0.0
        %v477 = vsel %vm465, %v452, 0.0
        %v478 = vsel %vm465, %v453, 0.0
        %v479 = vsel %vm465, %v454, 0.0
        %v480 = vsel %vm465, %v455, 0.0
        %v481 = vsel %vm465, %v456, 0.0
        %vm498 = vcmask 1046528
        %v499 = vrot.slane %v466, 1
        %v500 = vrot.slane %v474, 1
        %v501 = vsel %vm498, %v499, %v500
        %v502 = vrot.slane %v467, 1
        %v503 = vrot.slane %v475, 1
        %v504 = vsel %vm498, %v502, %v503
        %v505 = vrot.slane %v468, 1
        %v506 = vrot.slane %v476, 1
        %v507 = vsel %vm498, %v505, %v506
        %v508 = vrot.slane %v469, 1
        %v509 = vrot.slane %v477, 1
        %v510 = vsel %vm498, %v508, %v509
        %v511 = vrot.slane %v470, 1
        %v512 = vrot.slane %v478, 1
        %v513 = vsel %vm498, %v511, %v512
        %v514 = vrot.slane %v471, 1
        %v515 = vrot.slane %v479, 1
        %v516 = vsel %vm498, %v514, %v515
        %v517 = vrot.slane %v472, 1
        %v518 = vrot.slane %v480, 1
        %v519 = vsel %vm498, %v517, %v518
        %v520 = vrot.slane %v473, 1
        %v521 = vrot.slane %v481, 1
        %v522 = vsel %vm498, %v520, %v521
        %523 = vrot.lane.b32.xlu0 %v501, 16
        %v524 = vpop.permute.xlu0 %523
        %525 = vrot.lane.b32.xlu0 %v504, 16
        %v526 = vpop.permute.xlu0 %525
        %527 = vrot.lane.b32.xlu0 %v507, 16
        %v528 = vpop.permute.xlu0 %527
        %529 = vrot.lane.b32.xlu0 %v510, 16
        %v530 = vpop.permute.xlu0 %529
        %531 = vrot.lane.b32.xlu0 %v513, 16
        %v532 = vpop.permute.xlu0 %531
        %533 = vrot.lane.b32.xlu0 %v516, 16
        %v534 = vpop.permute.xlu0 %533
        %535 = vrot.lane.b32.xlu0 %v519, 16
        %v536 = vpop.permute.xlu0 %535
        %537 = vrot.lane.b32.xlu0 %v522, 16
        %v538 = vpop.permute.xlu0 %537
        %vm547 = vcmask 1045504
        %v548 = vrot.slane %v466, 2
        %v549 = vrot.slane %v474, 2
        %v550 = vsel %vm547, %v548, %v549
        %v551 = vrot.slane %v467, 2
        %v552 = vrot.slane %v475, 2
        %v553 = vsel %vm547, %v551, %v552
        %v554 = vrot.slane %v468, 2
        %v555 = vrot.slane %v476, 2
        %v556 = vsel %vm547, %v554, %v555
        %v557 = vrot.slane %v469, 2
        %v558 = vrot.slane %v477, 2
        %v559 = vsel %vm547, %v557, %v558
        %v560 = vrot.slane %v470, 2
        %v561 = vrot.slane %v478, 2
        %v562 = vsel %vm547, %v560, %v561
        %v563 = vrot.slane %v471, 2
        %v564 = vrot.slane %v479, 2
        %v565 = vsel %vm547, %v563, %v564
        %v566 = vrot.slane %v472, 2
        %v567 = vrot.slane %v480, 2
        %v568 = vsel %vm547, %v566, %v567
        %v569 = vrot.slane %v473, 2
        %v570 = vrot.slane %v481, 2
        %v571 = vsel %vm547, %v569, %v570
        %572 = vrot.lane.b32.xlu0 %v550, 32
        %v573 = vpop.permute.xlu0 %572
        %574 = vrot.lane.b32.xlu0 %v553, 32
        %v575 = vpop.permute.xlu0 %574
        %576 = vrot.lane.b32.xlu0 %v556, 32
        %v577 = vpop.permute.xlu0 %576
        %578 = vrot.lane.b32.xlu0 %v559, 32
        %v579 = vpop.permute.xlu0 %578
        %580 = vrot.lane.b32.xlu0 %v562, 32
        %v581 = vpop.permute.xlu0 %580
        %582 = vrot.lane.b32.xlu0 %v565, 32
        %v583 = vpop.permute.xlu0 %582
        %584 = vrot.lane.b32.xlu0 %v568, 32
        %v585 = vpop.permute.xlu0 %584
        %586 = vrot.lane.b32.xlu0 %v571, 32
        %v587 = vpop.permute.xlu0 %586
        %vm596 = vcmask 130048
        %v597 = vsel %vm596, %v466, %v524
        %v598 = vsel %vm596, %v467, %v526
        %v599 = vsel %vm596, %v468, %v528
        %v600 = vsel %vm596, %v469, %v530
        %v601 = vsel %vm596, %v470, %v532
        %v602 = vsel %vm596, %v471, %v534
        %v603 = vsel %vm596, %v472, %v536
        %v604 = vsel %vm596, %v473, %v538
        %vm605 = vcmask 261120
        %v606 = vsel %vm605, %v597, %v573
        %v607 = vsel %vm605, %v598, %v575
        %v608 = vsel %vm605, %v599, %v577
        %v609 = vsel %vm605, %v600, %v579
        %v610 = vsel %vm605, %v601, %v581
        %v611 = vsel %vm605, %v602, %v583
        %v612 = vsel %vm605, %v603, %v585
        %v613 = vsel %vm605, %v604, %v587
        %v614 = vpack.c.bf16 %v606, %v606
        %v615 = vpack.c.bf16 %v607, %v607
        %v616 = vpack.c.bf16 %v608, %v608
        %v617 = vpack.c.bf16 %v609, %v609
        %v618 = vpack.c.bf16 %v610, %v610
        %v619 = vpack.c.bf16 %v611, %v611
        %v620 = vpack.c.bf16 %v612, %v612
        %v621 = vpack.c.bf16 %v613, %v613
        %vm622 = vcmask 388096
        %623 = vst.msk [vmem:[#allocation2] sm:$0xf] %vm622, 0
        %624 = vst.msk [vmem:[#allocation2 + $0x4] sm:$0xf] %vm622, %v614
        %625 = vst.msk [vmem:[#allocation2 + $0x8] sm:$0xf] %vm622, %v615
        %626 = vst.msk [vmem:[#allocation2 + $0xc] sm:$0xf] %vm622, %v616
        %627 = vst.msk [vmem:[#allocation2 + $0x10] sm:$0xf] %vm622, %v617
        %628 = vst.msk [vmem:[#allocation2 + $0x14] sm:$0xf] %vm622, %v618
        %629 = vst.msk [vmem:[#allocation2 + $0x18] sm:$0xf] %vm622, %v619
        %630 = vst.msk [vmem:[#allocation2 + $0x1c] sm:$0xf] %vm622, %v620
        %631 = vst.msk [vmem:[#allocation2 + $0x20] sm:$0xf] %vm622, %v621
        %632 = vst.msk [vmem:[#allocation2 + $0x24] sm:$0xf] %vm622, 0
        %p633 = scmp.ge.s32.totalorder %s364, 0
        %p634 = scmp.lt.s32.totalorder %s364, 8
        %p635 = pnand %p633, %p634
        %p636 = pneg %p635
        %p637 = scmp.gt.s32.totalorder %s364, 0
        %s638 = scalar_select %p637, %s364, 0
        %p639 = scmp.lt.s32.totalorder %s638, 7
        %s640 = scalar_select %p639, %s638, 7
        %s641 = scalar_select %p636, 1, 0
        %v642 = vstv %s641
        %vm643 = vcmp.eq.s32.totalorder %v642, 1
        %v644 = vsel %vm643, %v365, 0.0
        %v645 = vsel %vm643, %v366, 0.0
        %s646 = smul.u32 %s640, 64
        %s647 = scalar_lea.vmem %s287, %s646 [#allocation3]
        %v648 = vld [vmem:[%s647] sm:$0xff]
        %v649 = vld [vmem:[%s647 + $0x8] sm:$0xff]
        %v650 = vld [vmem:[%s647 + $0x10] sm:$0xff]
        %v651 = vld [vmem:[%s647 + $0x18] sm:$0xff]
        %v652 = vld [vmem:[%s647 + $0x20] sm:$0xff]
        %v653 = vld [vmem:[%s647 + $0x28] sm:$0xff]
        %v654 = vld [vmem:[%s647 + $0x30] sm:$0xff]
        %v655 = vld [vmem:[%s647 + $0x38] sm:$0xff]
        %v657 = vperm.slane %v644, 0
        %v659 = vmul.f32 %v648, %v657
        %v660 = vmul.f32 %v649, %v657
        %v661 = vmul.f32 %v650, %v657
        %v662 = vmul.f32 %v651, %v657
        %v663 = vmul.f32 %v652, %v657
        %v664 = vmul.f32 %v653, %v657
        %v665 = vmul.f32 %v654, %v657
        %v666 = vmul.f32 %v655, %v657
        %v668 = vperm.slane %v645, 0
        %v670 = vadd.f32 %v659, %v668
        %v671 = vadd.f32 %v660, %v668
        %v672 = vadd.f32 %v661, %v668
        %v673 = vadd.f32 %v662, %v668
        %v674 = vadd.f32 %v663, %v668
        %v675 = vadd.f32 %v664, %v668
        %v676 = vadd.f32 %v665, %v668
        %v677 = vadd.f32 %v666, %v668
        %vm678 = vcmp.gt.f32.partialorder %v670, 0.0
        %vm679 = vcmp.gt.f32.partialorder %v671, 0.0
        %vm680 = vcmp.gt.f32.partialorder %v672, 0.0
        %vm681 = vcmp.gt.f32.partialorder %v673, 0.0
        %vm682 = vcmp.gt.f32.partialorder %v674, 0.0
        %vm683 = vcmp.gt.f32.partialorder %v675, 0.0
        %vm684 = vcmp.gt.f32.partialorder %v676, 0.0
        %vm685 = vcmp.gt.f32.partialorder %v677, 0.0
        %v686 = vmul.f32 %v670, 0.01
        %v687 = vmul.f32 %v671, 0.01
        %v688 = vmul.f32 %v672, 0.01
        %v689 = vmul.f32 %v673, 0.01
        %v690 = vmul.f32 %v674, 0.01
        %v691 = vmul.f32 %v675, 0.01
        %v692 = vmul.f32 %v676, 0.01
        %v693 = vmul.f32 %v677, 0.01
        %v694 = vsel %vm678, %v670, %v686
        %v695 = vsel %vm679, %v671, %v687
        %v696 = vsel %vm680, %v672, %v688
        %v697 = vsel %vm681, %v673, %v689
        %v698 = vsel %vm682, %v674, %v690
        %v699 = vsel %vm683, %v675, %v691
        %v700 = vsel %vm684, %v676, %v692
        %v701 = vsel %vm685, %v677, %v693
        %v710 = vrot.slane %v694, 7
        %v711 = vrot.slane %v695, 7
        %v712 = vrot.slane %v696, 7
        %v713 = vrot.slane %v697, 7
        %v714 = vrot.slane %v698, 7
        %v715 = vrot.slane %v699, 7
        %v716 = vrot.slane %v700, 7
        %v717 = vrot.slane %v701, 7
        %v726 = vsel %vm465, 0.0, %v710
        %v727 = vsel %vm465, 0.0, %v711
        %v728 = vsel %vm465, 0.0, %v712
        %v729 = vsel %vm465, 0.0, %v713
        %v730 = vsel %vm465, 0.0, %v714
        %v731 = vsel %vm465, 0.0, %v715
        %v732 = vsel %vm465, 0.0, %v716
        %v733 = vsel %vm465, 0.0, %v717
        %v734 = vsel %vm465, %v710, 0.0
        %v735 = vsel %vm465, %v711, 0.0
        %v736 = vsel %vm465, %v712, 0.0
        %v737 = vsel %vm465, %v713, 0.0
        %v738 = vsel %vm465, %v714, 0.0
        %v739 = vsel %vm465, %v715, 0.0
        %v740 = vsel %vm465, %v716, 0.0
        %v741 = vsel %vm465, %v717, 0.0
        %v758 = vrot.slane %v726, 1
        %v759 = vrot.slane %v734, 1
        %v760 = vsel %vm498, %v758, %v759
        %v761 = vrot.slane %v727, 1
        %v762 = vrot.slane %v735, 1
        %v763 = vsel %vm498, %v761, %v762
        %v764 = vrot.slane %v728, 1
        %v765 = vrot.slane %v736, 1
        %v766 = vsel %vm498, %v764, %v765
        %v767 = vrot.slane %v729, 1
        %v768 = vrot.slane %v737, 1
        %v769 = vsel %vm498, %v767, %v768
        %v770 = vrot.slane %v730, 1
        %v771 = vrot.slane %v738, 1
        %v772 = vsel %vm498, %v770, %v771
        %v773 = vrot.slane %v731, 1
        %v774 = vrot.slane %v739, 1
        %v775 = vsel %vm498, %v773, %v774
        %v776 = vrot.slane %v732, 1
        %v777 = vrot.slane %v740, 1
        %v778 = vsel %vm498, %v776, %v777
        %v779 = vrot.slane %v733, 1
        %v780 = vrot.slane %v741, 1
        %v781 = vsel %vm498, %v779, %v780
        %782 = vrot.lane.b32.xlu0 %v760, 16
        %v783 = vpop.permute.xlu0 %782
        %784 = vrot.lane.b32.xlu0 %v763, 16
        %v785 = vpop.permute.xlu0 %784
        %786 = vrot.lane.b32.xlu0 %v766, 16
        %v787 = vpop.permute.xlu0 %786
        %788 = vrot.lane.b32.xlu0 %v769, 16
        %v789 = vpop.permute.xlu0 %788
        %790 = vrot.lane.b32.xlu0 %v772, 16
        %v791 = vpop.permute.xlu0 %790
        %792 = vrot.lane.b32.xlu0 %v775, 16
        %v793 = vpop.permute.xlu0 %792
        %794 = vrot.lane.b32.xlu0 %v778, 16
        %v795 = vpop.permute.xlu0 %794
        %796 = vrot.lane.b32.xlu0 %v781, 16
        %v797 = vpop.permute.xlu0 %796
        %v806 = vrot.slane %v726, 2
        %v807 = vrot.slane %v734, 2
        %v808 = vsel %vm547, %v806, %v807
        %v809 = vrot.slane %v727, 2
        %v810 = vrot.slane %v735, 2
        %v811 = vsel %vm547, %v809, %v810
        %v812 = vrot.slane %v728, 2
        %v813 = vrot.slane %v736, 2
        %v814 = vsel %vm547, %v812, %v813
        %v815 = vrot.slane %v729, 2
        %v816 = vrot.slane %v737, 2
        %v817 = vsel %vm547, %v815, %v816
        %v818 = vrot.slane %v730, 2
        %v819 = vrot.slane %v738, 2
        %v820 = vsel %vm547, %v818, %v819
        %v821 = vrot.slane %v731, 2
        %v822 = vrot.slane %v739, 2
        %v823 = vsel %vm547, %v821, %v822
        %v824 = vrot.slane %v732, 2
        %v825 = vrot.slane %v740, 2
        %v826 = vsel %vm547, %v824, %v825
        %v827 = vrot.slane %v733, 2
        %v828 = vrot.slane %v741, 2
        %v829 = vsel %vm547, %v827, %v828
        %830 = vrot.lane.b32.xlu0 %v808, 32
        %v831 = vpop.permute.xlu0 %830
        %832 = vrot.lane.b32.xlu0 %v811, 32
        %v833 = vpop.permute.xlu0 %832
        %834 = vrot.lane.b32.xlu0 %v814, 32
        %v835 = vpop.permute.xlu0 %834
        %836 = vrot.lane.b32.xlu0 %v817, 32
        %v837 = vpop.permute.xlu0 %836
        %838 = vrot.lane.b32.xlu0 %v820, 32
        %v839 = vpop.permute.xlu0 %838
        %840 = vrot.lane.b32.xlu0 %v823, 32
        %v841 = vpop.permute.xlu0 %840
        %842 = vrot.lane.b32.xlu0 %v826, 32
        %v843 = vpop.permute.xlu0 %842
        %844 = vrot.lane.b32.xlu0 %v829, 32
        %v845 = vpop.permute.xlu0 %844
        %v854 = vsel %vm596, %v726, %v783
        %v855 = vsel %vm596, %v727, %v785
        %v856 = vsel %vm596, %v728, %v787
        %v857 = vsel %vm596, %v729, %v789
        %v858 = vsel %vm596, %v730, %v791
        %v859 = vsel %vm596, %v731, %v793
        %v860 = vsel %vm596, %v732, %v795
        %v861 = vsel %vm596, %v733, %v797
        %v862 = vsel %vm605, %v854, %v831
        %v863 = vsel %vm605, %v855, %v833
        %v864 = vsel %vm605, %v856, %v835
        %v865 = vsel %vm605, %v857, %v837
        %v866 = vsel %vm605, %v858, %v839
        %v867 = vsel %vm605, %v859, %v841
        %v868 = vsel %vm605, %v860, %v843
        %v869 = vsel %vm605, %v861, %v845
        %v870 = vpack.c.bf16 %v862, %v862
        %v871 = vpack.c.bf16 %v863, %v863
        %v872 = vpack.c.bf16 %v864, %v864
        %v873 = vpack.c.bf16 %v865, %v865
        %v874 = vpack.c.bf16 %v866, %v866
        %v875 = vpack.c.bf16 %v867, %v867
        %v876 = vpack.c.bf16 %v868, %v868
        %v877 = vpack.c.bf16 %v869, %v869
        %s878 = scalar_lea.vmem [#allocation2], 40
        %879 = vst.msk [vmem:[%s878] sm:$0xf] %vm622, 0
        %880 = vst.msk [vmem:[%s878 + $0x4] sm:$0xf] %vm622, %v870
        %881 = vst.msk [vmem:[%s878 + $0x8] sm:$0xf] %vm622, %v871
        %882 = vst.msk [vmem:[%s878 + $0xc] sm:$0xf] %vm622, %v872
        %883 = vst.msk [vmem:[%s878 + $0x10] sm:$0xf] %vm622, %v873
        %884 = vst.msk [vmem:[%s878 + $0x14] sm:$0xf] %vm622, %v874
        %885 = vst.msk [vmem:[%s878 + $0x18] sm:$0xf] %vm622, %v875
        %886 = vst.msk [vmem:[%s878 + $0x1c] sm:$0xf] %vm622, %v876
        %887 = vst.msk [vmem:[%s878 + $0x20] sm:$0xf] %vm622, %v877
        %888 = vst.msk [vmem:[%s878 + $0x24] sm:$0xf] %vm622, 0
        loop: start=0, step=1, limit=4
        $region45: #{en_block2_forward.4} parent=39 // loop_pre_header
          _
        $region46: #{en_block2_forward.4} parent=39 // loop_header
          %s890 = sphi 0, %s894
          %p891 = scmp.ge.s32.totalorder %s890, 4
        $region47: #{en_block2_forward.4} parent=39 // loop_header_branch
          %893 = sbr.rel (%p891) target = $region51
        $region48: #{en_block2_forward.4} parent=39 // loop_body
          %s895 = sadd.s32 %s890, 2
          %s896 = sand.u32 %s895, 3
          %s897 = sadd.s32 %s364, %s890
          %s898 = sadd.s32 %s897, 1
          %p899 = scmp.ge.s32.totalorder %s898, 0
          %p900 = scmp.lt.s32.totalorder %s898, 8
          %p901 = pnand %p899, %p900
          %p902 = pneg %p901
          %p903 = scmp.gt.s32.totalorder %s898, 0
          %s904 = scalar_select %p903, %s898, 0
          %p905 = scmp.lt.s32.totalorder %s904, 7
          %s906 = scalar_select %p905, %s904, 7
          %s907 = scalar_select %p902, 1, 0
          %v908 = vstv %s907
          %vm909 = vcmp.eq.s32.totalorder %v908, 1
          %v910 = vsel %vm909, %v365, 0.0
          %v911 = vsel %vm909, %v366, 0.0
          %s912 = smul.u32 %s906, 64
          %s913 = scalar_lea.vmem %s287, %s912 [#allocation3]
          %v914 = vld [vmem:[%s913] sm:$0xff]
          %v915 = vld [vmem:[%s913 + $0x8] sm:$0xff]
          %v916 = vld [vmem:[%s913 + $0x10] sm:$0xff]
          %v917 = vld [vmem:[%s913 + $0x18] sm:$0xff]
          %v918 = vld [vmem:[%s913 + $0x20] sm:$0xff]
          %v919 = vld [vmem:[%s913 + $0x28] sm:$0xff]
          %v920 = vld [vmem:[%s913 + $0x30] sm:$0xff]
          %v921 = vld [vmem:[%s913 + $0x38] sm:$0xff]
          %v923 = vperm.slane %v910, 0
          %v925 = vmul.f32 %v914, %v923
          %v926 = vmul.f32 %v915, %v923
          %v927 = vmul.f32 %v916, %v923
          %v928 = vmul.f32 %v917, %v923
          %v929 = vmul.f32 %v918, %v923
          %v930 = vmul.f32 %v919, %v923
          %v931 = vmul.f32 %v920, %v923
          %v932 = vmul.f32 %v921, %v923
          %v934 = vperm.slane %v911, 0
          %v936 = vadd.f32 %v925, %v934
          %v937 = vadd.f32 %v926, %v934
          %v938 = vadd.f32 %v927, %v934
          %v939 = vadd.f32 %v928, %v934
          %v940 = vadd.f32 %v929, %v934
          %v941 = vadd.f32 %v930, %v934
          %v942 = vadd.f32 %v931, %v934
          %v943 = vadd.f32 %v932, %v934
          %vm944 = vcmp.gt.f32.partialorder %v936, 0.0
          %vm945 = vcmp.gt.f32.partialorder %v937, 0.0
          %vm946 = vcmp.gt.f32.partialorder %v938, 0.0
          %vm947 = vcmp.gt.f32.partialorder %v939, 0.0
          %vm948 = vcmp.gt.f32.partialorder %v940, 0.0
          %vm949 = vcmp.gt.f32.partialorder %v941, 0.0
          %vm950 = vcmp.gt.f32.partialorder %v942, 0.0
          %vm951 = vcmp.gt.f32.partialorder %v943, 0.0
          %v952 = vmul.f32 %v936, 0.01
          %v953 = vmul.f32 %v937, 0.01
          %v954 = vmul.f32 %v938, 0.01
          %v955 = vmul.f32 %v939, 0.01
          %v956 = vmul.f32 %v940, 0.01
          %v957 = vmul.f32 %v941, 0.01
          %v958 = vmul.f32 %v942, 0.01
          %v959 = vmul.f32 %v943, 0.01
          %v960 = vsel %vm944, %v936, %v952
          %v961 = vsel %vm945, %v937, %v953
          %v962 = vsel %vm946, %v938, %v954
          %v963 = vsel %vm947, %v939, %v955
          %v964 = vsel %vm948, %v940, %v956
          %v965 = vsel %vm949, %v941, %v957
          %v966 = vsel %vm950, %v942, %v958
          %v967 = vsel %vm951, %v943, %v959
          %v976 = vrot.slane %v960, 7
          %v977 = vrot.slane %v961, 7
          %v978 = vrot.slane %v962, 7
          %v979 = vrot.slane %v963, 7
          %v980 = vrot.slane %v964, 7
          %v981 = vrot.slane %v965, 7
          %v982 = vrot.slane %v966, 7
          %v983 = vrot.slane %v967, 7
          %v992 = vsel %vm465, 0.0, %v976
          %v993 = vsel %vm465, 0.0, %v977
          %v994 = vsel %vm465, 0.0, %v978
          %v995 = vsel %vm465, 0.0, %v979
          %v996 = vsel %vm465, 0.0, %v980
          %v997 = vsel %vm465, 0.0, %v981
          %v998 = vsel %vm465, 0.0, %v982
          %v999 = vsel %vm465, 0.0, %v983
          %v1000 = vsel %vm465, %v976, 0.0
          %v1001 = vsel %vm465, %v977, 0.0
          %v1002 = vsel %vm465, %v978, 0.0
          %v1003 = vsel %vm465, %v979, 0.0
          %v1004 = vsel %vm465, %v980, 0.0
          %v1005 = vsel %vm465, %v981, 0.0
          %v1006 = vsel %vm465, %v982, 0.0
          %v1007 = vsel %vm465, %v983, 0.0
          %v1024 = vrot.slane %v992, 1
          %v1025 = vrot.slane %v1000, 1
          %v1026 = vsel %vm498, %v1024, %v1025
          %v1027 = vrot.slane %v993, 1
          %v1028 = vrot.slane %v1001, 1
          %v1029 = vsel %vm498, %v1027, %v1028
          %v1030 = vrot.slane %v994, 1
          %v1031 = vrot.slane %v1002, 1
          %v1032 = vsel %vm498, %v1030, %v1031
          %v1033 = vrot.slane %v995, 1
          %v1034 = vrot.slane %v1003, 1
          %v1035 = vsel %vm498, %v1033, %v1034
          %v1036 = vrot.slane %v996, 1
          %v1037 = vrot.slane %v1004, 1
          %v1038 = vsel %vm498, %v1036, %v1037
          %v1039 = vrot.slane %v997, 1
          %v1040 = vrot.slane %v1005, 1
          %v1041 = vsel %vm498, %v1039, %v1040
          %v1042 = vrot.slane %v998, 1
          %v1043 = vrot.slane %v1006, 1
          %v1044 = vsel %vm498, %v1042, %v1043
          %v1045 = vrot.slane %v999, 1
          %v1046 = vrot.slane %v1007, 1
          %v1047 = vsel %vm498, %v1045, %v1046
          %1048 = vrot.lane.b32.xlu0 %v1026, 16
          %v1049 = vpop.permute.xlu0 %1048
          %1050 = vrot.lane.b32.xlu0 %v1029, 16
          %v1051 = vpop.permute.xlu0 %1050
          %1052 = vrot.lane.b32.xlu0 %v1032, 16
          %v1053 = vpop.permute.xlu0 %1052
          %1054 = vrot.lane.b32.xlu0 %v1035, 16
          %v1055 = vpop.permute.xlu0 %1054
          %1056 = vrot.lane.b32.xlu0 %v1038, 16
          %v1057 = vpop.permute.xlu0 %1056
          %1058 = vrot.lane.b32.xlu0 %v1041, 16
          %v1059 = vpop.permute.xlu0 %1058
          %1060 = vrot.lane.b32.xlu0 %v1044, 16
          %v1061 = vpop.permute.xlu0 %1060
          %1062 = vrot.lane.b32.xlu0 %v1047, 16
          %v1063 = vpop.permute.xlu0 %1062
          %v1072 = vrot.slane %v992, 2
          %v1073 = vrot.slane %v1000, 2
          %v1074 = vsel %vm547, %v1072, %v1073
          %v1075 = vrot.slane %v993, 2
          %v1076 = vrot.slane %v1001, 2
          %v1077 = vsel %vm547, %v1075, %v1076
          %v1078 = vrot.slane %v994, 2
          %v1079 = vrot.slane %v1002, 2
          %v1080 = vsel %vm547, %v1078, %v1079
          %v1081 = vrot.slane %v995, 2
          %v1082 = vrot.slane %v1003, 2
          %v1083 = vsel %vm547, %v1081, %v1082
          %v1084 = vrot.slane %v996, 2
          %v1085 = vrot.slane %v1004, 2
          %v1086 = vsel %vm547, %v1084, %v1085
          %v1087 = vrot.slane %v997, 2
          %v1088 = vrot.slane %v1005, 2
          %v1089 = vsel %vm547, %v1087, %v1088
          %v1090 = vrot.slane %v998, 2
          %v1091 = vrot.slane %v1006, 2
          %v1092 = vsel %vm547, %v1090, %v1091
          %v1093 = vrot.slane %v999, 2
          %v1094 = vrot.slane %v1007, 2
          %v1095 = vsel %vm547, %v1093, %v1094
          %1096 = vrot.lane.b32.xlu0 %v1074, 32
          %v1097 = vpop.permute.xlu0 %1096
          %1098 = vrot.lane.b32.xlu0 %v1077, 32
          %v1099 = vpop.permute.xlu0 %1098
          %1100 = vrot.lane.b32.xlu0 %v1080, 32
          %v1101 = vpop.permute.xlu0 %1100
          %1102 = vrot.lane.b32.xlu0 %v1083, 32
          %v1103 = vpop.permute.xlu0 %1102
          %1104 = vrot.lane.b32.xlu0 %v1086, 32
          %v1105 = vpop.permute.xlu0 %1104
          %1106 = vrot.lane.b32.xlu0 %v1089, 32
          %v1107 = vpop.permute.xlu0 %1106
          %1108 = vrot.lane.b32.xlu0 %v1092, 32
          %v1109 = vpop.permute.xlu0 %1108
          %1110 = vrot.lane.b32.xlu0 %v1095, 32
          %v1111 = vpop.permute.xlu0 %1110
          %v1120 = vsel %vm596, %v992, %v1049
          %v1121 = vsel %vm596, %v993, %v1051
          %v1122 = vsel %vm596, %v994, %v1053
          %v1123 = vsel %vm596, %v995, %v1055
          %v1124 = vsel %vm596, %v996, %v1057
          %v1125 = vsel %vm596, %v997, %v1059
          %v1126 = vsel %vm596, %v998, %v1061
          %v1127 = vsel %vm596, %v999, %v1063
          %v1128 = vsel %vm605, %v1120, %v1097
          %v1129 = vsel %vm605, %v1121, %v1099
          %v1130 = vsel %vm605, %v1122, %v1101
          %v1131 = vsel %vm605, %v1123, %v1103
          %v1132 = vsel %vm605, %v1124, %v1105
          %v1133 = vsel %vm605, %v1125, %v1107
          %v1134 = vsel %vm605, %v1126, %v1109
          %v1135 = vsel %vm605, %v1127, %v1111
          %v1136 = vpack.c.bf16 %v1128, %v1128
          %v1137 = vpack.c.bf16 %v1129, %v1129
          %v1138 = vpack.c.bf16 %v1130, %v1130
          %v1139 = vpack.c.bf16 %v1131, %v1131
          %v1140 = vpack.c.bf16 %v1132, %v1132
          %v1141 = vpack.c.bf16 %v1133, %v1133
          %v1142 = vpack.c.bf16 %v1134, %v1134
          %v1143 = vpack.c.bf16 %v1135, %v1135
          %s1144 = smul.u32 %s896, 10
          %s1145 = smul.addr %s1144, 4
          %s1146 = scalar_lea.vmem [#allocation2], %s1145
          %1147 = vst.msk [vmem:[%s1146] sm:$0xf] %vm622, 0
          %1148 = vst.msk [vmem:[%s1146 + $0x4] sm:$0xf] %vm622, %v1136
          %1149 = vst.msk [vmem:[%s1146 + $0x8] sm:$0xf] %vm622, %v1137
          %1150 = vst.msk [vmem:[%s1146 + $0xc] sm:$0xf] %vm622, %v1138
          %1151 = vst.msk [vmem:[%s1146 + $0x10] sm:$0xf] %vm622, %v1139
          %1152 = vst.msk [vmem:[%s1146 + $0x14] sm:$0xf] %vm622, %v1140
          %1153 = vst.msk [vmem:[%s1146 + $0x18] sm:$0xf] %vm622, %v1141
          %1154 = vst.msk [vmem:[%s1146 + $0x1c] sm:$0xf] %vm622, %v1142
          %1155 = vst.msk [vmem:[%s1146 + $0x20] sm:$0xf] %vm622, %v1143
          %1156 = vst.msk [vmem:[%s1146 + $0x24] sm:$0xf] %vm622, 0
          %s1157 = sand.u32 %s890, 3
          %s1158 = smul.u32 %s1157, 10
          %s1159 = smul.addr %s1158, 4
          %s1160 = scalar_lea.vmem [#allocation2], %s1159
          %v1161 = vld [vmem:[%s1160] sm:$0xf]
          %v1162 = vld [vmem:[%s1160 + $0x4] sm:$0xf]
          %v1163 = vld [vmem:[%s1160 + $0x8] sm:$0xf]
          %v1164 = vld [vmem:[%s1160 + $0xc] sm:$0xf]
          %v1165 = vld [vmem:[%s1160 + $0x10] sm:$0xf]
          %v1166 = vld [vmem:[%s1160 + $0x14] sm:$0xf]
          %v1167 = vld [vmem:[%s1160 + $0x18] sm:$0xf]
          %v1168 = vld [vmem:[%s1160 + $0x1c] sm:$0xf]
          %v1169 = vld [vmem:[%s3] sm:$0xf]
          %v1170 = vld [vmem:[%s3 + $0x4] sm:$0xf]
          %v1171 = vld [vmem:[%s3 + $0x8] sm:$0xf]
          %v1172 = vld [vmem:[%s3 + $0xc] sm:$0xf]
          %v1173 = vld [vmem:[%s3 + $0x10] sm:$0xf]
          %v1174 = vld [vmem:[%s3 + $0x14] sm:$0xf]
          %s1175 = sadd.s32 1, %s1158
          %s1176 = smul.addr %s1175, 4
          %s1177 = scalar_lea.vmem [#allocation2], %s1176
          %v1178 = vld [vmem:[%s1177] sm:$0xf]
          %v1179 = vld [vmem:[%s1177 + $0x4] sm:$0xf]
          %v1180 = vld [vmem:[%s1177 + $0x8] sm:$0xf]
          %v1181 = vld [vmem:[%s1177 + $0xc] sm:$0xf]
          %v1182 = vld [vmem:[%s1177 + $0x10] sm:$0xf]
          %v1183 = vld [vmem:[%s1177 + $0x14] sm:$0xf]
          %v1184 = vld [vmem:[%s1177 + $0x18] sm:$0xf]
          %v1185 = vld [vmem:[%s1177 + $0x1c] sm:$0xf]
          %s1186 = scalar_lea.vmem %s3, 24
          %v1187 = vld [vmem:[%s1186] sm:$0xf]
          %v1188 = vld [vmem:[%s1186 + $0x4] sm:$0xf]
          %v1189 = vld [vmem:[%s1186 + $0x8] sm:$0xf]
          %v1190 = vld [vmem:[%s1186 + $0xc] sm:$0xf]
          %v1191 = vld [vmem:[%s1186 + $0x10] sm:$0xf]
          %v1192 = vld [vmem:[%s1186 + $0x14] sm:$0xf]
          %v1201 = vunpack.c.l.b16 %v1178
          %v1202 = vunpack.c.l.b16 %v1179
          %v1203 = vunpack.c.l.b16 %v1180
          %v1204 = vunpack.c.l.b16 %v1181
          %v1205 = vunpack.c.l.b16 %v1182
          %v1206 = vunpack.c.l.b16 %v1183
          %v1207 = vunpack.c.l.b16 %v1184
          %v1208 = vunpack.c.l.b16 %v1185
          %v1209 = vpack.c.b16 %v1202, %v1201
          %v1210 = vpack.c.b16 %v1204, %v1203
          %v1211 = vpack.c.b16 %v1206, %v1205
          %v1212 = vpack.c.b16 %v1208, %v1207
          %v1219 = vunpack.c.l.b16 %v1187
          %v1220 = vunpack.c.l.b16 %v1188
          %v1221 = vunpack.c.l.b16 %v1189
          %v1222 = vunpack.c.l.b16 %v1190
          %v1223 = vunpack.c.l.b16 %v1191
          %v1224 = vunpack.c.l.b16 %v1192
          %v1225 = vpack.c.b16 %v1220, %v1219
          %v1226 = vpack.c.b16 %v1222, %v1221
          %v1227 = vpack.c.b16 %v1224, %v1223
          %vm1231 = vcmask 392192
          %v1233 = vsel %vm1231, %v1209, 0
          %v1236 = vsel %vm1231, %v1210, 0
          %v1239 = vsel %vm1231, %v1211, 0
          %v1242 = vsel %vm1231, %v1212, 0
          %1244 = vmatpush.bf16.msra.mxu0 0
          %1245 = vmatpush.bf16.msra.mxu0 0
          %1246 = vmatpush.bf16.msra.mxu0 0
          %1247 = vmatpush.bf16.msra.mxu0 0
          %1248 = vmatpush.bf16.msra.mxu0 0
          %1249 = vmatpush.bf16.msra.mxu0 %v1227
          %1250 = vmatpush.bf16.msra.mxu0 %v1226
          %1251 = vmatpush.bf16.msra.mxu0 %v1225
          %1252 = vmatmul.bf16.gmra.mxu0 %v1233
          %v1253 = vpop.f32.mrf.mxu0
          %v1254 = vadd.f32 0.0, %v1253
          %v1255 = vpop.f32.mrf.mxu0
          %v1256 = vadd.f32 0.0, %v1255
          %1257 = vmatmul.bf16.gmra.mxu0 %v1236
          %v1258 = vpop.f32.mrf.mxu0
          %v1259 = vadd.f32 0.0, %v1258
          %v1260 = vpop.f32.mrf.mxu0
          %v1261 = vadd.f32 0.0, %v1260
          %1262 = vmatmul.bf16.gmra.mxu0 %v1239
          %v1263 = vpop.f32.mrf.mxu0
          %v1264 = vadd.f32 0.0, %v1263
          %v1265 = vpop.f32.mrf.mxu0
          %v1266 = vadd.f32 0.0, %v1265
          %1267 = vmatmul.bf16.gmra.mxu0 %v1242
          %v1268 = vpop.f32.mrf.mxu0
          %v1269 = vadd.f32 0.0, %v1268
          %v1270 = vpop.f32.mrf.mxu0
          %v1271 = vadd.f32 0.0, %v1270
          %1272 = vdwg.mxu0
          %v1281 = vunpack.c.l.b16 %v1161
          %v1282 = vunpack.c.l.b16 %v1162
          %v1283 = vunpack.c.l.b16 %v1163
          %v1284 = vunpack.c.l.b16 %v1164
          %v1285 = vunpack.c.l.b16 %v1165
          %v1286 = vunpack.c.l.b16 %v1166
          %v1287 = vunpack.c.l.b16 %v1167
          %v1288 = vunpack.c.l.b16 %v1168
          %v1289 = vpack.c.b16 %v1282, %v1281
          %v1290 = vpack.c.b16 %v1284, %v1283
          %v1291 = vpack.c.b16 %v1286, %v1285
          %v1292 = vpack.c.b16 %v1288, %v1287
          %v1299 = vunpack.c.l.b16 %v1169
          %v1300 = vunpack.c.l.b16 %v1170
          %v1301 = vunpack.c.l.b16 %v1171
          %v1302 = vunpack.c.l.b16 %v1172
          %v1303 = vunpack.c.l.b16 %v1173
          %v1304 = vunpack.c.l.b16 %v1174
          %v1305 = vpack.c.b16 %v1300, %v1299
          %v1306 = vpack.c.b16 %v1302, %v1301
          %v1307 = vpack.c.b16 %v1304, %v1303
          %v1312 = vsel %vm1231, %v1289, 0
          %v1315 = vsel %vm1231, %v1290, 0
          %v1318 = vsel %vm1231, %v1291, 0
          %v1321 = vsel %vm1231, %v1292, 0
          %1323 = vmatpush.bf16.msra.mxu0 0
          %1324 = vmatpush.bf16.msra.mxu0 0
          %1325 = vmatpush.bf16.msra.mxu0 0
          %1326 = vmatpush.bf16.msra.mxu0 0
          %1327 = vmatpush.bf16.msra.mxu0 0
          %1328 = vmatpush.bf16.msra.mxu0 %v1307
          %1329 = vmatpush.bf16.msra.mxu0 %v1306
          %1330 = vmatpush.bf16.msra.mxu0 %v1305
          %1331 = vmatmul.bf16.gmra.mxu0 %v1312
          %v1332 = vpop.f32.mrf.mxu0
          %v1333 = vadd.f32 %v1254, %v1332
          %v1334 = vpop.f32.mrf.mxu0
          %v1335 = vadd.f32 %v1256, %v1334
          %1336 = vmatmul.bf16.gmra.mxu0 %v1315
          %v1337 = vpop.f32.mrf.mxu0
          %v1338 = vadd.f32 %v1259, %v1337
          %v1339 = vpop.f32.mrf.mxu0
          %v1340 = vadd.f32 %v1261, %v1339
          %1341 = vmatmul.bf16.gmra.mxu0 %v1318
          %v1342 = vpop.f32.mrf.mxu0
          %v1343 = vadd.f32 %v1264, %v1342
          %v1344 = vpop.f32.mrf.mxu0
          %v1345 = vadd.f32 %v1266, %v1344
          %1346 = vmatmul.bf16.gmra.mxu0 %v1321
          %v1347 = vpop.f32.mrf.mxu0
          %v1348 = vadd.f32 %v1269, %v1347
          %v1349 = vpop.f32.mrf.mxu0
          %v1350 = vadd.f32 %v1271, %v1349
          %1351 = vdwg.mxu0
          %s1352 = sadd.s32 2, %s1158
          %s1353 = smul.addr %s1352, 4
          %s1354 = scalar_lea.vmem [#allocation2], %s1353
          %v1355 = vld [vmem:[%s1354] sm:$0xf]
          %v1356 = vld [vmem:[%s1354 + $0x4] sm:$0xf]
          %v1357 = vld [vmem:[%s1354 + $0x8] sm:$0xf]
          %v1358 = vld [vmem:[%s1354 + $0xc] sm:$0xf]
          %v1359 = vld [vmem:[%s1354 + $0x10] sm:$0xf]
          %v1360 = vld [vmem:[%s1354 + $0x14] sm:$0xf]
          %v1361 = vld [vmem:[%s1354 + $0x18] sm:$0xf]
          %v1362 = vld [vmem:[%s1354 + $0x1c] sm:$0xf]
          %s1363 = scalar_lea.vmem %s3, 48
          %v1364 = vld [vmem:[%s1363] sm:$0xf]
          %v1365 = vld [vmem:[%s1363 + $0x4] sm:$0xf]
          %v1366 = vld [vmem:[%s1363 + $0x8] sm:$0xf]
          %v1367 = vld [vmem:[%s1363 + $0xc] sm:$0xf]
          %v1368 = vld [vmem:[%s1363 + $0x10] sm:$0xf]
          %v1369 = vld [vmem:[%s1363 + $0x14] sm:$0xf]
          %v1378 = vunpack.c.l.b16 %v1355
          %v1379 = vunpack.c.l.b16 %v1356
          %v1380 = vunpack.c.l.b16 %v1357
          %v1381 = vunpack.c.l.b16 %v1358
          %v1382 = vunpack.c.l.b16 %v1359
          %v1383 = vunpack.c.l.b16 %v1360
          %v1384 = vunpack.c.l.b16 %v1361
          %v1385 = vunpack.c.l.b16 %v1362
          %v1386 = vpack.c.b16 %v1379, %v1378
          %v1387 = vpack.c.b16 %v1381, %v1380
          %v1388 = vpack.c.b16 %v1383, %v1382
          %v1389 = vpack.c.b16 %v1385, %v1384
          %v1396 = vunpack.c.l.b16 %v1364
          %v1397 = vunpack.c.l.b16 %v1365
          %v1398 = vunpack.c.l.b16 %v1366
          %v1399 = vunpack.c.l.b16 %v1367
          %v1400 = vunpack.c.l.b16 %v1368
          %v1401 = vunpack.c.l.b16 %v1369
          %v1402 = vpack.c.b16 %v1397, %v1396
          %v1403 = vpack.c.b16 %v1399, %v1398
          %v1404 = vpack.c.b16 %v1401, %v1400
          %v1409 = vsel %vm1231, %v1386, 0
          %v1412 = vsel %vm1231, %v1387, 0
          %v1415 = vsel %vm1231, %v1388, 0
          %v1418 = vsel %vm1231, %v1389, 0
          %1420 = vmatpush.bf16.msra.mxu0 0
          %1421 = vmatpush.bf16.msra.mxu0 0
          %1422 = vmatpush.bf16.msra.mxu0 0
          %1423 = vmatpush.bf16.msra.mxu0 0
          %1424 = vmatpush.bf16.msra.mxu0 0
          %1425 = vmatpush.bf16.msra.mxu0 %v1404
          %1426 = vmatpush.bf16.msra.mxu0 %v1403
          %1427 = vmatpush.bf16.msra.mxu0 %v1402
          %1428 = vmatmul.bf16.gmra.mxu0 %v1409
          %v1429 = vpop.f32.mrf.mxu0
          %v1430 = vadd.f32 0.0, %v1429
          %v1431 = vpop.f32.mrf.mxu0
          %v1432 = vadd.f32 0.0, %v1431
          %1433 = vmatmul.bf16.gmra.mxu0 %v1412
          %v1434 = vpop.f32.mrf.mxu0
          %v1435 = vadd.f32 0.0, %v1434
          %v1436 = vpop.f32.mrf.mxu0
          %v1437 = vadd.f32 0.0, %v1436
          %1438 = vmatmul.bf16.gmra.mxu0 %v1415
          %v1439 = vpop.f32.mrf.mxu0
          %v1440 = vadd.f32 0.0, %v1439
          %v1441 = vpop.f32.mrf.mxu0
          %v1442 = vadd.f32 0.0, %v1441
          %1443 = vmatmul.bf16.gmra.mxu0 %v1418
          %v1444 = vpop.f32.mrf.mxu0
          %v1445 = vadd.f32 0.0, %v1444
          %v1446 = vpop.f32.mrf.mxu0
          %v1447 = vadd.f32 0.0, %v1446
          %1448 = vdwg.mxu0
          %v1449 = vadd.f32 %v1333, %v1430
          %v1450 = vadd.f32 %v1335, %v1432
          %v1451 = vadd.f32 %v1338, %v1435
          %v1452 = vadd.f32 %v1340, %v1437
          %v1453 = vadd.f32 %v1343, %v1440
          %v1454 = vadd.f32 %v1345, %v1442
          %v1455 = vadd.f32 %v1348, %v1445
          %v1456 = vadd.f32 %v1350, %v1447
          %s1457 = sadd.s32 %s890, 1
          %s1458 = sand.u32 %s1457, 3
          %s1459 = smul.u32 %s1458, 10
          %s1460 = smul.addr %s1459, 4
          %s1461 = scalar_lea.vmem [#allocation2], %s1460
          %v1462 = vld [vmem:[%s1461] sm:$0xf]
          %v1463 = vld [vmem:[%s1461 + $0x4] sm:$0xf]
          %v1464 = vld [vmem:[%s1461 + $0x8] sm:$0xf]
          %v1465 = vld [vmem:[%s1461 + $0xc] sm:$0xf]
          %v1466 = vld [vmem:[%s1461 + $0x10] sm:$0xf]
          %v1467 = vld [vmem:[%s1461 + $0x14] sm:$0xf]
          %v1468 = vld [vmem:[%s1461 + $0x18] sm:$0xf]
          %v1469 = vld [vmem:[%s1461 + $0x1c] sm:$0xf]
          %s1470 = scalar_lea.vmem %s3, 72
          %v1471 = vld [vmem:[%s1470] sm:$0xf]
          %v1472 = vld [vmem:[%s1470 + $0x4] sm:$0xf]
          %v1473 = vld [vmem:[%s1470 + $0x8] sm:$0xf]
          %v1474 = vld [vmem:[%s1470 + $0xc] sm:$0xf]
          %v1475 = vld [vmem:[%s1470 + $0x10] sm:$0xf]
          %v1476 = vld [vmem:[%s1470 + $0x14] sm:$0xf]
          %v1485 = vunpack.c.l.b16 %v1462
          %v1486 = vunpack.c.l.b16 %v1463
          %v1487 = vunpack.c.l.b16 %v1464
          %v1488 = vunpack.c.l.b16 %v1465
          %v1489 = vunpack.c.l.b16 %v1466
          %v1490 = vunpack.c.l.b16 %v1467
          %v1491 = vunpack.c.l.b16 %v1468
          %v1492 = vunpack.c.l.b16 %v1469
          %v1493 = vpack.c.b16 %v1486, %v1485
          %v1494 = vpack.c.b16 %v1488, %v1487
          %v1495 = vpack.c.b16 %v1490, %v1489
          %v1496 = vpack.c.b16 %v1492, %v1491
          %v1503 = vunpack.c.l.b16 %v1471
          %v1504 = vunpack.c.l.b16 %v1472
          %v1505 = vunpack.c.l.b16 %v1473
          %v1506 = vunpack.c.l.b16 %v1474
          %v1507 = vunpack.c.l.b16 %v1475
          %v1508 = vunpack.c.l.b16 %v1476
          %v1509 = vpack.c.b16 %v1504, %v1503
          %v1510 = vpack.c.b16 %v1506, %v1505
          %v1511 = vpack.c.b16 %v1508, %v1507
          %v1516 = vsel %vm1231, %v1493, 0
          %v1519 = vsel %vm1231, %v1494, 0
          %v1522 = vsel %vm1231, %v1495, 0
          %v1525 = vsel %vm1231, %v1496, 0
          %1527 = vmatpush.bf16.msra.mxu0 0
          %1528 = vmatpush.bf16.msra.mxu0 0
          %1529 = vmatpush.bf16.msra.mxu0 0
          %1530 = vmatpush.bf16.msra.mxu0 0
          %1531 = vmatpush.bf16.msra.mxu0 0
          %1532 = vmatpush.bf16.msra.mxu0 %v1511
          %1533 = vmatpush.bf16.msra.mxu0 %v1510
          %1534 = vmatpush.bf16.msra.mxu0 %v1509
          %1535 = vmatmul.bf16.gmra.mxu0 %v1516
          %v1536 = vpop.f32.mrf.mxu0
          %v1537 = vadd.f32 0.0, %v1536
          %v1538 = vpop.f32.mrf.mxu0
          %v1539 = vadd.f32 0.0, %v1538
          %1540 = vmatmul.bf16.gmra.mxu0 %v1519
          %v1541 = vpop.f32.mrf.mxu0
          %v1542 = vadd.f32 0.0, %v1541
          %v1543 = vpop.f32.mrf.mxu0
          %v1544 = vadd.f32 0.0, %v1543
          %1545 = vmatmul.bf16.gmra.mxu0 %v1522
          %v1546 = vpop.f32.mrf.mxu0
          %v1547 = vadd.f32 0.0, %v1546
          %v1548 = vpop.f32.mrf.mxu0
          %v1549 = vadd.f32 0.0, %v1548
          %1550 = vmatmul.bf16.gmra.mxu0 %v1525
          %v1551 = vpop.f32.mrf.mxu0
          %v1552 = vadd.f32 0.0, %v1551
          %v1553 = vpop.f32.mrf.mxu0
          %v1554 = vadd.f32 0.0, %v1553
          %1555 = vdwg.mxu0
          %v1556 = vadd.f32 %v1449, %v1537
          %v1557 = vadd.f32 %v1450, %v1539
          %v1558 = vadd.f32 %v1451, %v1542
          %v1559 = vadd.f32 %v1452, %v1544
          %v1560 = vadd.f32 %v1453, %v1547
          %v1561 = vadd.f32 %v1454, %v1549
          %v1562 = vadd.f32 %v1455, %v1552
          %v1563 = vadd.f32 %v1456, %v1554
          %s1564 = sadd.s32 1, %s1459
          %s1565 = smul.addr %s1564, 4
          %s1566 = scalar_lea.vmem [#allocation2], %s1565
          %v1567 = vld [vmem:[%s1566] sm:$0xf]
          %v1568 = vld [vmem:[%s1566 + $0x4] sm:$0xf]
          %v1569 = vld [vmem:[%s1566 + $0x8] sm:$0xf]
          %v1570 = vld [vmem:[%s1566 + $0xc] sm:$0xf]
          %v1571 = vld [vmem:[%s1566 + $0x10] sm:$0xf]
          %v1572 = vld [vmem:[%s1566 + $0x14] sm:$0xf]
          %v1573 = vld [vmem:[%s1566 + $0x18] sm:$0xf]
          %v1574 = vld [vmem:[%s1566 + $0x1c] sm:$0xf]
          %s1575 = scalar_lea.vmem %s3, 96
          %v1576 = vld [vmem:[%s1575] sm:$0xf]
          %v1577 = vld [vmem:[%s1575 + $0x4] sm:$0xf]
          %v1578 = vld [vmem:[%s1575 + $0x8] sm:$0xf]
          %v1579 = vld [vmem:[%s1575 + $0xc] sm:$0xf]
          %v1580 = vld [vmem:[%s1575 + $0x10] sm:$0xf]
          %v1581 = vld [vmem:[%s1575 + $0x14] sm:$0xf]
          %v1590 = vunpack.c.l.b16 %v1567
          %v1591 = vunpack.c.l.b16 %v1568
          %v1592 = vunpack.c.l.b16 %v1569
          %v1593 = vunpack.c.l.b16 %v1570
          %v1594 = vunpack.c.l.b16 %v1571
          %v1595 = vunpack.c.l.b16 %v1572
          %v1596 = vunpack.c.l.b16 %v1573
          %v1597 = vunpack.c.l.b16 %v1574
          %v1598 = vpack.c.b16 %v1591, %v1590
          %v1599 = vpack.c.b16 %v1593, %v1592
          %v1600 = vpack.c.b16 %v1595, %v1594
          %v1601 = vpack.c.b16 %v1597, %v1596
          %v1608 = vunpack.c.l.b16 %v1576
          %v1609 = vunpack.c.l.b16 %v1577
          %v1610 = vunpack.c.l.b16 %v1578
          %v1611 = vunpack.c.l.b16 %v1579
          %v1612 = vunpack.c.l.b16 %v1580
          %v1613 = vunpack.c.l.b16 %v1581
          %v1614 = vpack.c.b16 %v1609, %v1608
          %v1615 = vpack.c.b16 %v1611, %v1610
          %v1616 = vpack.c.b16 %v1613, %v1612
          %v1621 = vsel %vm1231, %v1598, 0
          %v1624 = vsel %vm1231, %v1599, 0
          %v1627 = vsel %vm1231, %v1600, 0
          %v1630 = vsel %vm1231, %v1601, 0
          %1632 = vmatpush.bf16.msra.mxu0 0
          %1633 = vmatpush.bf16.msra.mxu0 0
          %1634 = vmatpush.bf16.msra.mxu0 0
          %1635 = vmatpush.bf16.msra.mxu0 0
          %1636 = vmatpush.bf16.msra.mxu0 0
          %1637 = vmatpush.bf16.msra.mxu0 %v1616
          %1638 = vmatpush.bf16.msra.mxu0 %v1615
          %1639 = vmatpush.bf16.msra.mxu0 %v1614
          %1640 = vmatmul.bf16.gmra.mxu0 %v1621
          %v1641 = vpop.f32.mrf.mxu0
          %v1642 = vadd.f32 0.0, %v1641
          %v1643 = vpop.f32.mrf.mxu0
          %v1644 = vadd.f32 0.0, %v1643
          %1645 = vmatmul.bf16.gmra.mxu0 %v1624
          %v1646 = vpop.f32.mrf.mxu0
          %v1647 = vadd.f32 0.0, %v1646
          %v1648 = vpop.f32.mrf.mxu0
          %v1649 = vadd.f32 0.0, %v1648
          %1650 = vmatmul.bf16.gmra.mxu0 %v1627
          %v1651 = vpop.f32.mrf.mxu0
          %v1652 = vadd.f32 0.0, %v1651
          %v1653 = vpop.f32.mrf.mxu0
          %v1654 = vadd.f32 0.0, %v1653
          %1655 = vmatmul.bf16.gmra.mxu0 %v1630
          %v1656 = vpop.f32.mrf.mxu0
          %v1657 = vadd.f32 0.0, %v1656
          %v1658 = vpop.f32.mrf.mxu0
          %v1659 = vadd.f32 0.0, %v1658
          %1660 = vdwg.mxu0
          %v1661 = vadd.f32 %v1556, %v1642
          %v1662 = vadd.f32 %v1557, %v1644
          %v1663 = vadd.f32 %v1558, %v1647
          %v1664 = vadd.f32 %v1559, %v1649
          %v1665 = vadd.f32 %v1560, %v1652
          %v1666 = vadd.f32 %v1561, %v1654
          %v1667 = vadd.f32 %v1562, %v1657
          %v1668 = vadd.f32 %v1563, %v1659
          %s1669 = sadd.s32 2, %s1459
          %s1670 = smul.addr %s1669, 4
          %s1671 = scalar_lea.vmem [#allocation2], %s1670
          %v1672 = vld [vmem:[%s1671] sm:$0xf]
          %v1673 = vld [vmem:[%s1671 + $0x4] sm:$0xf]
          %v1674 = vld [vmem:[%s1671 + $0x8] sm:$0xf]
          %v1675 = vld [vmem:[%s1671 + $0xc] sm:$0xf]
          %v1676 = vld [vmem:[%s1671 + $0x10] sm:$0xf]
          %v1677 = vld [vmem:[%s1671 + $0x14] sm:$0xf]
          %v1678 = vld [vmem:[%s1671 + $0x18] sm:$0xf]
          %v1679 = vld [vmem:[%s1671 + $0x1c] sm:$0xf]
          %s1680 = scalar_lea.vmem %s3, 120
          %v1681 = vld [vmem:[%s1680] sm:$0xf]
          %v1682 = vld [vmem:[%s1680 + $0x4] sm:$0xf]
          %v1683 = vld [vmem:[%s1680 + $0x8] sm:$0xf]
          %v1684 = vld [vmem:[%s1680 + $0xc] sm:$0xf]
          %v1685 = vld [vmem:[%s1680 + $0x10] sm:$0xf]
          %v1686 = vld [vmem:[%s1680 + $0x14] sm:$0xf]
          %v1695 = vunpack.c.l.b16 %v1672
          %v1696 = vunpack.c.l.b16 %v1673
          %v1697 = vunpack.c.l.b16 %v1674
          %v1698 = vunpack.c.l.b16 %v1675
          %v1699 = vunpack.c.l.b16 %v1676
          %v1700 = vunpack.c.l.b16 %v1677
          %v1701 = vunpack.c.l.b16 %v1678
          %v1702 = vunpack.c.l.b16 %v1679
          %v1703 = vpack.c.b16 %v1696, %v1695
          %v1704 = vpack.c.b16 %v1698, %v1697
          %v1705 = vpack.c.b16 %v1700, %v1699
          %v1706 = vpack.c.b16 %v1702, %v1701
          %v1713 = vunpack.c.l.b16 %v1681
          %v1714 = vunpack.c.l.b16 %v1682
          %v1715 = vunpack.c.l.b16 %v1683
          %v1716 = vunpack.c.l.b16 %v1684
          %v1717 = vunpack.c.l.b16 %v1685
          %v1718 = vunpack.c.l.b16 %v1686
          %v1719 = vpack.c.b16 %v1714, %v1713
          %v1720 = vpack.c.b16 %v1716, %v1715
          %v1721 = vpack.c.b16 %v1718, %v1717
          %v1726 = vsel %vm1231, %v1703, 0
          %v1729 = vsel %vm1231, %v1704, 0
          %v1732 = vsel %vm1231, %v1705, 0
          %v1735 = vsel %vm1231, %v1706, 0
          %1737 = vmatpush.bf16.msra.mxu0 0
          %1738 = vmatpush.bf16.msra.mxu0 0
          %1739 = vmatpush.bf16.msra.mxu0 0
          %1740 = vmatpush.bf16.msra.mxu0 0
          %1741 = vmatpush.bf16.msra.mxu0 0
          %1742 = vmatpush.bf16.msra.mxu0 %v1721
          %1743 = vmatpush.bf16.msra.mxu0 %v1720
          %1744 = vmatpush.bf16.msra.mxu0 %v1719
          %1745 = vmatmul.bf16.gmra.mxu0 %v1726
          %v1746 = vpop.f32.mrf.mxu0
          %v1747 = vadd.f32 0.0, %v1746
          %v1748 = vpop.f32.mrf.mxu0
          %v1749 = vadd.f32 0.0, %v1748
          %1750 = vmatmul.bf16.gmra.mxu0 %v1729
          %v1751 = vpop.f32.mrf.mxu0
          %v1752 = vadd.f32 0.0, %v1751
          %v1753 = vpop.f32.mrf.mxu0
          %v1754 = vadd.f32 0.0, %v1753
          %1755 = vmatmul.bf16.gmra.mxu0 %v1732
          %v1756 = vpop.f32.mrf.mxu0
          %v1757 = vadd.f32 0.0, %v1756
          %v1758 = vpop.f32.mrf.mxu0
          %v1759 = vadd.f32 0.0, %v1758
          %1760 = vmatmul.bf16.gmra.mxu0 %v1735
          %v1761 = vpop.f32.mrf.mxu0
          %v1762 = vadd.f32 0.0, %v1761
          %v1763 = vpop.f32.mrf.mxu0
          %v1764 = vadd.f32 0.0, %v1763
          %1765 = vdwg.mxu0
          %v1766 = vadd.f32 %v1661, %v1747
          %v1767 = vadd.f32 %v1662, %v1749
          %v1768 = vadd.f32 %v1663, %v1752
          %v1769 = vadd.f32 %v1664, %v1754
          %v1770 = vadd.f32 %v1665, %v1757
          %v1771 = vadd.f32 %v1666, %v1759
          %v1772 = vadd.f32 %v1667, %v1762
          %v1773 = vadd.f32 %v1668, %v1764
          %v1774 = vld [vmem:[%s1146] sm:$0xf]
          %v1775 = vld [vmem:[%s1146 + $0x4] sm:$0xf]
          %v1776 = vld [vmem:[%s1146 + $0x8] sm:$0xf]
          %v1777 = vld [vmem:[%s1146 + $0xc] sm:$0xf]
          %v1778 = vld [vmem:[%s1146 + $0x10] sm:$0xf]
          %v1779 = vld [vmem:[%s1146 + $0x14] sm:$0xf]
          %v1780 = vld [vmem:[%s1146 + $0x18] sm:$0xf]
          %v1781 = vld [vmem:[%s1146 + $0x1c] sm:$0xf]
          %s1782 = scalar_lea.vmem %s3, 144
          %v1783 = vld [vmem:[%s1782] sm:$0xf]
          %v1784 = vld [vmem:[%s1782 + $0x4] sm:$0xf]
          %v1785 = vld [vmem:[%s1782 + $0x8] sm:$0xf]
          %v1786 = vld [vmem:[%s1782 + $0xc] sm:$0xf]
          %v1787 = vld [vmem:[%s1782 + $0x10] sm:$0xf]
          %v1788 = vld [vmem:[%s1782 + $0x14] sm:$0xf]
          %v1797 = vunpack.c.l.b16 %v1774
          %v1798 = vunpack.c.l.b16 %v1775
          %v1799 = vunpack.c.l.b16 %v1776
          %v1800 = vunpack.c.l.b16 %v1777
          %v1801 = vunpack.c.l.b16 %v1778
          %v1802 = vunpack.c.l.b16 %v1779
          %v1803 = vunpack.c.l.b16 %v1780
          %v1804 = vunpack.c.l.b16 %v1781
          %v1805 = vpack.c.b16 %v1798, %v1797
          %v1806 = vpack.c.b16 %v1800, %v1799
          %v1807 = vpack.c.b16 %v1802, %v1801
          %v1808 = vpack.c.b16 %v1804, %v1803
          %v1815 = vunpack.c.l.b16 %v1783
          %v1816 = vunpack.c.l.b16 %v1784
          %v1817 = vunpack.c.l.b16 %v1785
          %v1818 = vunpack.c.l.b16 %v1786
          %v1819 = vunpack.c.l.b16 %v1787
          %v1820 = vunpack.c.l.b16 %v1788
          %v1821 = vpack.c.b16 %v1816, %v1815
          %v1822 = vpack.c.b16 %v1818, %v1817
          %v1823 = vpack.c.b16 %v1820, %v1819
          %v1828 = vsel %vm1231, %v1805, 0
          %v1831 = vsel %vm1231, %v1806, 0
          %v1834 = vsel %vm1231, %v1807, 0
          %v1837 = vsel %vm1231, %v1808, 0
          %1839 = vmatpush.bf16.msra.mxu0 0
          %1840 = vmatpush.bf16.msra.mxu0 0
          %1841 = vmatpush.bf16.msra.mxu0 0
          %1842 = vmatpush.bf16.msra.mxu0 0
          %1843 = vmatpush.bf16.msra.mxu0 0
          %1844 = vmatpush.bf16.msra.mxu0 %v1823
          %1845 = vmatpush.bf16.msra.mxu0 %v1822
          %1846 = vmatpush.bf16.msra.mxu0 %v1821
          %1847 = vmatmul.bf16.gmra.mxu0 %v1828
          %v1848 = vpop.f32.mrf.mxu0
          %v1849 = vadd.f32 0.0, %v1848
          %v1850 = vpop.f32.mrf.mxu0
          %v1851 = vadd.f32 0.0, %v1850
          %1852 = vmatmul.bf16.gmra.mxu0 %v1831
          %v1853 = vpop.f32.mrf.mxu0
          %v1854 = vadd.f32 0.0, %v1853
          %v1855 = vpop.f32.mrf.mxu0
          %v1856 = vadd.f32 0.0, %v1855
          %1857 = vmatmul.bf16.gmra.mxu0 %v1834
          %v1858 = vpop.f32.mrf.mxu0
          %v1859 = vadd.f32 0.0, %v1858
          %v1860 = vpop.f32.mrf.mxu0
          %v1861 = vadd.f32 0.0, %v1860
          %1862 = vmatmul.bf16.gmra.mxu0 %v1837
          %v1863 = vpop.f32.mrf.mxu0
          %v1864 = vadd.f32 0.0, %v1863
          %v1865 = vpop.f32.mrf.mxu0
          %v1866 = vadd.f32 0.0, %v1865
          %1867 = vdwg.mxu0
          %v1868 = vadd.f32 %v1766, %v1849
          %v1869 = vadd.f32 %v1767, %v1851
          %v1870 = vadd.f32 %v1768, %v1854
          %v1871 = vadd.f32 %v1769, %v1856
          %v1872 = vadd.f32 %v1770, %v1859
          %v1873 = vadd.f32 %v1771, %v1861
          %v1874 = vadd.f32 %v1772, %v1864
          %v1875 = vadd.f32 %v1773, %v1866
          %s1876 = sadd.s32 1, %s1144
          %s1877 = smul.addr %s1876, 4
          %s1878 = scalar_lea.vmem [#allocation2], %s1877
          %v1879 = vld [vmem:[%s1878] sm:$0xf]
          %v1880 = vld [vmem:[%s1878 + $0x4] sm:$0xf]
          %v1881 = vld [vmem:[%s1878 + $0x8] sm:$0xf]
          %v1882 = vld [vmem:[%s1878 + $0xc] sm:$0xf]
          %v1883 = vld [vmem:[%s1878 + $0x10] sm:$0xf]
          %v1884 = vld [vmem:[%s1878 + $0x14] sm:$0xf]
          %v1885 = vld [vmem:[%s1878 + $0x18] sm:$0xf]
          %v1886 = vld [vmem:[%s1878 + $0x1c] sm:$0xf]
          %s1887 = scalar_lea.vmem %s3, 168
          %v1888 = vld [vmem:[%s1887] sm:$0xf]
          %v1889 = vld [vmem:[%s1887 + $0x4] sm:$0xf]
          %v1890 = vld [vmem:[%s1887 + $0x8] sm:$0xf]
          %v1891 = vld [vmem:[%s1887 + $0xc] sm:$0xf]
          %v1892 = vld [vmem:[%s1887 + $0x10] sm:$0xf]
          %v1893 = vld [vmem:[%s1887 + $0x14] sm:$0xf]
          %v1902 = vunpack.c.l.b16 %v1879
          %v1903 = vunpack.c.l.b16 %v1880
          %v1904 = vunpack.c.l.b16 %v1881
          %v1905 = vunpack.c.l.b16 %v1882
          %v1906 = vunpack.c.l.b16 %v1883
          %v1907 = vunpack.c.l.b16 %v1884
          %v1908 = vunpack.c.l.b16 %v1885
          %v1909 = vunpack.c.l.b16 %v1886
          %v1910 = vpack.c.b16 %v1903, %v1902
          %v1911 = vpack.c.b16 %v1905, %v1904
          %v1912 = vpack.c.b16 %v1907, %v1906
          %v1913 = vpack.c.b16 %v1909, %v1908
          %v1920 = vunpack.c.l.b16 %v1888
          %v1921 = vunpack.c.l.b16 %v1889
          %v1922 = vunpack.c.l.b16 %v1890
          %v1923 = vunpack.c.l.b16 %v1891
          %v1924 = vunpack.c.l.b16 %v1892
          %v1925 = vunpack.c.l.b16 %v1893
          %v1926 = vpack.c.b16 %v1921, %v1920
          %v1927 = vpack.c.b16 %v1923, %v1922
          %v1928 = vpack.c.b16 %v1925, %v1924
          %v1933 = vsel %vm1231, %v1910, 0
          %v1936 = vsel %vm1231, %v1911, 0
          %v1939 = vsel %vm1231, %v1912, 0
          %v1942 = vsel %vm1231, %v1913, 0
          %1944 = vmatpush.bf16.msra.mxu0 0
          %1945 = vmatpush.bf16.msra.mxu0 0
          %1946 = vmatpush.bf16.msra.mxu0 0
          %1947 = vmatpush.bf16.msra.mxu0 0
          %1948 = vmatpush.bf16.msra.mxu0 0
          %1949 = vmatpush.bf16.msra.mxu0 %v1928
          %1950 = vmatpush.bf16.msra.mxu0 %v1927
          %1951 = vmatpush.bf16.msra.mxu0 %v1926
          %1952 = vmatmul.bf16.gmra.mxu0 %v1933
          %v1953 = vpop.f32.mrf.mxu0
          %v1954 = vadd.f32 0.0, %v1953
          %v1955 = vpop.f32.mrf.mxu0
          %v1956 = vadd.f32 0.0, %v1955
          %1957 = vmatmul.bf16.gmra.mxu0 %v1936
          %v1958 = vpop.f32.mrf.mxu0
          %v1959 = vadd.f32 0.0, %v1958
          %v1960 = vpop.f32.mrf.mxu0
          %v1961 = vadd.f32 0.0, %v1960
          %1962 = vmatmul.bf16.gmra.mxu0 %v1939
          %v1963 = vpop.f32.mrf.mxu0
          %v1964 = vadd.f32 0.0, %v1963
          %v1965 = vpop.f32.mrf.mxu0
          %v1966 = vadd.f32 0.0, %v1965
          %1967 = vmatmul.bf16.gmra.mxu0 %v1942
          %v1968 = vpop.f32.mrf.mxu0
          %v1969 = vadd.f32 0.0, %v1968
          %v1970 = vpop.f32.mrf.mxu0
          %v1971 = vadd.f32 0.0, %v1970
          %1972 = vdwg.mxu0
          %v1973 = vadd.f32 %v1868, %v1954
          %v1974 = vadd.f32 %v1869, %v1956
          %v1975 = vadd.f32 %v1870, %v1959
          %v1976 = vadd.f32 %v1871, %v1961
          %v1977 = vadd.f32 %v1872, %v1964
          %v1978 = vadd.f32 %v1873, %v1966
          %v1979 = vadd.f32 %v1874, %v1969
          %v1980 = vadd.f32 %v1875, %v1971
          %s1981 = sadd.s32 2, %s1144
          %s1982 = smul.addr %s1981, 4
          %s1983 = scalar_lea.vmem [#allocation2], %s1982
          %v1984 = vld [vmem:[%s1983] sm:$0xf]
          %v1985 = vld [vmem:[%s1983 + $0x4] sm:$0xf]
          %v1986 = vld [vmem:[%s1983 + $0x8] sm:$0xf]
          %v1987 = vld [vmem:[%s1983 + $0xc] sm:$0xf]
          %v1988 = vld [vmem:[%s1983 + $0x10] sm:$0xf]
          %v1989 = vld [vmem:[%s1983 + $0x14] sm:$0xf]
          %v1990 = vld [vmem:[%s1983 + $0x18] sm:$0xf]
          %v1991 = vld [vmem:[%s1983 + $0x1c] sm:$0xf]
          %s1992 = scalar_lea.vmem %s3, 192
          %v1993 = vld [vmem:[%s1992] sm:$0xf]
          %v1994 = vld [vmem:[%s1992 + $0x4] sm:$0xf]
          %v1995 = vld [vmem:[%s1992 + $0x8] sm:$0xf]
          %v1996 = vld [vmem:[%s1992 + $0xc] sm:$0xf]
          %v1997 = vld [vmem:[%s1992 + $0x10] sm:$0xf]
          %v1998 = vld [vmem:[%s1992 + $0x14] sm:$0xf]
          %v2007 = vunpack.c.l.b16 %v1984
          %v2008 = vunpack.c.l.b16 %v1985
          %v2009 = vunpack.c.l.b16 %v1986
          %v2010 = vunpack.c.l.b16 %v1987
          %v2011 = vunpack.c.l.b16 %v1988
          %v2012 = vunpack.c.l.b16 %v1989
          %v2013 = vunpack.c.l.b16 %v1990
          %v2014 = vunpack.c.l.b16 %v1991
          %v2015 = vpack.c.b16 %v2008, %v2007
          %v2016 = vpack.c.b16 %v2010, %v2009
          %v2017 = vpack.c.b16 %v2012, %v2011
          %v2018 = vpack.c.b16 %v2014, %v2013
          %v2025 = vunpack.c.l.b16 %v1993
          %v2026 = vunpack.c.l.b16 %v1994
          %v2027 = vunpack.c.l.b16 %v1995
          %v2028 = vunpack.c.l.b16 %v1996
          %v2029 = vunpack.c.l.b16 %v1997
          %v2030 = vunpack.c.l.b16 %v1998
          %v2031 = vpack.c.b16 %v2026, %v2025
          %v2032 = vpack.c.b16 %v2028, %v2027
          %v2033 = vpack.c.b16 %v2030, %v2029
          %v2038 = vsel %vm1231, %v2015, 0
          %v2041 = vsel %vm1231, %v2016, 0
          %v2044 = vsel %vm1231, %v2017, 0
          %v2047 = vsel %vm1231, %v2018, 0
          %2049 = vmatpush.bf16.msra.mxu0 0
          %2050 = vmatpush.bf16.msra.mxu0 0
          %2051 = vmatpush.bf16.msra.mxu0 0
          %2052 = vmatpush.bf16.msra.mxu0 0
          %2053 = vmatpush.bf16.msra.mxu0 0
          %2054 = vmatpush.bf16.msra.mxu0 %v2033
          %2055 = vmatpush.bf16.msra.mxu0 %v2032
          %2056 = vmatpush.bf16.msra.mxu0 %v2031
          %2057 = vmatmul.bf16.gmra.mxu0 %v2038
          %v2058 = vpop.f32.mrf.mxu0
          %v2059 = vadd.f32 0.0, %v2058
          %v2060 = vpop.f32.mrf.mxu0
          %v2061 = vadd.f32 0.0, %v2060
          %2062 = vmatmul.bf16.gmra.mxu0 %v2041
          %v2063 = vpop.f32.mrf.mxu0
          %v2064 = vadd.f32 0.0, %v2063
          %v2065 = vpop.f32.mrf.mxu0
          %v2066 = vadd.f32 0.0, %v2065
          %2067 = vmatmul.bf16.gmra.mxu0 %v2044
          %v2068 = vpop.f32.mrf.mxu0
          %v2069 = vadd.f32 0.0, %v2068
          %v2070 = vpop.f32.mrf.mxu0
          %v2071 = vadd.f32 0.0, %v2070
          %2072 = vmatmul.bf16.gmra.mxu0 %v2047
          %v2073 = vpop.f32.mrf.mxu0
          %v2074 = vadd.f32 0.0, %v2073
          %v2075 = vpop.f32.mrf.mxu0
          %v2076 = vadd.f32 0.0, %v2075
          %2077 = vdwg.mxu0
          %v2078 = vadd.f32 %v1973, %v2059
          %v2079 = vadd.f32 %v1974, %v2061
          %v2080 = vadd.f32 %v1975, %v2064
          %v2081 = vadd.f32 %v1976, %v2066
          %v2082 = vadd.f32 %v1977, %v2069
          %v2083 = vadd.f32 %v1978, %v2071
          %v2084 = vadd.f32 %v1979, %v2074
          %v2085 = vadd.f32 %v1980, %v2076
          %v2087 = vperm.slane %v367, 0
          %v2089 = vadd.f32 %v2078, %v2087
          %v2090 = vadd.f32 %v2079, %v2087
          %v2091 = vadd.f32 %v2080, %v2087
          %v2092 = vadd.f32 %v2081, %v2087
          %v2093 = vadd.f32 %v2082, %v2087
          %v2094 = vadd.f32 %v2083, %v2087
          %v2095 = vadd.f32 %v2084, %v2087
          %v2096 = vadd.f32 %v2085, %v2087
          %v2097 = vld [vmem:[%s355] sm:$0x1]
          %v2098 = vsel %vm596, %v2089, 0.0
          %v2099 = vsel %vm596, %v2090, 0.0
          %v2100 = vadd.f32 %v2098, %v2099
          %v2101 = vsel %vm596, %v2091, 0.0
          %v2102 = vadd.f32 %v2100, %v2101
          %v2103 = vsel %vm596, %v2092, 0.0
          %v2104 = vadd.f32 %v2102, %v2103
          %v2105 = vsel %vm596, %v2093, 0.0
          %v2106 = vadd.f32 %v2104, %v2105
          %v2107 = vsel %vm596, %v2094, 0.0
          %v2108 = vadd.f32 %v2106, %v2107
          %v2109 = vsel %vm596, %v2095, 0.0
          %v2110 = vadd.f32 %v2108, %v2109
          %v2111 = vsel %vm596, %v2096, 0.0
          %v2112 = vadd.f32 %v2110, %v2111
          %v2113 = vrot.slane %v2112, 4
          %v2114 = vadd.f32 %v2112, %v2113
          %v2115 = vrot.slane %v2114, 2
          %v2116 = vadd.f32 %v2114, %v2115
          %v2117 = vrot.slane %v2116, 1
          %v2118 = vadd.f32 %v2116, %v2117
          %v2119 = vadd.f32 %v2097, %v2118
          %2120 = vst.msk [vmem:[%s355] sm:$0x1] %vm368, %v2119
          %v2121 = vld [vmem:[%s362] sm:$0x1]
          %v2122 = vmul.f32 %v2089, %v2089
          %v2123 = vmul.f32 %v2090, %v2090
          %v2124 = vmul.f32 %v2091, %v2091
          %v2125 = vmul.f32 %v2092, %v2092
          %v2126 = vmul.f32 %v2093, %v2093
          %v2127 = vmul.f32 %v2094, %v2094
          %v2128 = vmul.f32 %v2095, %v2095
          %v2129 = vmul.f32 %v2096, %v2096
          %v2130 = vsel %vm596, %v2122, 0.0
          %v2131 = vsel %vm596, %v2123, 0.0
          %v2132 = vadd.f32 %v2130, %v2131
          %v2133 = vsel %vm596, %v2124, 0.0
          %v2134 = vadd.f32 %v2132, %v2133
          %v2135 = vsel %vm596, %v2125, 0.0
          %v2136 = vadd.f32 %v2134, %v2135
          %v2137 = vsel %vm596, %v2126, 0.0
          %v2138 = vadd.f32 %v2136, %v2137
          %v2139 = vsel %vm596, %v2127, 0.0
          %v2140 = vadd.f32 %v2138, %v2139
          %v2141 = vsel %vm596, %v2128, 0.0
          %v2142 = vadd.f32 %v2140, %v2141
          %v2143 = vsel %vm596, %v2129, 0.0
          %v2144 = vadd.f32 %v2142, %v2143
          %v2145 = vrot.slane %v2144, 4
          %v2146 = vadd.f32 %v2144, %v2145
          %v2147 = vrot.slane %v2146, 2
          %v2148 = vadd.f32 %v2146, %v2147
          %v2149 = vrot.slane %v2148, 1
          %v2150 = vadd.f32 %v2148, %v2149
          %v2151 = vadd.f32 %v2121, %v2150
          %2152 = vst.msk [vmem:[%s362] sm:$0x1] %vm368, %v2151
          %s2153 = smul.u32 %s890, 64
          %s2154 = scalar_lea.vmem %s347, %s2153
          %2155 = vst.msk [vmem:[%s2154] sm:$0xff] %vm596, %v2089
          %2156 = vst.msk [vmem:[%s2154 + $0x8] sm:$0xff] %vm596, %v2090
          %2157 = vst.msk [vmem:[%s2154 + $0x10] sm:$0xff] %vm596, %v2091
          %2158 = vst.msk [vmem:[%s2154 + $0x18] sm:$0xff] %vm596, %v2092
          %2159 = vst.msk [vmem:[%s2154 + $0x20] sm:$0xff] %vm596, %v2093
          %2160 = vst.msk [vmem:[%s2154 + $0x28] sm:$0xff] %vm596, %v2094
          %2161 = vst.msk [vmem:[%s2154 + $0x30] sm:$0xff] %vm596, %v2095
          %2162 = vst.msk [vmem:[%s2154 + $0x38] sm:$0xff] %vm596, %v2096
        $region49: #{en_block2_forward.4} parent=39 // loop_footer
          %s894 = sadd.s32 1, %s890
        $region50: #{en_block2_forward.4} parent=39 // loop_footer_branch
          %889 = sbr.rel target = $region46
        $region51: #{en_block2_forward.4} parent=39 // loop_exit
          _
        %s2163 = smul.u32 4, %s27
        %p2164 = scmp.lt.s32.totalorder %s26, 1
        %s2165 = scalar_select %p2164, %s26, 1
        %p2166 = scmp.lt.s32.totalorder %s2163, 7
        %s2167 = scalar_select %p2166, %s2163, 7
        %s2168 = smul.addr %s2167, 8
        %s2169 = smul.addr %s2165, 64
        %s2170 = sadd.s32 %s2168, %s2169
        %s2171 = smul.addr %s2170, 8
        %s2172 = scalar_lea.vmem %s5, %s2171
        %p2173 = scmp.lt.s32.totalorder %s26, 1
        %s2174 = scalar_select %p2173, %s26, 1
        %p2175 = scmp.lt.s32.totalorder %s27, 1
        %s2176 = scalar_select %p2175, %s27, 1
        %s2177 = smul.addr %s2174, 2
        %s2178 = sadd.s32 %s2176, %s2177
        %s2179 = scalar_lea.vmem %s6, %s2178
        %p2180 = scmp.lt.s32.totalorder %s26, 1
        %s2181 = scalar_select %p2180, %s26, 1
        %p2182 = scmp.lt.s32.totalorder %s27, 1
        %s2183 = scalar_select %p2182, %s27, 1
        %s2184 = smul.addr %s2181, 2
        %s2185 = sadd.s32 %s2183, %s2184
        %s2186 = scalar_lea.vmem %s7, %s2185
        // Predicated region
        $region52: #{en_block2_forward.4} parent=39 // pred_check
          %p2187 = pneg %p164
        $region53: #{en_block2_forward.4} parent=39 // pred_check_branch
          %2189 = sbr.rel (%p2187) target = $region55
        $region54: #{en_block2_forward.4} parent=39 // pred_region
          %s2190 = smul.u32 4, %s27
        $region55: #{en_block2_forward.4} parent=39 // pred_fallthru
          _
        // Predicated region
        $region56: #{en_block2_forward.4} parent=39 // pred_check
          %p2191 = pneg %p192
        $region57: #{en_block2_forward.4} parent=39 // pred_check_branch
          %2193 = sbr.rel (%p2191) target = $region59
        $region58: #{en_block2_forward.4} parent=39 // pred_region
          _
        $region59: #{en_block2_forward.4} parent=39 // pred_fallthru
          _
        // Predicated region
        $region60: #{en_block2_forward.4} parent=39 // pred_check
          %p2194 = pneg %p220
        $region61: #{en_block2_forward.4} parent=39 // pred_check_branch
          %2196 = sbr.rel (%p2194) target = $region63
        $region62: #{en_block2_forward.4} parent=39 // pred_region
          _
        $region63: #{en_block2_forward.4} parent=39 // pred_fallthru
          _
      $region40: #{en_block2_forward.4} parent=5 // pred_fallthru
        _
      %p2197 = scmp.le.s32.totalorder 2, %s17
      // Predicated region
      $region64: #{en_block2_forward.4} parent=5 // pred_check
        %p2198 = pneg %p2197
      $region65: #{en_block2_forward.4} parent=5 // pred_check_branch
        %2200 = sbr.rel (%p2198) target = $region67
      $region66: #{en_block2_forward.4} parent=5 // pred_region
        %s2201 = ssub.s32 %s17, 2
        // Predicated region
        $region68: #{en_block2_forward.4} parent=66 // pred_check
          %p2202 = pneg %p170
        $region69: #{en_block2_forward.4} parent=66 // pred_check_branch
          %2204 = sbr.rel (%p2202) target = $region71
        $region70: #{en_block2_forward.4} parent=66 // pred_region
          %s2205 = smul.u32 4, %s29
          %p2206 = scmp.lt.s32.totalorder %s28, 1
          %s2207 = scalar_select %p2206, %s28, 1
          %p2208 = scmp.lt.s32.totalorder %s2205, 7
          %s2209 = scalar_select %p2208, %s2205, 7
          %s2210 = smul.addr %s2209, 8
          %s2211 = smul.addr %s2207, 64
          %s2212 = sadd.s32 %s2210, %s2211
          %s2213 = smul.addr %s2212, 8
          %s2214 = scalar_lea.vmem %s5, %s2213
        $region71: #{en_block2_forward.4} parent=66 // pred_fallthru
          _
        // Predicated region
        $region72: #{en_block2_forward.4} parent=66 // pred_check
          %p2215 = pneg %p198
        $region73: #{en_block2_forward.4} parent=66 // pred_check_branch
          %2217 = sbr.rel (%p2215) target = $region75
        $region74: #{en_block2_forward.4} parent=66 // pred_region
          %p2218 = scmp.lt.s32.totalorder %s28, 1
          %s2219 = scalar_select %p2218, %s28, 1
          %p2220 = scmp.lt.s32.totalorder %s29, 1
          %s2221 = scalar_select %p2220, %s29, 1
          %s2222 = smul.addr %s2219, 2
          %s2223 = sadd.s32 %s2221, %s2222
          %s2224 = scalar_lea.vmem %s6, %s2223
        $region75: #{en_block2_forward.4} parent=66 // pred_fallthru
          _
        // Predicated region
        $region76: #{en_block2_forward.4} parent=66 // pred_check
          %p2225 = pneg %p226
        $region77: #{en_block2_forward.4} parent=66 // pred_check_branch
          %2227 = sbr.rel (%p2225) target = $region79
        $region78: #{en_block2_forward.4} parent=66 // pred_region
          %p2228 = scmp.lt.s32.totalorder %s28, 1
          %s2229 = scalar_select %p2228, %s28, 1
          %p2230 = scmp.lt.s32.totalorder %s29, 1
          %s2231 = scalar_select %p2230, %s29, 1
          %s2232 = smul.addr %s2229, 2
          %s2233 = sadd.s32 %s2231, %s2232
          %s2234 = scalar_lea.vmem %s7, %s2233
        $region79: #{en_block2_forward.4} parent=66 // pred_fallthru
          _
      $region67: #{en_block2_forward.4} parent=5 // pred_fallthru
        _
    $region6: #{en_block2_forward.4} parent=1 // loop_footer
      %s21 = sadd.s32 1, %s17
    $region7: #{en_block2_forward.4} parent=1 // loop_footer_branch
      %16 = sbr.rel target = $region3
    $region8: #{en_block2_forward.4} parent=1 // loop_exit
      _
    %2235 = vsyncpa [#allocation4], 1
    %s2236 = scalar_lea.sflag [#allocation4], 1
    %2237 = vsyncpa %s2236, 1

</llo_original>
